<compile_context>
chip_gen: v7x
topology: tpu7x:2x2x1
jax: 0.10.0
libtpu: 0.0.40
codegen_flags: <defaults>
</compile_context>

<pallas_src>
import jax
import jax.numpy as jnp
from jax import lax
from jax.experimental import pallas as pl
from jax.experimental.pallas import tpu as pltpu

# Small demo shapes consistent with the module.
N, C, H, W = 2, 4, 16, 16
K = 7              # conv kernel size
PAD = 3            # conv padding
HP, WP = H + 2 * PAD, W + 2 * PAD


def spatial_attention_kernel(x_ref, w_ref, b_ref, o_ref, pad_ref):
    # x_ref   : (1, C, H*W)  VMEM — one batch element, lane-dense flattened spatial
    # w_ref   : (2*K*K,)     SMEM — conv weights, (plane, kh, kw); plane 0=avg, 1=max
    # b_ref   : (1,)         SMEM — conv bias
    # o_ref   : (1, 1, H*W)  VMEM — lane-dense sigmoid(conv(cat(avg, max)))
    # pad_ref : (2, HP, WP)  VMEM scratch — zero-padded avg/max planes
    xb = x_ref[0].astype(jnp.float32)                      # (C, H*W)

    # ---- channel mean / max: vector reductions over C (no serial unroll). ----
    avg_row = jnp.mean(xb, axis=0, keepdims=True)          # (1, H*W)
    max_row = jnp.max(xb, axis=0, keepdims=True)           # (1, H*W)

    # ---- zero only the 3-wide halo strips (the conv's zero padding). ----
    # Interior is fully overwritten below, so no full-scratch zeroing and no
    # reliance on scratch persistence across (parallel) grid steps.
    zrow = jnp.zeros((PAD, WP), jnp.float32)
    zcol = jnp.zeros((H, PAD), jnp.float32)
    for p in range(2):
        pad_ref[p, 0:PAD, :] = zrow
        pad_ref[p, PAD + H:HP, :] = zrow
        pad_ref[p, PAD:PAD + H, 0:PAD] = zcol
        pad_ref[p, PAD:PAD + H, PAD + W:WP] = zcol

    # ---- scatter flat rows into the padded planes (single write pass). ----
    # These stores are also the (H*W,) -> (H, W) relayout: Mosaic has no cheap
    # in-register reshape across the lane dim, so the scratch does double duty.
    for i in range(H):
        pad_ref[0, PAD + i:PAD + i + 1, PAD:PAD + W] = avg_row[:, i * W:(i + 1) * W]
        pad_ref[1, PAD + i:PAD + i + 1, PAD:PAD + W] = max_row[:, i * W:(i + 1) * W]

    pa = pad_ref[0]                                        # (HP, WP) — one load/plane
    pm = pad_ref[1]

    # ---- hoist all 98 scalar weights out of the tap loops (one SMEM read each).
    wa = [[w_ref[kh * K + kw] for kw in range(K)] for kh in range(K)]
    wm = [[w_ref[K * K + kh * K + kw] for kw in range(K)] for kh in range(K)]

    # ---- 7x7 conv (2 planes -> 1 channel): VPU shift-and-accumulate. ----
    # kh row slice hoisted out of the kw loop; kw shift is a static lane slice.
    acc = jnp.full((H, W), b_ref[0], dtype=jnp.float32)
    for kh in range(K):
        ra = pa[kh:kh + H, :]                              # (H, WP)
        rm = pm[kh:kh + H, :]
        for kw in range(K):
            acc = acc + wa[kh][kw] * ra[:, kw:kw + W] + wm[kh][kw] * rm[:, kw:kw + W]

    y = jax.nn.sigmoid(acc)                                # (H, W), EUP

    # ---- lane-dense output store: each spatial row into its flat slot. ----
    for i in range(H):
        o_ref[0, :, i * W:(i + 1) * W] = y[i:i + 1, :].astype(o_ref.dtype)


def spatial_attention(x, weight, bias):
    """x: (N, C, H, W) f32; weight: (1, 2, K, K) f32; bias: (1,) f32."""
    n, c, h, w = x.shape
    hw = h * w
    x_flat = x.reshape(n, c, hw)                           # lane-dense view (free)
    w_flat = weight.reshape(-1).astype(jnp.float32)        # (2*K*K,), (plane, kh, kw)
    b_flat = bias.reshape(-1).astype(jnp.float32)          # (1,)

    out_flat = pl.pallas_call(
        spatial_attention_kernel,
        out_shape=jax.ShapeDtypeStruct((n, 1, hw), x.dtype),
        grid=(n,),
        in_specs=[
            pl.BlockSpec((1, c, hw), lambda i: (i, 0, 0)),            # x, VMEM
            pl.BlockSpec(memory_space=pltpu.MemorySpace.SMEM),        # weights
            pl.BlockSpec(memory_space=pltpu.MemorySpace.SMEM),        # bias
        ],
        out_specs=pl.BlockSpec((1, 1, hw), lambda i: (i, 0, 0)),
        scratch_shapes=[
            pltpu.VMEM((2, h + 2 * PAD, w + 2 * PAD), jnp.float32),
        ],
        compiler_params=pltpu.CompilerParams(
            dimension_semantics=("parallel",)),            # v7x: 2 TCs split N
    )(x_flat, w_flat, b_flat)

    return out_flat.reshape(n, 1, h, w)


def spatial_attention_reference(x, weight, bias):
    avg = jnp.mean(x, axis=1, keepdims=True)
    mx = jnp.max(x, axis=1, keepdims=True)
    cat = jnp.concatenate([avg, mx], axis=1)
    y = lax.conv_general_dilated(
        cat, weight, window_strides=(1, 1),
        padding=((PAD, PAD), (PAD, PAD)),
        dimension_numbers=("NCHW", "OIHW", "NCHW"))
    return jax.nn.sigmoid(y + bias.reshape(1, 1, 1, 1))


if __name__ == "__main__":
    key = jax.random.PRNGKey(0)
    kx, kw_, kb = jax.random.split(key, 3)

    # Deterministic input and parameters (conv2d: in=2, out=1, k=7).
    x = jax.random.normal(kx, (N, C, H, W), dtype=jnp.float32)
    weight = jax.random.normal(kw_, (1, 2, K, K), dtype=jnp.float32) * (
        1.0 / jnp.sqrt(2.0 * K * K))
    bias = jax.random.normal(kb, (1,), dtype=jnp.float32) * 0.1

    out = jax.block_until_ready(spatial_attention(x, weight, bias))
    ref = jax.block_until_ready(spatial_attention_reference(x, weight, bias))

    assert out.shape == (N, 1, H, W), out.shape
    assert jnp.allclose(out, ref, rtol=1e-4, atol=1e-5), (
        float(jnp.max(jnp.abs(out - ref))))

    print("KERNEL_OK")
</pallas_src>

<mosaic_0001>
module attributes {stable_mosaic.version = 11 : i64} {
  func.func @spatial_attention_kernel(%arg0: i32, %arg1: memref<1x4x256xf32, #tpu.memory_space<vmem>>, %arg2: memref<98xf32, #tpu.memory_space<smem>>, %arg3: memref<1xf32, #tpu.memory_space<smem>>, %arg4: memref<1x1x256xf32, #tpu.memory_space<vmem>>, %arg5: memref<2x22x22xf32, #tpu.memory_space<vmem>>) attributes {dimension_semantics = [#tpu.dimension_semantics<parallel>], iteration_bounds = array<i64: 2>, scalar_prefetch = 0 : i64, scratch_operands = 1 : i64, tpu.core_type = #tpu.core_type<tc>, window_params = [{transform_indices = @transform_0, window_bounds = array<i64: 1, 4, 256>}, {transform_indices = @transform_1, window_bounds = array<i64: 98>}, {transform_indices = @transform_2, window_bounds = array<i64: 1>}, {transform_indices = @transform_3, window_bounds = array<i64: 1, 1, 256>}]} {
    %c0 = arith.constant 0 : index
    %c0_0 = arith.constant 0 : index
    %c0_1 = arith.constant 0 : index
    %0 = vector.load %arg1[%c0, %c0_0, %c0_1] : memref<1x4x256xf32, #tpu.memory_space<vmem>>, vector<1x4x256xf32>
    %1 = vector.shape_cast %0 : vector<1x4x256xf32> to vector<4x256xf32>
    %cst = arith.constant dense<0.000000e+00> : vector<256xf32>
    %2 = vector.multi_reduction <add>, %1, %cst [0] : vector<4x256xf32> to vector<256xf32>
    %3 = vector.shape_cast %2 : vector<256xf32> to vector<1x256xf32>
    %cst_2 = arith.constant 4.000000e+00 : f32
    %4 = vector.broadcast %cst_2 : f32 to vector<1x256xf32>
    %5 = arith.divf %3, %4 : vector<1x256xf32>
    %cst_3 = arith.constant dense<0xFF800000> : vector<256xf32>
    %6 = vector.multi_reduction <maximumf>, %1, %cst_3 [0] : vector<4x256xf32> to vector<256xf32>
    %7 = vector.shape_cast %6 : vector<256xf32> to vector<1x256xf32>
    %cst_4 = arith.constant 0.000000e+00 : f32
    %8 = vector.broadcast %cst_4 : f32 to vector<3x22xf32>
    %cst_5 = arith.constant 0.000000e+00 : f32
    %9 = vector.broadcast %cst_5 : f32 to vector<16x3xf32>
    %c0_6 = arith.constant 0 : index
    %c0_7 = arith.constant 0 : index
    %c0_8 = arith.constant 0 : index
    %10 = vector.load %arg5[%c0_6, %c0_7, %c0_8] : memref<2x22x22xf32, #tpu.memory_space<vmem>>, vector<1x3x22xf32>
    %11 = vector.shape_cast %10 : vector<1x3x22xf32> to vector<3x22xf32>
    %12 = vector.shape_cast %8 : vector<3x22xf32> to vector<1x3x22xf32>
    tpu.vector_store %arg5[%c0_6, %c0_7, %c0_8], %12 {strides = array<i32>} : memref<2x22x22xf32, #tpu.memory_space<vmem>>, vector<1x3x22xf32>,
    %c0_9 = arith.constant 0 : index
    %c19 = arith.constant 19 : index
    %c0_10 = arith.constant 0 : index
    %13 = vector.load %arg5[%c0_9, %c19, %c0_10] : memref<2x22x22xf32, #tpu.memory_space<vmem>>, vector<1x3x22xf32>
    %14 = vector.shape_cast %13 : vector<1x3x22xf32> to vector<3x22xf32>
    %15 = vector.shape_cast %8 : vector<3x22xf32> to vector<1x3x22xf32>
    tpu.vector_store %arg5[%c0_9, %c19, %c0_10], %15 {strides = array<i32>} : memref<2x22x22xf32, #tpu.memory_space<vmem>>, vector<1x3x22xf32>,
    %c0_11 = arith.constant 0 : index
    %c3 = arith.constant 3 : index
    %c0_12 = arith.constant 0 : index
    %16 = vector.load %arg5[%c0_11, %c3, %c0_12] : memref<2x22x22xf32, #tpu.memory_space<vmem>>, vector<1x16x3xf32>
    %17 = vector.shape_cast %16 : vector<1x16x3xf32> to vector<16x3xf32>
    %18 = vector.shape_cast %9 : vector<16x3xf32> to vector<1x16x3xf32>
    tpu.vector_store %arg5[%c0_11, %c3, %c0_12], %18 {strides = array<i32>} : memref<2x22x22xf32, #tpu.memory_space<vmem>>, vector<1x16x3xf32>,
    %c0_13 = arith.constant 0 : index
    %c3_14 = arith.constant 3 : index
    %c19_15 = arith.constant 19 : index
    %19 = vector.load %arg5[%c0_13, %c3_14, %c19_15] : memref<2x22x22xf32, #tpu.memory_space<vmem>>, vector<1x16x3xf32>
    %20 = vector.shape_cast %19 : vector<1x16x3xf32> to vector<16x3xf32>
    %21 = vector.shape_cast %9 : vector<16x3xf32> to vector<1x16x3xf32>
    tpu.vector_store %arg5[%c0_13, %c3_14, %c19_15], %21 {strides = array<i32>} : memref<2x22x22xf32, #tpu.memory_space<vmem>>, vector<1x16x3xf32>,
    %c1 = arith.constant 1 : index
    %c0_16 = arith.constant 0 : index
    %c0_17 = arith.constant 0 : index
    %22 = vector.load %arg5[%c1, %c0_16, %c0_17] : memref<2x22x22xf32, #tpu.memory_space<vmem>>, vector<1x3x22xf32>
    %23 = vector.shape_cast %22 : vector<1x3x22xf32> to vector<3x22xf32>
    %24 = vector.shape_cast %8 : vector<3x22xf32> to vector<1x3x22xf32>
    tpu.vector_store %arg5[%c1, %c0_16, %c0_17], %24 {strides = array<i32>} : memref<2x22x22xf32, #tpu.memory_space<vmem>>, vector<1x3x22xf32>,
    %c1_18 = arith.constant 1 : index
    %c19_19 = arith.constant 19 : index
    %c0_20 = arith.constant 0 : index
    %25 = vector.load %arg5[%c1_18, %c19_19, %c0_20] : memref<2x22x22xf32, #tpu.memory_space<vmem>>, vector<1x3x22xf32>
    %26 = vector.shape_cast %25 : vector<1x3x22xf32> to vector<3x22xf32>
    %27 = vector.shape_cast %8 : vector<3x22xf32> to vector<1x3x22xf32>
    tpu.vector_store %arg5[%c1_18, %c19_19, %c0_20], %27 {strides = array<i32>} : memref<2x22x22xf32, #tpu.memory_space<vmem>>, vector<1x3x22xf32>,
    %c1_21 = arith.constant 1 : index
    %c3_22 = arith.constant 3 : index
    %c0_23 = arith.constant 0 : index
    %28 = vector.load %arg5[%c1_21, %c3_22, %c0_23] : memref<2x22x22xf32, #tpu.memory_space<vmem>>, vector<1x16x3xf32>
    %29 = vector.shape_cast %28 : vector<1x16x3xf32> to vector<16x3xf32>
    %30 = vector.shape_cast %9 : vector<16x3xf32> to vector<1x16x3xf32>
    tpu.vector_store %arg5[%c1_21, %c3_22, %c0_23], %30 {strides = array<i32>} : memref<2x22x22xf32, #tpu.memory_space<vmem>>, vector<1x16x3xf32>,
    %c1_24 = arith.constant 1 : index
    %c3_25 = arith.constant 3 : index
    %c19_26 = arith.constant 19 : index
    %31 = vector.load %arg5[%c1_24, %c3_25, %c19_26] : memref<2x22x22xf32, #tpu.memory_space<vmem>>, vector<1x16x3xf32>
    %32 = vector.shape_cast %31 : vector<1x16x3xf32> to vector<16x3xf32>
    %33 = vector.shape_cast %9 : vector<16x3xf32> to vector<1x16x3xf32>
    tpu.vector_store %arg5[%c1_24, %c3_25, %c19_26], %33 {strides = array<i32>} : memref<2x22x22xf32, #tpu.memory_space<vmem>>, vector<1x16x3xf32>,
    %34 = vector.extract_strided_slice %5 {offsets = [0, 0], sizes = [1, 16], strides = [1, 1]} : vector<1x256xf32> to vector<1x16xf32>
    %c0_27 = arith.constant 0 : index
    %c3_28 = arith.constant 3 : index
    %c3_29 = arith.constant 3 : index
    %35 = vector.load %arg5[%c0_27, %c3_28, %c3_29] : memref<2x22x22xf32, #tpu.memory_space<vmem>>, vector<1x1x16xf32>
    %36 = vector.shape_cast %35 : vector<1x1x16xf32> to vector<1x16xf32>
    %37 = vector.shape_cast %34 : vector<1x16xf32> to vector<1x1x16xf32>
    tpu.vector_store %arg5[%c0_27, %c3_28, %c3_29], %37 {strides = array<i32>} : memref<2x22x22xf32, #tpu.memory_space<vmem>>, vector<1x1x16xf32>,
    %38 = vector.extract_strided_slice %7 {offsets = [0, 0], sizes = [1, 16], strides = [1, 1]} : vector<1x256xf32> to vector<1x16xf32>
    %c1_30 = arith.constant 1 : index
    %c3_31 = arith.constant 3 : index
    %c3_32 = arith.constant 3 : index
    %39 = vector.load %arg5[%c1_30, %c3_31, %c3_32] : memref<2x22x22xf32, #tpu.memory_space<vmem>>, vector<1x1x16xf32>
    %40 = vector.shape_cast %39 : vector<1x1x16xf32> to vector<1x16xf32>
    %41 = vector.shape_cast %38 : vector<1x16xf32> to vector<1x1x16xf32>
    tpu.vector_store %arg5[%c1_30, %c3_31, %c3_32], %41 {strides = array<i32>} : memref<2x22x22xf32, #tpu.memory_space<vmem>>, vector<1x1x16xf32>,
    %42 = vector.extract_strided_slice %5 {offsets = [0, 16], sizes = [1, 16], strides = [1, 1]} : vector<1x256xf32> to vector<1x16xf32>
    %c0_33 = arith.constant 0 : index
    %c4 = arith.constant 4 : index
    %c3_34 = arith.constant 3 : index
    %43 = vector.load %arg5[%c0_33, %c4, %c3_34] : memref<2x22x22xf32, #tpu.memory_space<vmem>>, vector<1x1x16xf32>
    %44 = vector.shape_cast %43 : vector<1x1x16xf32> to vector<1x16xf32>
    %45 = vector.shape_cast %42 : vector<1x16xf32> to vector<1x1x16xf32>
    tpu.vector_store %arg5[%c0_33, %c4, %c3_34], %45 {strides = array<i32>} : memref<2x22x22xf32, #tpu.memory_space<vmem>>, vector<1x1x16xf32>,
    %46 = vector.extract_strided_slice %7 {offsets = [0, 16], sizes = [1, 16], strides = [1, 1]} : vector<1x256xf32> to vector<1x16xf32>
    %c1_35 = arith.constant 1 : index
    %c4_36 = arith.constant 4 : index
    %c3_37 = arith.constant 3 : index
    %47 = vector.load %arg5[%c1_35, %c4_36, %c3_37] : memref<2x22x22xf32, #tpu.memory_space<vmem>>, vector<1x1x16xf32>
    %48 = vector.shape_cast %47 : vector<1x1x16xf32> to vector<1x16xf32>
    %49 = vector.shape_cast %46 : vector<1x16xf32> to vector<1x1x16xf32>
    tpu.vector_store %arg5[%c1_35, %c4_36, %c3_37], %49 {strides = array<i32>} : memref<2x22x22xf32, #tpu.memory_space<vmem>>, vector<1x1x16xf32>,
    %50 = vector.extract_strided_slice %5 {offsets = [0, 32], sizes = [1, 16], strides = [1, 1]} : vector<1x256xf32> to vector<1x16xf32>
    %c0_38 = arith.constant 0 : index
    %c5 = arith.constant 5 : index
    %c3_39 = arith.constant 3 : index
    %51 = vector.load %arg5[%c0_38, %c5, %c3_39] : memref<2x22x22xf32, #tpu.memory_space<vmem>>, vector<1x1x16xf32>
    %52 = vector.shape_cast %51 : vector<1x1x16xf32> to vector<1x16xf32>
    %53 = vector.shape_cast %50 : vector<1x16xf32> to vector<1x1x16xf32>
    tpu.vector_store %arg5[%c0_38, %c5, %c3_39], %53 {strides = array<i32>} : memref<2x22x22xf32, #tpu.memory_space<vmem>>, vector<1x1x16xf32>,
    %54 = vector.extract_strided_slice %7 {offsets = [0, 32], sizes = [1, 16], strides = [1, 1]} : vector<1x256xf32> to vector<1x16xf32>
    %c1_40 = arith.constant 1 : index
    %c5_41 = arith.constant 5 : index
    %c3_42 = arith.constant 3 : index
    %55 = vector.load %arg5[%c1_40, %c5_41, %c3_42] : memref<2x22x22xf32, #tpu.memory_space<vmem>>, vector<1x1x16xf32>
    %56 = vector.shape_cast %55 : vector<1x1x16xf32> to vector<1x16xf32>
    %57 = vector.shape_cast %54 : vector<1x16xf32> to vector<1x1x16xf32>
    tpu.vector_store %arg5[%c1_40, %c5_41, %c3_42], %57 {strides = array<i32>} : memref<2x22x22xf32, #tpu.memory_space<vmem>>, vector<1x1x16xf32>,
    %58 = vector.extract_strided_slice %5 {offsets = [0, 48], sizes = [1, 16], strides = [1, 1]} : vector<1x256xf32> to vector<1x16xf32>
    %c0_43 = arith.constant 0 : index
    %c6 = arith.constant 6 : index
    %c3_44 = arith.constant 3 : index
    %59 = vector.load %arg5[%c0_43, %c6, %c3_44] : memref<2x22x22xf32, #tpu.memory_space<vmem>>, vector<1x1x16xf32>
    %60 = vector.shape_cast %59 : vector<1x1x16xf32> to vector<1x16xf32>
    %61 = vector.shape_cast %58 : vector<1x16xf32> to vector<1x1x16xf32>
    tpu.vector_store %arg5[%c0_43, %c6, %c3_44], %61 {strides = array<i32>} : memref<2x22x22xf32, #tpu.memory_space<vmem>>, vector<1x1x16xf32>,
    %62 = vector.extract_strided_slice %7 {offsets = [0, 48], sizes = [1, 16], strides = [1, 1]} : vector<1x256xf32> to vector<1x16xf32>
    %c1_45 = arith.constant 1 : index
    %c6_46 = arith.constant 6 : index
    %c3_47 = arith.constant 3 : index
    %63 = vector.load %arg5[%c1_45, %c6_46, %c3_47] : memref<2x22x22xf32, #tpu.memory_space<vmem>>, vector<1x1x16xf32>
    %64 = vector.shape_cast %63 : vector<1x1x16xf32> to vector<1x16xf32>
    %65 = vector.shape_cast %62 : vector<1x16xf32> to vector<1x1x16xf32>
    tpu.vector_store %arg5[%c1_45, %c6_46, %c3_47], %65 {strides = array<i32>} : memref<2x22x22xf32, #tpu.memory_space<vmem>>, vector<1x1x16xf32>,
    %66 = vector.extract_strided_slice %5 {offsets = [0, 64], sizes = [1, 16], strides = [1, 1]} : vector<1x256xf32> to vector<1x16xf32>
    %c0_48 = arith.constant 0 : index
    %c7 = arith.constant 7 : index
    %c3_49 = arith.constant 3 : index
    %67 = vector.load %arg5[%c0_48, %c7, %c3_49] : memref<2x22x22xf32, #tpu.memory_space<vmem>>, vector<1x1x16xf32>
    %68 = vector.shape_cast %67 : vector<1x1x16xf32> to vector<1x16xf32>
    %69 = vector.shape_cast %66 : vector<1x16xf32> to vector<1x1x16xf32>
    tpu.vector_store %arg5[%c0_48, %c7, %c3_49], %69 {strides = array<i32>} : memref<2x22x22xf32, #tpu.memory_space<vmem>>, vector<1x1x16xf32>,
    %70 = vector.extract_strided_slice %7 {offsets = [0, 64], sizes = [1, 16], strides = [1, 1]} : vector<1x256xf32> to vector<1x16xf32>
    %c1_50 = arith.constant 1 : index
    %c7_51 = arith.constant 7 : index
    %c3_52 = arith.constant 3 : index
    %71 = vector.load %arg5[%c1_50, %c7_51, %c3_52] : memref<2x22x22xf32, #tpu.memory_space<vmem>>, vector<1x1x16xf32>
    %72 = vector.shape_cast %71 : vector<1x1x16xf32> to vector<1x16xf32>
    %73 = vector.shape_cast %70 : vector<1x16xf32> to vector<1x1x16xf32>
    tpu.vector_store %arg5[%c1_50, %c7_51, %c3_52], %73 {strides = array<i32>} : memref<2x22x22xf32, #tpu.memory_space<vmem>>, vector<1x1x16xf32>,
    %74 = vector.extract_strided_slice %5 {offsets = [0, 80], sizes = [1, 16], strides = [1, 1]} : vector<1x256xf32> to vector<1x16xf32>
    %c0_53 = arith.constant 0 : index
    %c8 = arith.constant 8 : index
    %c3_54 = arith.constant 3 : index
    %75 = vector.load %arg5[%c0_53, %c8, %c3_54] : memref<2x22x22xf32, #tpu.memory_space<vmem>>, vector<1x1x16xf32>
    %76 = vector.shape_cast %75 : vector<1x1x16xf32> to vector<1x16xf32>
    %77 = vector.shape_cast %74 : vector<1x16xf32> to vector<1x1x16xf32>
    tpu.vector_store %arg5[%c0_53, %c8, %c3_54], %77 {strides = array<i32>} : memref<2x22x22xf32, #tpu.memory_space<vmem>>, vector<1x1x16xf32>,
    %78 = vector.extract_strided_slice %7 {offsets = [0, 80], sizes = [1, 16], strides = [1, 1]} : vector<1x256xf32> to vector<1x16xf32>
    %c1_55 = arith.constant 1 : index
    %c8_56 = arith.constant 8 : index
    %c3_57 = arith.constant 3 : index
    %79 = vector.load %arg5[%c1_55, %c8_56, %c3_57] : memref<2x22x22xf32, #tpu.memory_space<vmem>>, vector<1x1x16xf32>
    %80 = vector.shape_cast %79 : vector<1x1x16xf32> to vector<1x16xf32>
    %81 = vector.shape_cast %78 : vector<1x16xf32> to vector<1x1x16xf32>
    tpu.vector_store %arg5[%c1_55, %c8_56, %c3_57], %81 {strides = array<i32>} : memref<2x22x22xf32, #tpu.memory_space<vmem>>, vector<1x1x16xf32>,
    %82 = vector.extract_strided_slice %5 {offsets = [0, 96], sizes = [1, 16], strides = [1, 1]} : vector<1x256xf32> to vector<1x16xf32>
    %c0_58 = arith.constant 0 : index
    %c9 = arith.constant 9 : index
    %c3_59 = arith.constant 3 : index
    %83 = vector.load %arg5[%c0_58, %c9, %c3_59] : memref<2x22x22xf32, #tpu.memory_space<vmem>>, vector<1x1x16xf32>
    %84 = vector.shape_cast %83 : vector<1x1x16xf32> to vector<1x16xf32>
    %85 = vector.shape_cast %82 : vector<1x16xf32> to vector<1x1x16xf32>
    tpu.vector_store %arg5[%c0_58, %c9, %c3_59], %85 {strides = array<i32>} : memref<2x22x22xf32, #tpu.memory_space<vmem>>, vector<1x1x16xf32>,
    %86 = vector.extract_strided_slice %7 {offsets = [0, 96], sizes = [1, 16], strides = [1, 1]} : vector<1x256xf32> to vector<1x16xf32>
    %c1_60 = arith.constant 1 : index
    %c9_61 = arith.constant 9 : index
    %c3_62 = arith.constant 3 : index
    %87 = vector.load %arg5[%c1_60, %c9_61, %c3_62] : memref<2x22x22xf32, #tpu.memory_space<vmem>>, vector<1x1x16xf32>
    %88 = vector.shape_cast %87 : vector<1x1x16xf32> to vector<1x16xf32>
    %89 = vector.shape_cast %86 : vector<1x16xf32> to vector<1x1x16xf32>
    tpu.vector_store %arg5[%c1_60, %c9_61, %c3_62], %89 {strides = array<i32>} : memref<2x22x22xf32, #tpu.memory_space<vmem>>, vector<1x1x16xf32>,
    %90 = vector.extract_strided_slice %5 {offsets = [0, 112], sizes = [1, 16], strides = [1, 1]} : vector<1x256xf32> to vector<1x16xf32>
    %c0_63 = arith.constant 0 : index
    %c10 = arith.constant 10 : index
    %c3_64 = arith.constant 3 : index
    %91 = vector.load %arg5[%c0_63, %c10, %c3_64] : memref<2x22x22xf32, #tpu.memory_space<vmem>>, vector<1x1x16xf32>
    %92 = vector.shape_cast %91 : vector<1x1x16xf32> to vector<1x16xf32>
    %93 = vector.shape_cast %90 : vector<1x16xf32> to vector<1x1x16xf32>
    tpu.vector_store %arg5[%c0_63, %c10, %c3_64], %93 {strides = array<i32>} : memref<2x22x22xf32, #tpu.memory_space<vmem>>, vector<1x1x16xf32>,
    %94 = vector.extract_strided_slice %7 {offsets = [0, 112], sizes = [1, 16], strides = [1, 1]} : vector<1x256xf32> to vector<1x16xf32>
    %c1_65 = arith.constant 1 : index
    %c10_66 = arith.constant 10 : index
    %c3_67 = arith.constant 3 : index
    %95 = vector.load %arg5[%c1_65, %c10_66, %c3_67] : memref<2x22x22xf32, #tpu.memory_space<vmem>>, vector<1x1x16xf32>
    %96 = vector.shape_cast %95 : vector<1x1x16xf32> to vector<1x16xf32>
    %97 = vector.shape_cast %94 : vector<1x16xf32> to vector<1x1x16xf32>
    tpu.vector_store %arg5[%c1_65, %c10_66, %c3_67], %97 {strides = array<i32>} : memref<2x22x22xf32, #tpu.memory_space<vmem>>, vector<1x1x16xf32>,
    %98 = vector.extract_strided_slice %5 {offsets = [0, 128], sizes = [1, 16], strides = [1, 1]} : vector<1x256xf32> to vector<1x16xf32>
    %c0_68 = arith.constant 0 : index
    %c11 = arith.constant 11 : index
    %c3_69 = arith.constant 3 : index
    %99 = vector.load %arg5[%c0_68, %c11, %c3_69] : memref<2x22x22xf32, #tpu.memory_space<vmem>>, vector<1x1x16xf32>
    %100 = vector.shape_cast %99 : vector<1x1x16xf32> to vector<1x16xf32>
    %101 = vector.shape_cast %98 : vector<1x16xf32> to vector<1x1x16xf32>
    tpu.vector_store %arg5[%c0_68, %c11, %c3_69], %101 {strides = array<i32>} : memref<2x22x22xf32, #tpu.memory_space<vmem>>, vector<1x1x16xf32>,
    %102 = vector.extract_strided_slice %7 {offsets = [0, 128], sizes = [1, 16], strides = [1, 1]} : vector<1x256xf32> to vector<1x16xf32>
    %c1_70 = arith.constant 1 : index
    %c11_71 = arith.constant 11 : index
    %c3_72 = arith.constant 3 : index
    %103 = vector.load %arg5[%c1_70, %c11_71, %c3_72] : memref<2x22x22xf32, #tpu.memory_space<vmem>>, vector<1x1x16xf32>
    %104 = vector.shape_cast %103 : vector<1x1x16xf32> to vector<1x16xf32>
    %105 = vector.shape_cast %102 : vector<1x16xf32> to vector<1x1x16xf32>
    tpu.vector_store %arg5[%c1_70, %c11_71, %c3_72], %105 {strides = array<i32>} : memref<2x22x22xf32, #tpu.memory_space<vmem>>, vector<1x1x16xf32>,
    %106 = vector.extract_strided_slice %5 {offsets = [0, 144], sizes = [1, 16], strides = [1, 1]} : vector<1x256xf32> to vector<1x16xf32>
    %c0_73 = arith.constant 0 : index
    %c12 = arith.constant 12 : index
    %c3_74 = arith.constant 3 : index
    %107 = vector.load %arg5[%c0_73, %c12, %c3_74] : memref<2x22x22xf32, #tpu.memory_space<vmem>>, vector<1x1x16xf32>
    %108 = vector.shape_cast %107 : vector<1x1x16xf32> to vector<1x16xf32>
    %109 = vector.shape_cast %106 : vector<1x16xf32> to vector<1x1x16xf32>
    tpu.vector_store %arg5[%c0_73, %c12, %c3_74], %109 {strides = array<i32>} : memref<2x22x22xf32, #tpu.memory_space<vmem>>, vector<1x1x16xf32>,
    %110 = vector.extract_strided_slice %7 {offsets = [0, 144], sizes = [1, 16], strides = [1, 1]} : vector<1x256xf32> to vector<1x16xf32>
    %c1_75 = arith.constant 1 : index
    %c12_76 = arith.constant 12 : index
    %c3_77 = arith.constant 3 : index
    %111 = vector.load %arg5[%c1_75, %c12_76, %c3_77] : memref<2x22x22xf32, #tpu.memory_space<vmem>>, vector<1x1x16xf32>
    %112 = vector.shape_cast %111 : vector<1x1x16xf32> to vector<1x16xf32>
    %113 = vector.shape_cast %110 : vector<1x16xf32> to vector<1x1x16xf32>
    tpu.vector_store %arg5[%c1_75, %c12_76, %c3_77], %113 {strides = array<i32>} : memref<2x22x22xf32, #tpu.memory_space<vmem>>, vector<1x1x16xf32>,
    %114 = vector.extract_strided_slice %5 {offsets = [0, 160], sizes = [1, 16], strides = [1, 1]} : vector<1x256xf32> to vector<1x16xf32>
    %c0_78 = arith.constant 0 : index
    %c13 = arith.constant 13 : index
    %c3_79 = arith.constant 3 : index
    %115 = vector.load %arg5[%c0_78, %c13, %c3_79] : memref<2x22x22xf32, #tpu.memory_space<vmem>>, vector<1x1x16xf32>
    %116 = vector.shape_cast %115 : vector<1x1x16xf32> to vector<1x16xf32>
    %117 = vector.shape_cast %114 : vector<1x16xf32> to vector<1x1x16xf32>
    tpu.vector_store %arg5[%c0_78, %c13, %c3_79], %117 {strides = array<i32>} : memref<2x22x22xf32, #tpu.memory_space<vmem>>, vector<1x1x16xf32>,
    %118 = vector.extract_strided_slice %7 {offsets = [0, 160], sizes = [1, 16], strides = [1, 1]} : vector<1x256xf32> to vector<1x16xf32>
    %c1_80 = arith.constant 1 : index
    %c13_81 = arith.constant 13 : index
    %c3_82 = arith.constant 3 : index
    %119 = vector.load %arg5[%c1_80, %c13_81, %c3_82] : memref<2x22x22xf32, #tpu.memory_space<vmem>>, vector<1x1x16xf32>
    %120 = vector.shape_cast %119 : vector<1x1x16xf32> to vector<1x16xf32>
    %121 = vector.shape_cast %118 : vector<1x16xf32> to vector<1x1x16xf32>
    tpu.vector_store %arg5[%c1_80, %c13_81, %c3_82], %121 {strides = array<i32>} : memref<2x22x22xf32, #tpu.memory_space<vmem>>, vector<1x1x16xf32>,
    %122 = vector.extract_strided_slice %5 {offsets = [0, 176], sizes = [1, 16], strides = [1, 1]} : vector<1x256xf32> to vector<1x16xf32>
    %c0_83 = arith.constant 0 : index
    %c14 = arith.constant 14 : index
    %c3_84 = arith.constant 3 : index
    %123 = vector.load %arg5[%c0_83, %c14, %c3_84] : memref<2x22x22xf32, #tpu.memory_space<vmem>>, vector<1x1x16xf32>
    %124 = vector.shape_cast %123 : vector<1x1x16xf32> to vector<1x16xf32>
    %125 = vector.shape_cast %122 : vector<1x16xf32> to vector<1x1x16xf32>
    tpu.vector_store %arg5[%c0_83, %c14, %c3_84], %125 {strides = array<i32>} : memref<2x22x22xf32, #tpu.memory_space<vmem>>, vector<1x1x16xf32>,
    %126 = vector.extract_strided_slice %7 {offsets = [0, 176], sizes = [1, 16], strides = [1, 1]} : vector<1x256xf32> to vector<1x16xf32>
    %c1_85 = arith.constant 1 : index
    %c14_86 = arith.constant 14 : index
    %c3_87 = arith.constant 3 : index
    %127 = vector.load %arg5[%c1_85, %c14_86, %c3_87] : memref<2x22x22xf32, #tpu.memory_space<vmem>>, vector<1x1x16xf32>
    %128 = vector.shape_cast %127 : vector<1x1x16xf32> to vector<1x16xf32>
    %129 = vector.shape_cast %126 : vector<1x16xf32> to vector<1x1x16xf32>
    tpu.vector_store %arg5[%c1_85, %c14_86, %c3_87], %129 {strides = array<i32>} : memref<2x22x22xf32, #tpu.memory_space<vmem>>, vector<1x1x16xf32>,
    %130 = vector.extract_strided_slice %5 {offsets = [0, 192], sizes = [1, 16], strides = [1, 1]} : vector<1x256xf32> to vector<1x16xf32>
    %c0_88 = arith.constant 0 : index
    %c15 = arith.constant 15 : index
    %c3_89 = arith.constant 3 : index
    %131 = vector.load %arg5[%c0_88, %c15, %c3_89] : memref<2x22x22xf32, #tpu.memory_space<vmem>>, vector<1x1x16xf32>
    %132 = vector.shape_cast %131 : vector<1x1x16xf32> to vector<1x16xf32>
    %133 = vector.shape_cast %130 : vector<1x16xf32> to vector<1x1x16xf32>
    tpu.vector_store %arg5[%c0_88, %c15, %c3_89], %133 {strides = array<i32>} : memref<2x22x22xf32, #tpu.memory_space<vmem>>, vector<1x1x16xf32>,
    %134 = vector.extract_strided_slice %7 {offsets = [0, 192], sizes = [1, 16], strides = [1, 1]} : vector<1x256xf32> to vector<1x16xf32>
    %c1_90 = arith.constant 1 : index
    %c15_91 = arith.constant 15 : index
    %c3_92 = arith.constant 3 : index
    %135 = vector.load %arg5[%c1_90, %c15_91, %c3_92] : memref<2x22x22xf32, #tpu.memory_space<vmem>>, vector<1x1x16xf32>
    %136 = vector.shape_cast %135 : vector<1x1x16xf32> to vector<1x16xf32>
    %137 = vector.shape_cast %134 : vector<1x16xf32> to vector<1x1x16xf32>
    tpu.vector_store %arg5[%c1_90, %c15_91, %c3_92], %137 {strides = array<i32>} : memref<2x22x22xf32, #tpu.memory_space<vmem>>, vector<1x1x16xf32>,
    %138 = vector.extract_strided_slice %5 {offsets = [0, 208], sizes = [1, 16], strides = [1, 1]} : vector<1x256xf32> to vector<1x16xf32>
    %c0_93 = arith.constant 0 : index
    %c16 = arith.constant 16 : index
    %c3_94 = arith.constant 3 : index
    %139 = vector.load %arg5[%c0_93, %c16, %c3_94] : memref<2x22x22xf32, #tpu.memory_space<vmem>>, vector<1x1x16xf32>
    %140 = vector.shape_cast %139 : vector<1x1x16xf32> to vector<1x16xf32>
    %141 = vector.shape_cast %138 : vector<1x16xf32> to vector<1x1x16xf32>
    tpu.vector_store %arg5[%c0_93, %c16, %c3_94], %141 {strides = array<i32>} : memref<2x22x22xf32, #tpu.memory_space<vmem>>, vector<1x1x16xf32>,
    %142 = vector.extract_strided_slice %7 {offsets = [0, 208], sizes = [1, 16], strides = [1, 1]} : vector<1x256xf32> to vector<1x16xf32>
    %c1_95 = arith.constant 1 : index
    %c16_96 = arith.constant 16 : index
    %c3_97 = arith.constant 3 : index
    %143 = vector.load %arg5[%c1_95, %c16_96, %c3_97] : memref<2x22x22xf32, #tpu.memory_space<vmem>>, vector<1x1x16xf32>
    %144 = vector.shape_cast %143 : vector<1x1x16xf32> to vector<1x16xf32>
    %145 = vector.shape_cast %142 : vector<1x16xf32> to vector<1x1x16xf32>
    tpu.vector_store %arg5[%c1_95, %c16_96, %c3_97], %145 {strides = array<i32>} : memref<2x22x22xf32, #tpu.memory_space<vmem>>, vector<1x1x16xf32>,
    %146 = vector.extract_strided_slice %5 {offsets = [0, 224], sizes = [1, 16], strides = [1, 1]} : vector<1x256xf32> to vector<1x16xf32>
    %c0_98 = arith.constant 0 : index
    %c17 = arith.constant 17 : index
    %c3_99 = arith.constant 3 : index
    %147 = vector.load %arg5[%c0_98, %c17, %c3_99] : memref<2x22x22xf32, #tpu.memory_space<vmem>>, vector<1x1x16xf32>
    %148 = vector.shape_cast %147 : vector<1x1x16xf32> to vector<1x16xf32>
    %149 = vector.shape_cast %146 : vector<1x16xf32> to vector<1x1x16xf32>
    tpu.vector_store %arg5[%c0_98, %c17, %c3_99], %149 {strides = array<i32>} : memref<2x22x22xf32, #tpu.memory_space<vmem>>, vector<1x1x16xf32>,
    %150 = vector.extract_strided_slice %7 {offsets = [0, 224], sizes = [1, 16], strides = [1, 1]} : vector<1x256xf32> to vector<1x16xf32>
    %c1_100 = arith.constant 1 : index
    %c17_101 = arith.constant 17 : index
    %c3_102 = arith.constant 3 : index
    %151 = vector.load %arg5[%c1_100, %c17_101, %c3_102] : memref<2x22x22xf32, #tpu.memory_space<vmem>>, vector<1x1x16xf32>
    %152 = vector.shape_cast %151 : vector<1x1x16xf32> to vector<1x16xf32>
    %153 = vector.shape_cast %150 : vector<1x16xf32> to vector<1x1x16xf32>
    tpu.vector_store %arg5[%c1_100, %c17_101, %c3_102], %153 {strides = array<i32>} : memref<2x22x22xf32, #tpu.memory_space<vmem>>, vector<1x1x16xf32>,
    %154 = vector.extract_strided_slice %5 {offsets = [0, 240], sizes = [1, 16], strides = [1, 1]} : vector<1x256xf32> to vector<1x16xf32>
    %c0_103 = arith.constant 0 : index
    %c18 = arith.constant 18 : index
    %c3_104 = arith.constant 3 : index
    %155 = vector.load %arg5[%c0_103, %c18, %c3_104] : memref<2x22x22xf32, #tpu.memory_space<vmem>>, vector<1x1x16xf32>
    %156 = vector.shape_cast %155 : vector<1x1x16xf32> to vector<1x16xf32>
    %157 = vector.shape_cast %154 : vector<1x16xf32> to vector<1x1x16xf32>
    tpu.vector_store %arg5[%c0_103, %c18, %c3_104], %157 {strides = array<i32>} : memref<2x22x22xf32, #tpu.memory_space<vmem>>, vector<1x1x16xf32>,
    %158 = vector.extract_strided_slice %7 {offsets = [0, 240], sizes = [1, 16], strides = [1, 1]} : vector<1x256xf32> to vector<1x16xf32>
    %c1_105 = arith.constant 1 : index
    %c18_106 = arith.constant 18 : index
    %c3_107 = arith.constant 3 : index
    %159 = vector.load %arg5[%c1_105, %c18_106, %c3_107] : memref<2x22x22xf32, #tpu.memory_space<vmem>>, vector<1x1x16xf32>
    %160 = vector.shape_cast %159 : vector<1x1x16xf32> to vector<1x16xf32>
    %161 = vector.shape_cast %158 : vector<1x16xf32> to vector<1x1x16xf32>
    tpu.vector_store %arg5[%c1_105, %c18_106, %c3_107], %161 {strides = array<i32>} : memref<2x22x22xf32, #tpu.memory_space<vmem>>, vector<1x1x16xf32>,
    %c0_108 = arith.constant 0 : index
    %c0_109 = arith.constant 0 : index
    %c0_110 = arith.constant 0 : index
    %162 = vector.load %arg5[%c0_108, %c0_109, %c0_110] : memref<2x22x22xf32, #tpu.memory_space<vmem>>, vector<1x22x22xf32>
    %163 = vector.shape_cast %162 : vector<1x22x22xf32> to vector<22x22xf32>
    %c1_111 = arith.constant 1 : index
    %c0_112 = arith.constant 0 : index
    %c0_113 = arith.constant 0 : index
    %164 = vector.load %arg5[%c1_111, %c0_112, %c0_113] : memref<2x22x22xf32, #tpu.memory_space<vmem>>, vector<1x22x22xf32>
    %165 = vector.shape_cast %164 : vector<1x22x22xf32> to vector<22x22xf32>
    %c0_114 = arith.constant 0 : index
    %166 = memref.load %arg2[%c0_114] : memref<98xf32, #tpu.memory_space<smem>>
    %c1_115 = arith.constant 1 : index
    %167 = memref.load %arg2[%c1_115] : memref<98xf32, #tpu.memory_space<smem>>
    %c2 = arith.constant 2 : index
    %168 = memref.load %arg2[%c2] : memref<98xf32, #tpu.memory_space<smem>>
    %c3_116 = arith.constant 3 : index
    %169 = memref.load %arg2[%c3_116] : memref<98xf32, #tpu.memory_space<smem>>
    %c4_117 = arith.constant 4 : index
    %170 = memref.load %arg2[%c4_117] : memref<98xf32, #tpu.memory_space<smem>>
    %c5_118 = arith.constant 5 : index
    %171 = memref.load %arg2[%c5_118] : memref<98xf32, #tpu.memory_space<smem>>
    %c6_119 = arith.constant 6 : index
    %172 = memref.load %arg2[%c6_119] : memref<98xf32, #tpu.memory_space<smem>>
    %c7_120 = arith.constant 7 : index
    %173 = memref.load %arg2[%c7_120] : memref<98xf32, #tpu.memory_space<smem>>
    %c8_121 = arith.constant 8 : index
    %174 = memref.load %arg2[%c8_121] : memref<98xf32, #tpu.memory_space<smem>>
    %c9_122 = arith.constant 9 : index
    %175 = memref.load %arg2[%c9_122] : memref<98xf32, #tpu.memory_space<smem>>
    %c10_123 = arith.constant 10 : index
    %176 = memref.load %arg2[%c10_123] : memref<98xf32, #tpu.memory_space<smem>>
    %c11_124 = arith.constant 11 : index
    %177 = memref.load %arg2[%c11_124] : memref<98xf32, #tpu.memory_space<smem>>
    %c12_125 = arith.constant 12 : index
    %178 = memref.load %arg2[%c12_125] : memref<98xf32, #tpu.memory_space<smem>>
    %c13_126 = arith.constant 13 : index
    %179 = memref.load %arg2[%c13_126] : memref<98xf32, #tpu.memory_space<smem>>
    %c14_127 = arith.constant 14 : index
    %180 = memref.load %arg2[%c14_127] : memref<98xf32, #tpu.memory_space<smem>>
    %c15_128 = arith.constant 15 : index
    %181 = memref.load %arg2[%c15_128] : memref<98xf32, #tpu.memory_space<smem>>
    %c16_129 = arith.constant 16 : index
    %182 = memref.load %arg2[%c16_129] : memref<98xf32, #tpu.memory_space<smem>>
    %c17_130 = arith.constant 17 : index
    %183 = memref.load %arg2[%c17_130] : memref<98xf32, #tpu.memory_space<smem>>
    %c18_131 = arith.constant 18 : index
    %184 = memref.load %arg2[%c18_131] : memref<98xf32, #tpu.memory_space<smem>>
    %c19_132 = arith.constant 19 : index
    %185 = memref.load %arg2[%c19_132] : memref<98xf32, #tpu.memory_space<smem>>
    %c20 = arith.constant 20 : index
    %186 = memref.load %arg2[%c20] : memref<98xf32, #tpu.memory_space<smem>>
    %c21 = arith.constant 21 : index
    %187 = memref.load %arg2[%c21] : memref<98xf32, #tpu.memory_space<smem>>
    %c22 = arith.constant 22 : index
    %188 = memref.load %arg2[%c22] : memref<98xf32, #tpu.memory_space<smem>>
    %c23 = arith.constant 23 : index
    %189 = memref.load %arg2[%c23] : memref<98xf32, #tpu.memory_space<smem>>
    %c24 = arith.constant 24 : index
    %190 = memref.load %arg2[%c24] : memref<98xf32, #tpu.memory_space<smem>>
    %c25 = arith.constant 25 : index
    %191 = memref.load %arg2[%c25] : memref<98xf32, #tpu.memory_space<smem>>
    %c26 = arith.constant 26 : index
    %192 = memref.load %arg2[%c26] : memref<98xf32, #tpu.memory_space<smem>>
    %c27 = arith.constant 27 : index
    %193 = memref.load %arg2[%c27] : memref<98xf32, #tpu.memory_space<smem>>
    %c28 = arith.constant 28 : index
    %194 = memref.load %arg2[%c28] : memref<98xf32, #tpu.memory_space<smem>>
    %c29 = arith.constant 29 : index
    %195 = memref.load %arg2[%c29] : memref<98xf32, #tpu.memory_space<smem>>
    %c30 = arith.constant 30 : index
    %196 = memref.load %arg2[%c30] : memref<98xf32, #tpu.memory_space<smem>>
    %c31 = arith.constant 31 : index
    %197 = memref.load %arg2[%c31] : memref<98xf32, #tpu.memory_space<smem>>
    %c32 = arith.constant 32 : index
    %198 = memref.load %arg2[%c32] : memref<98xf32, #tpu.memory_space<smem>>
    %c33 = arith.constant 33 : index
    %199 = memref.load %arg2[%c33] : memref<98xf32, #tpu.memory_space<smem>>
    %c34 = arith.constant 34 : index
    %200 = memref.load %arg2[%c34] : memref<98xf32, #tpu.memory_space<smem>>
    %c35 = arith.constant 35 : index
    %201 = memref.load %arg2[%c35] : memref<98xf32, #tpu.memory_space<smem>>
    %c36 = arith.constant 36 : index
    %202 = memref.load %arg2[%c36] : memref<98xf32, #tpu.memory_space<smem>>
    %c37 = arith.constant 37 : index
    %203 = memref.load %arg2[%c37] : memref<98xf32, #tpu.memory_space<smem>>
    %c38 = arith.constant 38 : index
    %204 = memref.load %arg2[%c38] : memref<98xf32, #tpu.memory_space<smem>>
    %c39 = arith.constant 39 : index
    %205 = memref.load %arg2[%c39] : memref<98xf32, #tpu.memory_space<smem>>
    %c40 = arith.constant 40 : index
    %206 = memref.load %arg2[%c40] : memref<98xf32, #tpu.memory_space<smem>>
    %c41 = arith.constant 41 : index
    %207 = memref.load %arg2[%c41] : memref<98xf32, #tpu.memory_space<smem>>
    %c42 = arith.constant 42 : index
    %208 = memref.load %arg2[%c42] : memref<98xf32, #tpu.memory_space<smem>>
    %c43 = arith.constant 43 : index
    %209 = memref.load %arg2[%c43] : memref<98xf32, #tpu.memory_space<smem>>
    %c44 = arith.constant 44 : index
    %210 = memref.load %arg2[%c44] : memref<98xf32, #tpu.memory_space<smem>>
    %c45 = arith.constant 45 : index
    %211 = memref.load %arg2[%c45] : memref<98xf32, #tpu.memory_space<smem>>
    %c46 = arith.constant 46 : index
    %212 = memref.load %arg2[%c46] : memref<98xf32, #tpu.memory_space<smem>>
    %c47 = arith.constant 47 : index
    %213 = memref.load %arg2[%c47] : memref<98xf32, #tpu.memory_space<smem>>
    %c48 = arith.constant 48 : index
    %214 = memref.load %arg2[%c48] : memref<98xf32, #tpu.memory_space<smem>>
    %c49 = arith.constant 49 : index
    %215 = memref.load %arg2[%c49] : memref<98xf32, #tpu.memory_space<smem>>
    %c50 = arith.constant 50 : index
    %216 = memref.load %arg2[%c50] : memref<98xf32, #tpu.memory_space<smem>>
    %c51 = arith.constant 51 : index
    %217 = memref.load %arg2[%c51] : memref<98xf32, #tpu.memory_space<smem>>
    %c52 = arith.constant 52 : index
    %218 = memref.load %arg2[%c52] : memref<98xf32, #tpu.memory_space<smem>>
    %c53 = arith.constant 53 : index
    %219 = memref.load %arg2[%c53] : memref<98xf32, #tpu.memory_space<smem>>
    %c54 = arith.constant 54 : index
    %220 = memref.load %arg2[%c54] : memref<98xf32, #tpu.memory_space<smem>>
    %c55 = arith.constant 55 : index
    %221 = memref.load %arg2[%c55] : memref<98xf32, #tpu.memory_space<smem>>
    %c56 = arith.constant 56 : index
    %222 = memref.load %arg2[%c56] : memref<98xf32, #tpu.memory_space<smem>>
    %c57 = arith.constant 57 : index
    %223 = memref.load %arg2[%c57] : memref<98xf32, #tpu.memory_space<smem>>
    %c58 = arith.constant 58 : index
    %224 = memref.load %arg2[%c58] : memref<98xf32, #tpu.memory_space<smem>>
    %c59 = arith.constant 59 : index
    %225 = memref.load %arg2[%c59] : memref<98xf32, #tpu.memory_space<smem>>
    %c60 = arith.constant 60 : index
    %226 = memref.load %arg2[%c60] : memref<98xf32, #tpu.memory_space<smem>>
    %c61 = arith.constant 61 : index
    %227 = memref.load %arg2[%c61] : memref<98xf32, #tpu.memory_space<smem>>
    %c62 = arith.constant 62 : index
    %228 = memref.load %arg2[%c62] : memref<98xf32, #tpu.memory_space<smem>>
    %c63 = arith.constant 63 : index
    %229 = memref.load %arg2[%c63] : memref<98xf32, #tpu.memory_space<smem>>
    %c64 = arith.constant 64 : index
    %230 = memref.load %arg2[%c64] : memref<98xf32, #tpu.memory_space<smem>>
    %c65 = arith.constant 65 : index
    %231 = memref.load %arg2[%c65] : memref<98xf32, #tpu.memory_space<smem>>
    %c66 = arith.constant 66 : index
    %232 = memref.load %arg2[%c66] : memref<98xf32, #tpu.memory_space<smem>>
    %c67 = arith.constant 67 : index
    %233 = memref.load %arg2[%c67] : memref<98xf32, #tpu.memory_space<smem>>
    %c68 = arith.constant 68 : index
    %234 = memref.load %arg2[%c68] : memref<98xf32, #tpu.memory_space<smem>>
    %c69 = arith.constant 69 : index
    %235 = memref.load %arg2[%c69] : memref<98xf32, #tpu.memory_space<smem>>
    %c70 = arith.constant 70 : index
    %236 = memref.load %arg2[%c70] : memref<98xf32, #tpu.memory_space<smem>>
    %c71 = arith.constant 71 : index
    %237 = memref.load %arg2[%c71] : memref<98xf32, #tpu.memory_space<smem>>
    %c72 = arith.constant 72 : index
    %238 = memref.load %arg2[%c72] : memref<98xf32, #tpu.memory_space<smem>>
    %c73 = arith.constant 73 : index
    %239 = memref.load %arg2[%c73] : memref<98xf32, #tpu.memory_space<smem>>
    %c74 = arith.constant 74 : index
    %240 = memref.load %arg2[%c74] : memref<98xf32, #tpu.memory_space<smem>>
    %c75 = arith.constant 75 : index
    %241 = memref.load %arg2[%c75] : memref<98xf32, #tpu.memory_space<smem>>
    %c76 = arith.constant 76 : index
    %242 = memref.load %arg2[%c76] : memref<98xf32, #tpu.memory_space<smem>>
    %c77 = arith.constant 77 : index
    %243 = memref.load %arg2[%c77] : memref<98xf32, #tpu.memory_space<smem>>
    %c78 = arith.constant 78 : index
    %244 = memref.load %arg2[%c78] : memref<98xf32, #tpu.memory_space<smem>>
    %c79 = arith.constant 79 : index
    %245 = memref.load %arg2[%c79] : memref<98xf32, #tpu.memory_space<smem>>
    %c80 = arith.constant 80 : index
    %246 = memref.load %arg2[%c80] : memref<98xf32, #tpu.memory_space<smem>>
    %c81 = arith.constant 81 : index
    %247 = memref.load %arg2[%c81] : memref<98xf32, #tpu.memory_space<smem>>
    %c82 = arith.constant 82 : index
    %248 = memref.load %arg2[%c82] : memref<98xf32, #tpu.memory_space<smem>>
    %c83 = arith.constant 83 : index
    %249 = memref.load %arg2[%c83] : memref<98xf32, #tpu.memory_space<smem>>
    %c84 = arith.constant 84 : index
    %250 = memref.load %arg2[%c84] : memref<98xf32, #tpu.memory_space<smem>>
    %c85 = arith.constant 85 : index
    %251 = memref.load %arg2[%c85] : memref<98xf32, #tpu.memory_space<smem>>
    %c86 = arith.constant 86 : index
    %252 = memref.load %arg2[%c86] : memref<98xf32, #tpu.memory_space<smem>>
    %c87 = arith.constant 87 : index
    %253 = memref.load %arg2[%c87] : memref<98xf32, #tpu.memory_space<smem>>
    %c88 = arith.constant 88 : index
    %254 = memref.load %arg2[%c88] : memref<98xf32, #tpu.memory_space<smem>>
    %c89 = arith.constant 89 : index
    %255 = memref.load %arg2[%c89] : memref<98xf32, #tpu.memory_space<smem>>
    %c90 = arith.constant 90 : index
    %256 = memref.load %arg2[%c90] : memref<98xf32, #tpu.memory_space<smem>>
    %c91 = arith.constant 91 : index
    %257 = memref.load %arg2[%c91] : memref<98xf32, #tpu.memory_space<smem>>
    %c92 = arith.constant 92 : index
    %258 = memref.load %arg2[%c92] : memref<98xf32, #tpu.memory_space<smem>>
    %c93 = arith.constant 93 : index
    %259 = memref.load %arg2[%c93] : memref<98xf32, #tpu.memory_space<smem>>
    %c94 = arith.constant 94 : index
    %260 = memref.load %arg2[%c94] : memref<98xf32, #tpu.memory_space<smem>>
    %c95 = arith.constant 95 : index
    %261 = memref.load %arg2[%c95] : memref<98xf32, #tpu.memory_space<smem>>
    %c96 = arith.constant 96 : index
    %262 = memref.load %arg2[%c96] : memref<98xf32, #tpu.memory_space<smem>>
    %c97 = arith.constant 97 : index
    %263 = memref.load %arg2[%c97] : memref<98xf32, #tpu.memory_space<smem>>
    %c0_133 = arith.constant 0 : index
    %264 = memref.load %arg3[%c0_133] : memref<1xf32, #tpu.memory_space<smem>>
    %265 = vector.broadcast %264 : f32 to vector<16x16xf32>
    %266 = vector.extract_strided_slice %163 {offsets = [0, 0], sizes = [16, 22], strides = [1, 1]} : vector<22x22xf32> to vector<16x22xf32>
    %267 = vector.extract_strided_slice %165 {offsets = [0, 0], sizes = [16, 22], strides = [1, 1]} : vector<22x22xf32> to vector<16x22xf32>
    %268 = vector.extract_strided_slice %266 {offsets = [0, 0], sizes = [16, 16], strides = [1, 1]} : vector<16x22xf32> to vector<16x16xf32>
    %269 = vector.broadcast %166 : f32 to vector<16x16xf32>
    %270 = arith.mulf %269, %268 : vector<16x16xf32>
    %271 = arith.addf %265, %270 : vector<16x16xf32>
    %272 = vector.extract_strided_slice %267 {offsets = [0, 0], sizes = [16, 16], strides = [1, 1]} : vector<16x22xf32> to vector<16x16xf32>
    %273 = vector.broadcast %215 : f32 to vector<16x16xf32>
    %274 = arith.mulf %273, %272 : vector<16x16xf32>
    %275 = arith.addf %271, %274 : vector<16x16xf32>
    %276 = vector.extract_strided_slice %266 {offsets = [0, 1], sizes = [16, 16], strides = [1, 1]} : vector<16x22xf32> to vector<16x16xf32>
    %277 = vector.broadcast %167 : f32 to vector<16x16xf32>
    %278 = arith.mulf %277, %276 : vector<16x16xf32>
    %279 = arith.addf %275, %278 : vector<16x16xf32>
    %280 = vector.extract_strided_slice %267 {offsets = [0, 1], sizes = [16, 16], strides = [1, 1]} : vector<16x22xf32> to vector<16x16xf32>
    %281 = vector.broadcast %216 : f32 to vector<16x16xf32>
    %282 = arith.mulf %281, %280 : vector<16x16xf32>
    %283 = arith.addf %279, %282 : vector<16x16xf32>
    %284 = vector.extract_strided_slice %266 {offsets = [0, 2], sizes = [16, 16], strides = [1, 1]} : vector<16x22xf32> to vector<16x16xf32>
    %285 = vector.broadcast %168 : f32 to vector<16x16xf32>
    %286 = arith.mulf %285, %284 : vector<16x16xf32>
    %287 = arith.addf %283, %286 : vector<16x16xf32>
    %288 = vector.extract_strided_slice %267 {offsets = [0, 2], sizes = [16, 16], strides = [1, 1]} : vector<16x22xf32> to vector<16x16xf32>
    %289 = vector.broadcast %217 : f32 to vector<16x16xf32>
    %290 = arith.mulf %289, %288 : vector<16x16xf32>
    %291 = arith.addf %287, %290 : vector<16x16xf32>
    %292 = vector.extract_strided_slice %266 {offsets = [0, 3], sizes = [16, 16], strides = [1, 1]} : vector<16x22xf32> to vector<16x16xf32>
    %293 = vector.broadcast %169 : f32 to vector<16x16xf32>
    %294 = arith.mulf %293, %292 : vector<16x16xf32>
    %295 = arith.addf %291, %294 : vector<16x16xf32>
    %296 = vector.extract_strided_slice %267 {offsets = [0, 3], sizes = [16, 16], strides = [1, 1]} : vector<16x22xf32> to vector<16x16xf32>
    %297 = vector.broadcast %218 : f32 to vector<16x16xf32>
    %298 = arith.mulf %297, %296 : vector<16x16xf32>
    %299 = arith.addf %295, %298 : vector<16x16xf32>
    %300 = vector.extract_strided_slice %266 {offsets = [0, 4], sizes = [16, 16], strides = [1, 1]} : vector<16x22xf32> to vector<16x16xf32>
    %301 = vector.broadcast %170 : f32 to vector<16x16xf32>
    %302 = arith.mulf %301, %300 : vector<16x16xf32>
    %303 = arith.addf %299, %302 : vector<16x16xf32>
    %304 = vector.extract_strided_slice %267 {offsets = [0, 4], sizes = [16, 16], strides = [1, 1]} : vector<16x22xf32> to vector<16x16xf32>
    %305 = vector.broadcast %219 : f32 to vector<16x16xf32>
    %306 = arith.mulf %305, %304 : vector<16x16xf32>
    %307 = arith.addf %303, %306 : vector<16x16xf32>
    %308 = vector.extract_strided_slice %266 {offsets = [0, 5], sizes = [16, 16], strides = [1, 1]} : vector<16x22xf32> to vector<16x16xf32>
    %309 = vector.broadcast %171 : f32 to vector<16x16xf32>
    %310 = arith.mulf %309, %308 : vector<16x16xf32>
    %311 = arith.addf %307, %310 : vector<16x16xf32>
    %312 = vector.extract_strided_slice %267 {offsets = [0, 5], sizes = [16, 16], strides = [1, 1]} : vector<16x22xf32> to vector<16x16xf32>
    %313 = vector.broadcast %220 : f32 to vector<16x16xf32>
    %314 = arith.mulf %313, %312 : vector<16x16xf32>
    %315 = arith.addf %311, %314 : vector<16x16xf32>
    %316 = vector.extract_strided_slice %266 {offsets = [0, 6], sizes = [16, 16], strides = [1, 1]} : vector<16x22xf32> to vector<16x16xf32>
    %317 = vector.broadcast %172 : f32 to vector<16x16xf32>
    %318 = arith.mulf %317, %316 : vector<16x16xf32>
    %319 = arith.addf %315, %318 : vector<16x16xf32>
    %320 = vector.extract_strided_slice %267 {offsets = [0, 6], sizes = [16, 16], strides = [1, 1]} : vector<16x22xf32> to vector<16x16xf32>
    %321 = vector.broadcast %221 : f32 to vector<16x16xf32>
    %322 = arith.mulf %321, %320 : vector<16x16xf32>
    %323 = arith.addf %319, %322 : vector<16x16xf32>
    %324 = vector.extract_strided_slice %163 {offsets = [1, 0], sizes = [16, 22], strides = [1, 1]} : vector<22x22xf32> to vector<16x22xf32>
    %325 = vector.extract_strided_slice %165 {offsets = [1, 0], sizes = [16, 22], strides = [1, 1]} : vector<22x22xf32> to vector<16x22xf32>
    %326 = vector.extract_strided_slice %324 {offsets = [0, 0], sizes = [16, 16], strides = [1, 1]} : vector<16x22xf32> to vector<16x16xf32>
    %327 = vector.broadcast %173 : f32 to vector<16x16xf32>
    %328 = arith.mulf %327, %326 : vector<16x16xf32>
    %329 = arith.addf %323, %328 : vector<16x16xf32>
    %330 = vector.extract_strided_slice %325 {offsets = [0, 0], sizes = [16, 16], strides = [1, 1]} : vector<16x22xf32> to vector<16x16xf32>
    %331 = vector.broadcast %222 : f32 to vector<16x16xf32>
    %332 = arith.mulf %331, %330 : vector<16x16xf32>
    %333 = arith.addf %329, %332 : vector<16x16xf32>
    %334 = vector.extract_strided_slice %324 {offsets = [0, 1], sizes = [16, 16], strides = [1, 1]} : vector<16x22xf32> to vector<16x16xf32>
    %335 = vector.broadcast %174 : f32 to vector<16x16xf32>
    %336 = arith.mulf %335, %334 : vector<16x16xf32>
    %337 = arith.addf %333, %336 : vector<16x16xf32>
    %338 = vector.extract_strided_slice %325 {offsets = [0, 1], sizes = [16, 16], strides = [1, 1]} : vector<16x22xf32> to vector<16x16xf32>
    %339 = vector.broadcast %223 : f32 to vector<16x16xf32>
    %340 = arith.mulf %339, %338 : vector<16x16xf32>
    %341 = arith.addf %337, %340 : vector<16x16xf32>
    %342 = vector.extract_strided_slice %324 {offsets = [0, 2], sizes = [16, 16], strides = [1, 1]} : vector<16x22xf32> to vector<16x16xf32>
    %343 = vector.broadcast %175 : f32 to vector<16x16xf32>
    %344 = arith.mulf %343, %342 : vector<16x16xf32>
    %345 = arith.addf %341, %344 : vector<16x16xf32>
    %346 = vector.extract_strided_slice %325 {offsets = [0, 2], sizes = [16, 16], strides = [1, 1]} : vector<16x22xf32> to vector<16x16xf32>
    %347 = vector.broadcast %224 : f32 to vector<16x16xf32>
    %348 = arith.mulf %347, %346 : vector<16x16xf32>
    %349 = arith.addf %345, %348 : vector<16x16xf32>
    %350 = vector.extract_strided_slice %324 {offsets = [0, 3], sizes = [16, 16], strides = [1, 1]} : vector<16x22xf32> to vector<16x16xf32>
    %351 = vector.broadcast %176 : f32 to vector<16x16xf32>
    %352 = arith.mulf %351, %350 : vector<16x16xf32>
    %353 = arith.addf %349, %352 : vector<16x16xf32>
    %354 = vector.extract_strided_slice %325 {offsets = [0, 3], sizes = [16, 16], strides = [1, 1]} : vector<16x22xf32> to vector<16x16xf32>
    %355 = vector.broadcast %225 : f32 to vector<16x16xf32>
    %356 = arith.mulf %355, %354 : vector<16x16xf32>
    %357 = arith.addf %353, %356 : vector<16x16xf32>
    %358 = vector.extract_strided_slice %324 {offsets = [0, 4], sizes = [16, 16], strides = [1, 1]} : vector<16x22xf32> to vector<16x16xf32>
    %359 = vector.broadcast %177 : f32 to vector<16x16xf32>
    %360 = arith.mulf %359, %358 : vector<16x16xf32>
    %361 = arith.addf %357, %360 : vector<16x16xf32>
    %362 = vector.extract_strided_slice %325 {offsets = [0, 4], sizes = [16, 16], strides = [1, 1]} : vector<16x22xf32> to vector<16x16xf32>
    %363 = vector.broadcast %226 : f32 to vector<16x16xf32>
    %364 = arith.mulf %363, %362 : vector<16x16xf32>
    %365 = arith.addf %361, %364 : vector<16x16xf32>
    %366 = vector.extract_strided_slice %324 {offsets = [0, 5], sizes = [16, 16], strides = [1, 1]} : vector<16x22xf32> to vector<16x16xf32>
    %367 = vector.broadcast %178 : f32 to vector<16x16xf32>
    %368 = arith.mulf %367, %366 : vector<16x16xf32>
    %369 = arith.addf %365, %368 : vector<16x16xf32>
    %370 = vector.extract_strided_slice %325 {offsets = [0, 5], sizes = [16, 16], strides = [1, 1]} : vector<16x22xf32> to vector<16x16xf32>
    %371 = vector.broadcast %227 : f32 to vector<16x16xf32>
    %372 = arith.mulf %371, %370 : vector<16x16xf32>
    %373 = arith.addf %369, %372 : vector<16x16xf32>
    %374 = vector.extract_strided_slice %324 {offsets = [0, 6], sizes = [16, 16], strides = [1, 1]} : vector<16x22xf32> to vector<16x16xf32>
    %375 = vector.broadcast %179 : f32 to vector<16x16xf32>
    %376 = arith.mulf %375, %374 : vector<16x16xf32>
    %377 = arith.addf %373, %376 : vector<16x16xf32>
    %378 = vector.extract_strided_slice %325 {offsets = [0, 6], sizes = [16, 16], strides = [1, 1]} : vector<16x22xf32> to vector<16x16xf32>
    %379 = vector.broadcast %228 : f32 to vector<16x16xf32>
    %380 = arith.mulf %379, %378 : vector<16x16xf32>
    %381 = arith.addf %377, %380 : vector<16x16xf32>
    %382 = vector.extract_strided_slice %163 {offsets = [2, 0], sizes = [16, 22], strides = [1, 1]} : vector<22x22xf32> to vector<16x22xf32>
    %383 = vector.extract_strided_slice %165 {offsets = [2, 0], sizes = [16, 22], strides = [1, 1]} : vector<22x22xf32> to vector<16x22xf32>
    %384 = vector.extract_strided_slice %382 {offsets = [0, 0], sizes = [16, 16], strides = [1, 1]} : vector<16x22xf32> to vector<16x16xf32>
    %385 = vector.broadcast %180 : f32 to vector<16x16xf32>
    %386 = arith.mulf %385, %384 : vector<16x16xf32>
    %387 = arith.addf %381, %386 : vector<16x16xf32>
    %388 = vector.extract_strided_slice %383 {offsets = [0, 0], sizes = [16, 16], strides = [1, 1]} : vector<16x22xf32> to vector<16x16xf32>
    %389 = vector.broadcast %229 : f32 to vector<16x16xf32>
    %390 = arith.mulf %389, %388 : vector<16x16xf32>
    %391 = arith.addf %387, %390 : vector<16x16xf32>
    %392 = vector.extract_strided_slice %382 {offsets = [0, 1], sizes = [16, 16], strides = [1, 1]} : vector<16x22xf32> to vector<16x16xf32>
    %393 = vector.broadcast %181 : f32 to vector<16x16xf32>
    %394 = arith.mulf %393, %392 : vector<16x16xf32>
    %395 = arith.addf %391, %394 : vector<16x16xf32>
    %396 = vector.extract_strided_slice %383 {offsets = [0, 1], sizes = [16, 16], strides = [1, 1]} : vector<16x22xf32> to vector<16x16xf32>
    %397 = vector.broadcast %230 : f32 to vector<16x16xf32>
    %398 = arith.mulf %397, %396 : vector<16x16xf32>
    %399 = arith.addf %395, %398 : vector<16x16xf32>
    %400 = vector.extract_strided_slice %382 {offsets = [0, 2], sizes = [16, 16], strides = [1, 1]} : vector<16x22xf32> to vector<16x16xf32>
    %401 = vector.broadcast %182 : f32 to vector<16x16xf32>
    %402 = arith.mulf %401, %400 : vector<16x16xf32>
    %403 = arith.addf %399, %402 : vector<16x16xf32>
    %404 = vector.extract_strided_slice %383 {offsets = [0, 2], sizes = [16, 16], strides = [1, 1]} : vector<16x22xf32> to vector<16x16xf32>
    %405 = vector.broadcast %231 : f32 to vector<16x16xf32>
    %406 = arith.mulf %405, %404 : vector<16x16xf32>
    %407 = arith.addf %403, %406 : vector<16x16xf32>
    %408 = vector.extract_strided_slice %382 {offsets = [0, 3], sizes = [16, 16], strides = [1, 1]} : vector<16x22xf32> to vector<16x16xf32>
    %409 = vector.broadcast %183 : f32 to vector<16x16xf32>
    %410 = arith.mulf %409, %408 : vector<16x16xf32>
    %411 = arith.addf %407, %410 : vector<16x16xf32>
    %412 = vector.extract_strided_slice %383 {offsets = [0, 3], sizes = [16, 16], strides = [1, 1]} : vector<16x22xf32> to vector<16x16xf32>
    %413 = vector.broadcast %232 : f32 to vector<16x16xf32>
    %414 = arith.mulf %413, %412 : vector<16x16xf32>
    %415 = arith.addf %411, %414 : vector<16x16xf32>
    %416 = vector.extract_strided_slice %382 {offsets = [0, 4], sizes = [16, 16], strides = [1, 1]} : vector<16x22xf32> to vector<16x16xf32>
    %417 = vector.broadcast %184 : f32 to vector<16x16xf32>
    %418 = arith.mulf %417, %416 : vector<16x16xf32>
    %419 = arith.addf %415, %418 : vector<16x16xf32>
    %420 = vector.extract_strided_slice %383 {offsets = [0, 4], sizes = [16, 16], strides = [1, 1]} : vector<16x22xf32> to vector<16x16xf32>
    %421 = vector.broadcast %233 : f32 to vector<16x16xf32>
    %422 = arith.mulf %421, %420 : vector<16x16xf32>
    %423 = arith.addf %419, %422 : vector<16x16xf32>
    %424 = vector.extract_strided_slice %382 {offsets = [0, 5], sizes = [16, 16], strides = [1, 1]} : vector<16x22xf32> to vector<16x16xf32>
    %425 = vector.broadcast %185 : f32 to vector<16x16xf32>
    %426 = arith.mulf %425, %424 : vector<16x16xf32>
    %427 = arith.addf %423, %426 : vector<16x16xf32>
    %428 = vector.extract_strided_slice %383 {offsets = [0, 5], sizes = [16, 16], strides = [1, 1]} : vector<16x22xf32> to vector<16x16xf32>
    %429 = vector.broadcast %234 : f32 to vector<16x16xf32>
    %430 = arith.mulf %429, %428 : vector<16x16xf32>
    %431 = arith.addf %427, %430 : vector<16x16xf32>
    %432 = vector.extract_strided_slice %382 {offsets = [0, 6], sizes = [16, 16], strides = [1, 1]} : vector<16x22xf32> to vector<16x16xf32>
    %433 = vector.broadcast %186 : f32 to vector<16x16xf32>
    %434 = arith.mulf %433, %432 : vector<16x16xf32>
    %435 = arith.addf %431, %434 : vector<16x16xf32>
    %436 = vector.extract_strided_slice %383 {offsets = [0, 6], sizes = [16, 16], strides = [1, 1]} : vector<16x22xf32> to vector<16x16xf32>
    %437 = vector.broadcast %235 : f32 to vector<16x16xf32>
    %438 = arith.mulf %437, %436 : vector<16x16xf32>
    %439 = arith.addf %435, %438 : vector<16x16xf32>
    %440 = vector.extract_strided_slice %163 {offsets = [3, 0], sizes = [16, 22], strides = [1, 1]} : vector<22x22xf32> to vector<16x22xf32>
    %441 = vector.extract_strided_slice %165 {offsets = [3, 0], sizes = [16, 22], strides = [1, 1]} : vector<22x22xf32> to vector<16x22xf32>
    %442 = vector.extract_strided_slice %440 {offsets = [0, 0], sizes = [16, 16], strides = [1, 1]} : vector<16x22xf32> to vector<16x16xf32>
    %443 = vector.broadcast %187 : f32 to vector<16x16xf32>
    %444 = arith.mulf %443, %442 : vector<16x16xf32>
    %445 = arith.addf %439, %444 : vector<16x16xf32>
    %446 = vector.extract_strided_slice %441 {offsets = [0, 0], sizes = [16, 16], strides = [1, 1]} : vector<16x22xf32> to vector<16x16xf32>
    %447 = vector.broadcast %236 : f32 to vector<16x16xf32>
    %448 = arith.mulf %447, %446 : vector<16x16xf32>
    %449 = arith.addf %445, %448 : vector<16x16xf32>
    %450 = vector.extract_strided_slice %440 {offsets = [0, 1], sizes = [16, 16], strides = [1, 1]} : vector<16x22xf32> to vector<16x16xf32>
    %451 = vector.broadcast %188 : f32 to vector<16x16xf32>
    %452 = arith.mulf %451, %450 : vector<16x16xf32>
    %453 = arith.addf %449, %452 : vector<16x16xf32>
    %454 = vector.extract_strided_slice %441 {offsets = [0, 1], sizes = [16, 16], strides = [1, 1]} : vector<16x22xf32> to vector<16x16xf32>
    %455 = vector.broadcast %237 : f32 to vector<16x16xf32>
    %456 = arith.mulf %455, %454 : vector<16x16xf32>
    %457 = arith.addf %453, %456 : vector<16x16xf32>
    %458 = vector.extract_strided_slice %440 {offsets = [0, 2], sizes = [16, 16], strides = [1, 1]} : vector<16x22xf32> to vector<16x16xf32>
    %459 = vector.broadcast %189 : f32 to vector<16x16xf32>
    %460 = arith.mulf %459, %458 : vector<16x16xf32>
    %461 = arith.addf %457, %460 : vector<16x16xf32>
    %462 = vector.extract_strided_slice %441 {offsets = [0, 2], sizes = [16, 16], strides = [1, 1]} : vector<16x22xf32> to vector<16x16xf32>
    %463 = vector.broadcast %238 : f32 to vector<16x16xf32>
    %464 = arith.mulf %463, %462 : vector<16x16xf32>
    %465 = arith.addf %461, %464 : vector<16x16xf32>
    %466 = vector.extract_strided_slice %440 {offsets = [0, 3], sizes = [16, 16], strides = [1, 1]} : vector<16x22xf32> to vector<16x16xf32>
    %467 = vector.broadcast %190 : f32 to vector<16x16xf32>
    %468 = arith.mulf %467, %466 : vector<16x16xf32>
    %469 = arith.addf %465, %468 : vector<16x16xf32>
    %470 = vector.extract_strided_slice %441 {offsets = [0, 3], sizes = [16, 16], strides = [1, 1]} : vector<16x22xf32> to vector<16x16xf32>
    %471 = vector.broadcast %239 : f32 to vector<16x16xf32>
    %472 = arith.mulf %471, %470 : vector<16x16xf32>
    %473 = arith.addf %469, %472 : vector<16x16xf32>
    %474 = vector.extract_strided_slice %440 {offsets = [0, 4], sizes = [16, 16], strides = [1, 1]} : vector<16x22xf32> to vector<16x16xf32>
    %475 = vector.broadcast %191 : f32 to vector<16x16xf32>
    %476 = arith.mulf %475, %474 : vector<16x16xf32>
    %477 = arith.addf %473, %476 : vector<16x16xf32>
    %478 = vector.extract_strided_slice %441 {offsets = [0, 4], sizes = [16, 16], strides = [1, 1]} : vector<16x22xf32> to vector<16x16xf32>
    %479 = vector.broadcast %240 : f32 to vector<16x16xf32>
    %480 = arith.mulf %479, %478 : vector<16x16xf32>
    %481 = arith.addf %477, %480 : vector<16x16xf32>
    %482 = vector.extract_strided_slice %440 {offsets = [0, 5], sizes = [16, 16], strides = [1, 1]} : vector<16x22xf32> to vector<16x16xf32>
    %483 = vector.broadcast %192 : f32 to vector<16x16xf32>
    %484 = arith.mulf %483, %482 : vector<16x16xf32>
    %485 = arith.addf %481, %484 : vector<16x16xf32>
    %486 = vector.extract_strided_slice %441 {offsets = [0, 5], sizes = [16, 16], strides = [1, 1]} : vector<16x22xf32> to vector<16x16xf32>
    %487 = vector.broadcast %241 : f32 to vector<16x16xf32>
    %488 = arith.mulf %487, %486 : vector<16x16xf32>
    %489 = arith.addf %485, %488 : vector<16x16xf32>
    %490 = vector.extract_strided_slice %440 {offsets = [0, 6], sizes = [16, 16], strides = [1, 1]} : vector<16x22xf32> to vector<16x16xf32>
    %491 = vector.broadcast %193 : f32 to vector<16x16xf32>
    %492 = arith.mulf %491, %490 : vector<16x16xf32>
    %493 = arith.addf %489, %492 : vector<16x16xf32>
    %494 = vector.extract_strided_slice %441 {offsets = [0, 6], sizes = [16, 16], strides = [1, 1]} : vector<16x22xf32> to vector<16x16xf32>
    %495 = vector.broadcast %242 : f32 to vector<16x16xf32>
    %496 = arith.mulf %495, %494 : vector<16x16xf32>
    %497 = arith.addf %493, %496 : vector<16x16xf32>
    %498 = vector.extract_strided_slice %163 {offsets = [4, 0], sizes = [16, 22], strides = [1, 1]} : vector<22x22xf32> to vector<16x22xf32>
    %499 = vector.extract_strided_slice %165 {offsets = [4, 0], sizes = [16, 22], strides = [1, 1]} : vector<22x22xf32> to vector<16x22xf32>
    %500 = vector.extract_strided_slice %498 {offsets = [0, 0], sizes = [16, 16], strides = [1, 1]} : vector<16x22xf32> to vector<16x16xf32>
    %501 = vector.broadcast %194 : f32 to vector<16x16xf32>
    %502 = arith.mulf %501, %500 : vector<16x16xf32>
    %503 = arith.addf %497, %502 : vector<16x16xf32>
    %504 = vector.extract_strided_slice %499 {offsets = [0, 0], sizes = [16, 16], strides = [1, 1]} : vector<16x22xf32> to vector<16x16xf32>
    %505 = vector.broadcast %243 : f32 to vector<16x16xf32>
    %506 = arith.mulf %505, %504 : vector<16x16xf32>
    %507 = arith.addf %503, %506 : vector<16x16xf32>
    %508 = vector.extract_strided_slice %498 {offsets = [0, 1], sizes = [16, 16], strides = [1, 1]} : vector<16x22xf32> to vector<16x16xf32>
    %509 = vector.broadcast %195 : f32 to vector<16x16xf32>
    %510 = arith.mulf %509, %508 : vector<16x16xf32>
    %511 = arith.addf %507, %510 : vector<16x16xf32>
    %512 = vector.extract_strided_slice %499 {offsets = [0, 1], sizes = [16, 16], strides = [1, 1]} : vector<16x22xf32> to vector<16x16xf32>
    %513 = vector.broadcast %244 : f32 to vector<16x16xf32>
    %514 = arith.mulf %513, %512 : vector<16x16xf32>
    %515 = arith.addf %511, %514 : vector<16x16xf32>
    %516 = vector.extract_strided_slice %498 {offsets = [0, 2], sizes = [16, 16], strides = [1, 1]} : vector<16x22xf32> to vector<16x16xf32>
    %517 = vector.broadcast %196 : f32 to vector<16x16xf32>
    %518 = arith.mulf %517, %516 : vector<16x16xf32>
    %519 = arith.addf %515, %518 : vector<16x16xf32>
    %520 = vector.extract_strided_slice %499 {offsets = [0, 2], sizes = [16, 16], strides = [1, 1]} : vector<16x22xf32> to vector<16x16xf32>
    %521 = vector.broadcast %245 : f32 to vector<16x16xf32>
    %522 = arith.mulf %521, %520 : vector<16x16xf32>
    %523 = arith.addf %519, %522 : vector<16x16xf32>
    %524 = vector.extract_strided_slice %498 {offsets = [0, 3], sizes = [16, 16], strides = [1, 1]} : vector<16x22xf32> to vector<16x16xf32>
    %525 = vector.broadcast %197 : f32 to vector<16x16xf32>
    %526 = arith.mulf %525, %524 : vector<16x16xf32>
    %527 = arith.addf %523, %526 : vector<16x16xf32>
    %528 = vector.extract_strided_slice %499 {offsets = [0, 3], sizes = [16, 16], strides = [1, 1]} : vector<16x22xf32> to vector<16x16xf32>
    %529 = vector.broadcast %246 : f32 to vector<16x16xf32>
    %530 = arith.mulf %529, %528 : vector<16x16xf32>
    %531 = arith.addf %527, %530 : vector<16x16xf32>
    %532 = vector.extract_strided_slice %498 {offsets = [0, 4], sizes = [16, 16], strides = [1, 1]} : vector<16x22xf32> to vector<16x16xf32>
    %533 = vector.broadcast %198 : f32 to vector<16x16xf32>
    %534 = arith.mulf %533, %532 : vector<16x16xf32>
    %535 = arith.addf %531, %534 : vector<16x16xf32>
    %536 = vector.extract_strided_slice %499 {offsets = [0, 4], sizes = [16, 16], strides = [1, 1]} : vector<16x22xf32> to vector<16x16xf32>
    %537 = vector.broadcast %247 : f32 to vector<16x16xf32>
    %538 = arith.mulf %537, %536 : vector<16x16xf32>
    %539 = arith.addf %535, %538 : vector<16x16xf32>
    %540 = vector.extract_strided_slice %498 {offsets = [0, 5], sizes = [16, 16], strides = [1, 1]} : vector<16x22xf32> to vector<16x16xf32>
    %541 = vector.broadcast %199 : f32 to vector<16x16xf32>
    %542 = arith.mulf %541, %540 : vector<16x16xf32>
    %543 = arith.addf %539, %542 : vector<16x16xf32>
    %544 = vector.extract_strided_slice %499 {offsets = [0, 5], sizes = [16, 16], strides = [1, 1]} : vector<16x22xf32> to vector<16x16xf32>
    %545 = vector.broadcast %248 : f32 to vector<16x16xf32>
    %546 = arith.mulf %545, %544 : vector<16x16xf32>
    %547 = arith.addf %543, %546 : vector<16x16xf32>
    %548 = vector.extract_strided_slice %498 {offsets = [0, 6], sizes = [16, 16], strides = [1, 1]} : vector<16x22xf32> to vector<16x16xf32>
    %549 = vector.broadcast %200 : f32 to vector<16x16xf32>
    %550 = arith.mulf %549, %548 : vector<16x16xf32>
    %551 = arith.addf %547, %550 : vector<16x16xf32>
    %552 = vector.extract_strided_slice %499 {offsets = [0, 6], sizes = [16, 16], strides = [1, 1]} : vector<16x22xf32> to vector<16x16xf32>
    %553 = vector.broadcast %249 : f32 to vector<16x16xf32>
    %554 = arith.mulf %553, %552 : vector<16x16xf32>
    %555 = arith.addf %551, %554 : vector<16x16xf32>
    %556 = vector.extract_strided_slice %163 {offsets = [5, 0], sizes = [16, 22], strides = [1, 1]} : vector<22x22xf32> to vector<16x22xf32>
    %557 = vector.extract_strided_slice %165 {offsets = [5, 0], sizes = [16, 22], strides = [1, 1]} : vector<22x22xf32> to vector<16x22xf32>
    %558 = vector.extract_strided_slice %556 {offsets = [0, 0], sizes = [16, 16], strides = [1, 1]} : vector<16x22xf32> to vector<16x16xf32>
    %559 = vector.broadcast %201 : f32 to vector<16x16xf32>
    %560 = arith.mulf %559, %558 : vector<16x16xf32>
    %561 = arith.addf %555, %560 : vector<16x16xf32>
    %562 = vector.extract_strided_slice %557 {offsets = [0, 0], sizes = [16, 16], strides = [1, 1]} : vector<16x22xf32> to vector<16x16xf32>
    %563 = vector.broadcast %250 : f32 to vector<16x16xf32>
    %564 = arith.mulf %563, %562 : vector<16x16xf32>
    %565 = arith.addf %561, %564 : vector<16x16xf32>
    %566 = vector.extract_strided_slice %556 {offsets = [0, 1], sizes = [16, 16], strides = [1, 1]} : vector<16x22xf32> to vector<16x16xf32>
    %567 = vector.broadcast %202 : f32 to vector<16x16xf32>
    %568 = arith.mulf %567, %566 : vector<16x16xf32>
    %569 = arith.addf %565, %568 : vector<16x16xf32>
    %570 = vector.extract_strided_slice %557 {offsets = [0, 1], sizes = [16, 16], strides = [1, 1]} : vector<16x22xf32> to vector<16x16xf32>
    %571 = vector.broadcast %251 : f32 to vector<16x16xf32>
    %572 = arith.mulf %571, %570 : vector<16x16xf32>
    %573 = arith.addf %569, %572 : vector<16x16xf32>
    %574 = vector.extract_strided_slice %556 {offsets = [0, 2], sizes = [16, 16], strides = [1, 1]} : vector<16x22xf32> to vector<16x16xf32>
    %575 = vector.broadcast %203 : f32 to vector<16x16xf32>
    %576 = arith.mulf %575, %574 : vector<16x16xf32>
    %577 = arith.addf %573, %576 : vector<16x16xf32>
    %578 = vector.extract_strided_slice %557 {offsets = [0, 2], sizes = [16, 16], strides = [1, 1]} : vector<16x22xf32> to vector<16x16xf32>
    %579 = vector.broadcast %252 : f32 to vector<16x16xf32>
    %580 = arith.mulf %579, %578 : vector<16x16xf32>
    %581 = arith.addf %577, %580 : vector<16x16xf32>
    %582 = vector.extract_strided_slice %556 {offsets = [0, 3], sizes = [16, 16], strides = [1, 1]} : vector<16x22xf32> to vector<16x16xf32>
    %583 = vector.broadcast %204 : f32 to vector<16x16xf32>
    %584 = arith.mulf %583, %582 : vector<16x16xf32>
    %585 = arith.addf %581, %584 : vector<16x16xf32>
    %586 = vector.extract_strided_slice %557 {offsets = [0, 3], sizes = [16, 16], strides = [1, 1]} : vector<16x22xf32> to vector<16x16xf32>
    %587 = vector.broadcast %253 : f32 to vector<16x16xf32>
    %588 = arith.mulf %587, %586 : vector<16x16xf32>
    %589 = arith.addf %585, %588 : vector<16x16xf32>
    %590 = vector.extract_strided_slice %556 {offsets = [0, 4], sizes = [16, 16], strides = [1, 1]} : vector<16x22xf32> to vector<16x16xf32>
    %591 = vector.broadcast %205 : f32 to vector<16x16xf32>
    %592 = arith.mulf %591, %590 : vector<16x16xf32>
    %593 = arith.addf %589, %592 : vector<16x16xf32>
    %594 = vector.extract_strided_slice %557 {offsets = [0, 4], sizes = [16, 16], strides = [1, 1]} : vector<16x22xf32> to vector<16x16xf32>
    %595 = vector.broadcast %254 : f32 to vector<16x16xf32>
    %596 = arith.mulf %595, %594 : vector<16x16xf32>
    %597 = arith.addf %593, %596 : vector<16x16xf32>
    %598 = vector.extract_strided_slice %556 {offsets = [0, 5], sizes = [16, 16], strides = [1, 1]} : vector<16x22xf32> to vector<16x16xf32>
    %599 = vector.broadcast %206 : f32 to vector<16x16xf32>
    %600 = arith.mulf %599, %598 : vector<16x16xf32>
    %601 = arith.addf %597, %600 : vector<16x16xf32>
    %602 = vector.extract_strided_slice %557 {offsets = [0, 5], sizes = [16, 16], strides = [1, 1]} : vector<16x22xf32> to vector<16x16xf32>
    %603 = vector.broadcast %255 : f32 to vector<16x16xf32>
    %604 = arith.mulf %603, %602 : vector<16x16xf32>
    %605 = arith.addf %601, %604 : vector<16x16xf32>
    %606 = vector.extract_strided_slice %556 {offsets = [0, 6], sizes = [16, 16], strides = [1, 1]} : vector<16x22xf32> to vector<16x16xf32>
    %607 = vector.broadcast %207 : f32 to vector<16x16xf32>
    %608 = arith.mulf %607, %606 : vector<16x16xf32>
    %609 = arith.addf %605, %608 : vector<16x16xf32>
    %610 = vector.extract_strided_slice %557 {offsets = [0, 6], sizes = [16, 16], strides = [1, 1]} : vector<16x22xf32> to vector<16x16xf32>
    %611 = vector.broadcast %256 : f32 to vector<16x16xf32>
    %612 = arith.mulf %611, %610 : vector<16x16xf32>
    %613 = arith.addf %609, %612 : vector<16x16xf32>
    %614 = vector.extract_strided_slice %163 {offsets = [6, 0], sizes = [16, 22], strides = [1, 1]} : vector<22x22xf32> to vector<16x22xf32>
    %615 = vector.extract_strided_slice %165 {offsets = [6, 0], sizes = [16, 22], strides = [1, 1]} : vector<22x22xf32> to vector<16x22xf32>
    %616 = vector.extract_strided_slice %614 {offsets = [0, 0], sizes = [16, 16], strides = [1, 1]} : vector<16x22xf32> to vector<16x16xf32>
    %617 = vector.broadcast %208 : f32 to vector<16x16xf32>
    %618 = arith.mulf %617, %616 : vector<16x16xf32>
    %619 = arith.addf %613, %618 : vector<16x16xf32>
    %620 = vector.extract_strided_slice %615 {offsets = [0, 0], sizes = [16, 16], strides = [1, 1]} : vector<16x22xf32> to vector<16x16xf32>
    %621 = vector.broadcast %257 : f32 to vector<16x16xf32>
    %622 = arith.mulf %621, %620 : vector<16x16xf32>
    %623 = arith.addf %619, %622 : vector<16x16xf32>
    %624 = vector.extract_strided_slice %614 {offsets = [0, 1], sizes = [16, 16], strides = [1, 1]} : vector<16x22xf32> to vector<16x16xf32>
    %625 = vector.broadcast %209 : f32 to vector<16x16xf32>
    %626 = arith.mulf %625, %624 : vector<16x16xf32>
    %627 = arith.addf %623, %626 : vector<16x16xf32>
    %628 = vector.extract_strided_slice %615 {offsets = [0, 1], sizes = [16, 16], strides = [1, 1]} : vector<16x22xf32> to vector<16x16xf32>
    %629 = vector.broadcast %258 : f32 to vector<16x16xf32>
    %630 = arith.mulf %629, %628 : vector<16x16xf32>
    %631 = arith.addf %627, %630 : vector<16x16xf32>
    %632 = vector.extract_strided_slice %614 {offsets = [0, 2], sizes = [16, 16], strides = [1, 1]} : vector<16x22xf32> to vector<16x16xf32>
    %633 = vector.broadcast %210 : f32 to vector<16x16xf32>
    %634 = arith.mulf %633, %632 : vector<16x16xf32>
    %635 = arith.addf %631, %634 : vector<16x16xf32>
    %636 = vector.extract_strided_slice %615 {offsets = [0, 2], sizes = [16, 16], strides = [1, 1]} : vector<16x22xf32> to vector<16x16xf32>
    %637 = vector.broadcast %259 : f32 to vector<16x16xf32>
    %638 = arith.mulf %637, %636 : vector<16x16xf32>
    %639 = arith.addf %635, %638 : vector<16x16xf32>
    %640 = vector.extract_strided_slice %614 {offsets = [0, 3], sizes = [16, 16], strides = [1, 1]} : vector<16x22xf32> to vector<16x16xf32>
    %641 = vector.broadcast %211 : f32 to vector<16x16xf32>
    %642 = arith.mulf %641, %640 : vector<16x16xf32>
    %643 = arith.addf %639, %642 : vector<16x16xf32>
    %644 = vector.extract_strided_slice %615 {offsets = [0, 3], sizes = [16, 16], strides = [1, 1]} : vector<16x22xf32> to vector<16x16xf32>
    %645 = vector.broadcast %260 : f32 to vector<16x16xf32>
    %646 = arith.mulf %645, %644 : vector<16x16xf32>
    %647 = arith.addf %643, %646 : vector<16x16xf32>
    %648 = vector.extract_strided_slice %614 {offsets = [0, 4], sizes = [16, 16], strides = [1, 1]} : vector<16x22xf32> to vector<16x16xf32>
    %649 = vector.broadcast %212 : f32 to vector<16x16xf32>
    %650 = arith.mulf %649, %648 : vector<16x16xf32>
    %651 = arith.addf %647, %650 : vector<16x16xf32>
    %652 = vector.extract_strided_slice %615 {offsets = [0, 4], sizes = [16, 16], strides = [1, 1]} : vector<16x22xf32> to vector<16x16xf32>
    %653 = vector.broadcast %261 : f32 to vector<16x16xf32>
    %654 = arith.mulf %653, %652 : vector<16x16xf32>
    %655 = arith.addf %651, %654 : vector<16x16xf32>
    %656 = vector.extract_strided_slice %614 {offsets = [0, 5], sizes = [16, 16], strides = [1, 1]} : vector<16x22xf32> to vector<16x16xf32>
    %657 = vector.broadcast %213 : f32 to vector<16x16xf32>
    %658 = arith.mulf %657, %656 : vector<16x16xf32>
    %659 = arith.addf %655, %658 : vector<16x16xf32>
    %660 = vector.extract_strided_slice %615 {offsets = [0, 5], sizes = [16, 16], strides = [1, 1]} : vector<16x22xf32> to vector<16x16xf32>
    %661 = vector.broadcast %262 : f32 to vector<16x16xf32>
    %662 = arith.mulf %661, %660 : vector<16x16xf32>
    %663 = arith.addf %659, %662 : vector<16x16xf32>
    %664 = vector.extract_strided_slice %614 {offsets = [0, 6], sizes = [16, 16], strides = [1, 1]} : vector<16x22xf32> to vector<16x16xf32>
    %665 = vector.broadcast %214 : f32 to vector<16x16xf32>
    %666 = arith.mulf %665, %664 : vector<16x16xf32>
    %667 = arith.addf %663, %666 : vector<16x16xf32>
    %668 = vector.extract_strided_slice %615 {offsets = [0, 6], sizes = [16, 16], strides = [1, 1]} : vector<16x22xf32> to vector<16x16xf32>
    %669 = vector.broadcast %263 : f32 to vector<16x16xf32>
    %670 = arith.mulf %669, %668 : vector<16x16xf32>
    %671 = arith.addf %667, %670 : vector<16x16xf32>
    %672 = arith.negf %671 : vector<16x16xf32>
    %673 = math.exp %672 : vector<16x16xf32>
    %cst_134 = arith.constant 1.000000e+00 : f32
    %674 = vector.broadcast %cst_134 : f32 to vector<16x16xf32>
    %675 = arith.addf %674, %673 : vector<16x16xf32>
    %676 = arith.divf %674, %675 : vector<16x16xf32>
    %677 = vector.extract_strided_slice %676 {offsets = [0, 0], sizes = [1, 16], strides = [1, 1]} : vector<16x16xf32> to vector<1x16xf32>
    %c0_135 = arith.constant 0 : index
    %c0_136 = arith.constant 0 : index
    %c0_137 = arith.constant 0 : index
    %678 = vector.load %arg4[%c0_135, %c0_136, %c0_137] : memref<1x1x256xf32, #tpu.memory_space<vmem>>, vector<1x1x16xf32>
    %679 = vector.shape_cast %678 : vector<1x1x16xf32> to vector<1x16xf32>
    %680 = vector.shape_cast %677 : vector<1x16xf32> to vector<1x1x16xf32>
    tpu.vector_store %arg4[%c0_135, %c0_136, %c0_137], %680 {strides = array<i32>} : memref<1x1x256xf32, #tpu.memory_space<vmem>>, vector<1x1x16xf32>,
    %681 = vector.extract_strided_slice %676 {offsets = [1, 0], sizes = [1, 16], strides = [1, 1]} : vector<16x16xf32> to vector<1x16xf32>
    %c0_138 = arith.constant 0 : index
    %c0_139 = arith.constant 0 : index
    %c16_140 = arith.constant 16 : index
    %682 = vector.load %arg4[%c0_138, %c0_139, %c16_140] : memref<1x1x256xf32, #tpu.memory_space<vmem>>, vector<1x1x16xf32>
    %683 = vector.shape_cast %682 : vector<1x1x16xf32> to vector<1x16xf32>
    %684 = vector.shape_cast %681 : vector<1x16xf32> to vector<1x1x16xf32>
    tpu.vector_store %arg4[%c0_138, %c0_139, %c16_140], %684 {strides = array<i32>} : memref<1x1x256xf32, #tpu.memory_space<vmem>>, vector<1x1x16xf32>,
    %685 = vector.extract_strided_slice %676 {offsets = [2, 0], sizes = [1, 16], strides = [1, 1]} : vector<16x16xf32> to vector<1x16xf32>
    %c0_141 = arith.constant 0 : index
    %c0_142 = arith.constant 0 : index
    %c32_143 = arith.constant 32 : index
    %686 = vector.load %arg4[%c0_141, %c0_142, %c32_143] : memref<1x1x256xf32, #tpu.memory_space<vmem>>, vector<1x1x16xf32>
    %687 = vector.shape_cast %686 : vector<1x1x16xf32> to vector<1x16xf32>
    %688 = vector.shape_cast %685 : vector<1x16xf32> to vector<1x1x16xf32>
    tpu.vector_store %arg4[%c0_141, %c0_142, %c32_143], %688 {strides = array<i32>} : memref<1x1x256xf32, #tpu.memory_space<vmem>>, vector<1x1x16xf32>,
    %689 = vector.extract_strided_slice %676 {offsets = [3, 0], sizes = [1, 16], strides = [1, 1]} : vector<16x16xf32> to vector<1x16xf32>
    %c0_144 = arith.constant 0 : index
    %c0_145 = arith.constant 0 : index
    %c48_146 = arith.constant 48 : index
    %690 = vector.load %arg4[%c0_144, %c0_145, %c48_146] : memref<1x1x256xf32, #tpu.memory_space<vmem>>, vector<1x1x16xf32>
    %691 = vector.shape_cast %690 : vector<1x1x16xf32> to vector<1x16xf32>
    %692 = vector.shape_cast %689 : vector<1x16xf32> to vector<1x1x16xf32>
    tpu.vector_store %arg4[%c0_144, %c0_145, %c48_146], %692 {strides = array<i32>} : memref<1x1x256xf32, #tpu.memory_space<vmem>>, vector<1x1x16xf32>,
    %693 = vector.extract_strided_slice %676 {offsets = [4, 0], sizes = [1, 16], strides = [1, 1]} : vector<16x16xf32> to vector<1x16xf32>
    %c0_147 = arith.constant 0 : index
    %c0_148 = arith.constant 0 : index
    %c64_149 = arith.constant 64 : index
    %694 = vector.load %arg4[%c0_147, %c0_148, %c64_149] : memref<1x1x256xf32, #tpu.memory_space<vmem>>, vector<1x1x16xf32>
    %695 = vector.shape_cast %694 : vector<1x1x16xf32> to vector<1x16xf32>
    %696 = vector.shape_cast %693 : vector<1x16xf32> to vector<1x1x16xf32>
    tpu.vector_store %arg4[%c0_147, %c0_148, %c64_149], %696 {strides = array<i32>} : memref<1x1x256xf32, #tpu.memory_space<vmem>>, vector<1x1x16xf32>,
    %697 = vector.extract_strided_slice %676 {offsets = [5, 0], sizes = [1, 16], strides = [1, 1]} : vector<16x16xf32> to vector<1x16xf32>
    %c0_150 = arith.constant 0 : index
    %c0_151 = arith.constant 0 : index
    %c80_152 = arith.constant 80 : index
    %698 = vector.load %arg4[%c0_150, %c0_151, %c80_152] : memref<1x1x256xf32, #tpu.memory_space<vmem>>, vector<1x1x16xf32>
    %699 = vector.shape_cast %698 : vector<1x1x16xf32> to vector<1x16xf32>
    %700 = vector.shape_cast %697 : vector<1x16xf32> to vector<1x1x16xf32>
    tpu.vector_store %arg4[%c0_150, %c0_151, %c80_152], %700 {strides = array<i32>} : memref<1x1x256xf32, #tpu.memory_space<vmem>>, vector<1x1x16xf32>,
    %701 = vector.extract_strided_slice %676 {offsets = [6, 0], sizes = [1, 16], strides = [1, 1]} : vector<16x16xf32> to vector<1x16xf32>
    %c0_153 = arith.constant 0 : index
    %c0_154 = arith.constant 0 : index
    %c96_155 = arith.constant 96 : index
    %702 = vector.load %arg4[%c0_153, %c0_154, %c96_155] : memref<1x1x256xf32, #tpu.memory_space<vmem>>, vector<1x1x16xf32>
    %703 = vector.shape_cast %702 : vector<1x1x16xf32> to vector<1x16xf32>
    %704 = vector.shape_cast %701 : vector<1x16xf32> to vector<1x1x16xf32>
    tpu.vector_store %arg4[%c0_153, %c0_154, %c96_155], %704 {strides = array<i32>} : memref<1x1x256xf32, #tpu.memory_space<vmem>>, vector<1x1x16xf32>,
    %705 = vector.extract_strided_slice %676 {offsets = [7, 0], sizes = [1, 16], strides = [1, 1]} : vector<16x16xf32> to vector<1x16xf32>
    %c0_156 = arith.constant 0 : index
    %c0_157 = arith.constant 0 : index
    %c112 = arith.constant 112 : index
    %706 = vector.load %arg4[%c0_156, %c0_157, %c112] : memref<1x1x256xf32, #tpu.memory_space<vmem>>, vector<1x1x16xf32>
    %707 = vector.shape_cast %706 : vector<1x1x16xf32> to vector<1x16xf32>
    %708 = vector.shape_cast %705 : vector<1x16xf32> to vector<1x1x16xf32>
    tpu.vector_store %arg4[%c0_156, %c0_157, %c112], %708 {strides = array<i32>} : memref<1x1x256xf32, #tpu.memory_space<vmem>>, vector<1x1x16xf32>,
    %709 = vector.extract_strided_slice %676 {offsets = [8, 0], sizes = [1, 16], strides = [1, 1]} : vector<16x16xf32> to vector<1x16xf32>
    %c0_158 = arith.constant 0 : index
    %c0_159 = arith.constant 0 : index
    %c128 = arith.constant 128 : index
    %710 = vector.load %arg4[%c0_158, %c0_159, %c128] : memref<1x1x256xf32, #tpu.memory_space<vmem>>, vector<1x1x16xf32>
    %711 = vector.shape_cast %710 : vector<1x1x16xf32> to vector<1x16xf32>
    %712 = vector.shape_cast %709 : vector<1x16xf32> to vector<1x1x16xf32>
    tpu.vector_store %arg4[%c0_158, %c0_159, %c128], %712 {strides = array<i32>} : memref<1x1x256xf32, #tpu.memory_space<vmem>>, vector<1x1x16xf32>,
    %713 = vector.extract_strided_slice %676 {offsets = [9, 0], sizes = [1, 16], strides = [1, 1]} : vector<16x16xf32> to vector<1x16xf32>
    %c0_160 = arith.constant 0 : index
    %c0_161 = arith.constant 0 : index
    %c144 = arith.constant 144 : index
    %714 = vector.load %arg4[%c0_160, %c0_161, %c144] : memref<1x1x256xf32, #tpu.memory_space<vmem>>, vector<1x1x16xf32>
    %715 = vector.shape_cast %714 : vector<1x1x16xf32> to vector<1x16xf32>
    %716 = vector.shape_cast %713 : vector<1x16xf32> to vector<1x1x16xf32>
    tpu.vector_store %arg4[%c0_160, %c0_161, %c144], %716 {strides = array<i32>} : memref<1x1x256xf32, #tpu.memory_space<vmem>>, vector<1x1x16xf32>,
    %717 = vector.extract_strided_slice %676 {offsets = [10, 0], sizes = [1, 16], strides = [1, 1]} : vector<16x16xf32> to vector<1x16xf32>
    %c0_162 = arith.constant 0 : index
    %c0_163 = arith.constant 0 : index
    %c160 = arith.constant 160 : index
    %718 = vector.load %arg4[%c0_162, %c0_163, %c160] : memref<1x1x256xf32, #tpu.memory_space<vmem>>, vector<1x1x16xf32>
    %719 = vector.shape_cast %718 : vector<1x1x16xf32> to vector<1x16xf32>
    %720 = vector.shape_cast %717 : vector<1x16xf32> to vector<1x1x16xf32>
    tpu.vector_store %arg4[%c0_162, %c0_163, %c160], %720 {strides = array<i32>} : memref<1x1x256xf32, #tpu.memory_space<vmem>>, vector<1x1x16xf32>,
    %721 = vector.extract_strided_slice %676 {offsets = [11, 0], sizes = [1, 16], strides = [1, 1]} : vector<16x16xf32> to vector<1x16xf32>
    %c0_164 = arith.constant 0 : index
    %c0_165 = arith.constant 0 : index
    %c176 = arith.constant 176 : index
    %722 = vector.load %arg4[%c0_164, %c0_165, %c176] : memref<1x1x256xf32, #tpu.memory_space<vmem>>, vector<1x1x16xf32>
    %723 = vector.shape_cast %722 : vector<1x1x16xf32> to vector<1x16xf32>
    %724 = vector.shape_cast %721 : vector<1x16xf32> to vector<1x1x16xf32>
    tpu.vector_store %arg4[%c0_164, %c0_165, %c176], %724 {strides = array<i32>} : memref<1x1x256xf32, #tpu.memory_space<vmem>>, vector<1x1x16xf32>,
    %725 = vector.extract_strided_slice %676 {offsets = [12, 0], sizes = [1, 16], strides = [1, 1]} : vector<16x16xf32> to vector<1x16xf32>
    %c0_166 = arith.constant 0 : index
    %c0_167 = arith.constant 0 : index
    %c192 = arith.constant 192 : index
    %726 = vector.load %arg4[%c0_166, %c0_167, %c192] : memref<1x1x256xf32, #tpu.memory_space<vmem>>, vector<1x1x16xf32>
    %727 = vector.shape_cast %726 : vector<1x1x16xf32> to vector<1x16xf32>
    %728 = vector.shape_cast %725 : vector<1x16xf32> to vector<1x1x16xf32>
    tpu.vector_store %arg4[%c0_166, %c0_167, %c192], %728 {strides = array<i32>} : memref<1x1x256xf32, #tpu.memory_space<vmem>>, vector<1x1x16xf32>,
    %729 = vector.extract_strided_slice %676 {offsets = [13, 0], sizes = [1, 16], strides = [1, 1]} : vector<16x16xf32> to vector<1x16xf32>
    %c0_168 = arith.constant 0 : index
    %c0_169 = arith.constant 0 : index
    %c208 = arith.constant 208 : index
    %730 = vector.load %arg4[%c0_168, %c0_169, %c208] : memref<1x1x256xf32, #tpu.memory_space<vmem>>, vector<1x1x16xf32>
    %731 = vector.shape_cast %730 : vector<1x1x16xf32> to vector<1x16xf32>
    %732 = vector.shape_cast %729 : vector<1x16xf32> to vector<1x1x16xf32>
    tpu.vector_store %arg4[%c0_168, %c0_169, %c208], %732 {strides = array<i32>} : memref<1x1x256xf32, #tpu.memory_space<vmem>>, vector<1x1x16xf32>,
    %733 = vector.extract_strided_slice %676 {offsets = [14, 0], sizes = [1, 16], strides = [1, 1]} : vector<16x16xf32> to vector<1x16xf32>
    %c0_170 = arith.constant 0 : index
    %c0_171 = arith.constant 0 : index
    %c224 = arith.constant 224 : index
    %734 = vector.load %arg4[%c0_170, %c0_171, %c224] : memref<1x1x256xf32, #tpu.memory_space<vmem>>, vector<1x1x16xf32>
    %735 = vector.shape_cast %734 : vector<1x1x16xf32> to vector<1x16xf32>
    %736 = vector.shape_cast %733 : vector<1x16xf32> to vector<1x1x16xf32>
    tpu.vector_store %arg4[%c0_170, %c0_171, %c224], %736 {strides = array<i32>} : memref<1x1x256xf32, #tpu.memory_space<vmem>>, vector<1x1x16xf32>,
    %737 = vector.extract_strided_slice %676 {offsets = [15, 0], sizes = [1, 16], strides = [1, 1]} : vector<16x16xf32> to vector<1x16xf32>
    %c0_172 = arith.constant 0 : index
    %c0_173 = arith.constant 0 : index
    %c240 = arith.constant 240 : index
    %738 = vector.load %arg4[%c0_172, %c0_173, %c240] : memref<1x1x256xf32, #tpu.memory_space<vmem>>, vector<1x1x16xf32>
    %739 = vector.shape_cast %738 : vector<1x1x16xf32> to vector<1x16xf32>
    %740 = vector.shape_cast %737 : vector<1x16xf32> to vector<1x1x16xf32>
    tpu.vector_store %arg4[%c0_172, %c0_173, %c240], %740 {strides = array<i32>} : memref<1x1x256xf32, #tpu.memory_space<vmem>>, vector<1x1x16xf32>,
    return
  }
  func.func @transform_0(%arg0: i32) -> (i32, i32, i32) {
    %c0_i32 = arith.constant 0 : i32
    %c0_i32_0 = arith.constant 0 : i32
    %c0_i32_1 = arith.constant 0 : i32
    return %arg0, %c0_i32, %c0_i32_0 : i32, i32, i32
  }
  func.func @transform_1(%arg0: i32) -> i32 {
    %c0_i32 = arith.constant 0 : i32
    %c0_i32_0 = arith.constant 0 : i32
    return %c0_i32 : i32
  }
  func.func @transform_2(%arg0: i32) -> i32 {
    %c0_i32 = arith.constant 0 : i32
    %c0_i32_0 = arith.constant 0 : i32
    return %c0_i32 : i32
  }
  func.func @transform_3(%arg0: i32) -> (i32, i32, i32) {
    %c0_i32 = arith.constant 0 : i32
    %c0_i32_0 = arith.constant 0 : i32
    %c0_i32_1 = arith.constant 0 : i32
    return %arg0, %c0_i32, %c0_i32_0 : i32, i32, i32
  }
}

</mosaic_0001>

<llo_original>
// kernel: tpu_custom_call.1
$region0: #{tpu_custom_call.1}
  #allocation0 [shape = 'u32[]', space=smem, size = 0x4, offset = 0x4, fixed_abs, tag = 'smem constant byte address 0x4 - core index']
  #allocation1 [shape = 'u32[144,128]{1,0:T(1,128)}', space=vmem, size = 0x12000, scoped, tag = 'internal scratch']
  #allocation2 [shape = 'f32[2,22,22]{2,1,0:T(8,128)}', space=vmem, size = 0x6000, scoped, tag = 'scratch operand']
  #allocation3 [shape = 'f32[1]{0:T(128)S(6)}', space=smem, size = 0x200, scoped, tag = 'scoped memory for tpu_custom_call.1']
  %s0 = inlined_call_operand.hbm [shape: f32[2,4,256], index: 0, kind: input, shape index: {}]
  %s1 = inlined_call_operand.vmem [shape: f32[98], index: 1, kind: input, shape index: {}]
  %s2 = inlined_call_operand.<no memory space> [shape: f32[1], index: 2, kind: input, shape index: {}]
  %s3 = inlined_call_operand.hbm [shape: f32[2,1,256], index: 3, kind: output, shape index: {}]
  %s4 = sld [smem:[#allocation0]]
  $region53: #{tpu_custom_call.1} parent=0
    _
  %s6 = ssub.s32 1, %s4
  %s7 = scalar_select 0, %s6, %s4
  %8 = sst [smem:[#allocation3]] %s2
  $region1: #{tpu_custom_call.1} parent=0
    #allocation4 [shape = 'u8[8192]{0}', space=vmem, size = 0x2000, scoped, tag = 'input window, operand 0']
    #allocation5 [shape = 's32[2]{0}', space=sflag, size = 0x8, scoped, tag = 'scoped memory for tpu_custom_call.1']
    #allocation6 [shape = 's32[2]{0}', space=sflag, size = 0x8, scoped, tag = 'scoped memory for tpu_custom_call.1']
    #allocation7 [shape = 's32[2]{0}', space=sflag, size = 0x8, scoped, tag = 'scoped memory for tpu_custom_call.1']
    #allocation8 [shape = 'u8[512]{0}', space=smem, size = 0x200, scoped, tag = 'input window, operand 1, single buffered']
    #allocation9 [shape = 'u8[2048]{0}', space=vmem, size = 0x800, scoped, tag = 'output window, operand 0']
    %9 = vsyncpa [#allocation5], 0
    %s10 = scalar_lea.sflag [#allocation5], 1
    %11 = vsyncpa %s10, 0
    %12 = vsyncpa [#allocation7], 0
    %13 = vsyncpa [#allocation6], 0
    %s14 = scalar_lea.sflag [#allocation6], 1
    %15 = vsyncpa %s14, 0
    loop: start=0, step=1, limit=4
    $region2: #{tpu_custom_call.1} parent=1 // loop_pre_header
      _
    $region3: #{tpu_custom_call.1} parent=1 // loop_header
      %s17 = sphi 0, %s21
      %p18 = scmp.ge.s32.totalorder %s17, 4
      %s27 = sphi 0, %s29
      %s30 = sphi 0, %s27
      %s31 = sphi 0, %s30
      %s47 = sphi 0, %s31
      %s51 = sphi 0, %s51
      %s53 = sphi 0, %s51
      %s54 = sphi 0, %s53
      %s68 = sphi 0, %s54
      %s72 = sphi 0, %s72
      %s74 = sphi 0, %s72
      %s75 = sphi 0, %s74
      %s89 = sphi 0, %s75
      %s95 = sphi 0, %s97
      %s98 = sphi 0, %s95
      %s99 = sphi 0, %s98
      %s115 = sphi 0, %s99
    $region4: #{tpu_custom_call.1} parent=1 // loop_header_branch
      %20 = sbr.rel (%p18) target = $region8
    $region5: #{tpu_custom_call.1} parent=1 // loop_body
      %s22 = ssub.s32 %s17, 1
      %s23 = ssub.s32 %s17, 2
      %s24 = sadd.s32 %s17, 1
      %s25 = ssub.s32 %s17, %s24
      %p26 = scmp.eq.s32.totalorder %s25, 0
      %s28 = sadd.s32 %s27, 1
      %s29 = scalar_select %p26, %s27, %s28
      %p32 = pneg %p26
      %p33 = scmp.eq.s32.totalorder %s17, 1
      %p34 = por %p32, %p33
      %p35 = scmp.ne.s32.totalorder %s27, %s30
      %p36 = scmp.eq.s32.totalorder %s17, 0
      %p37 = por %p35, %p36
      %p38 = scmp.ne.s32.totalorder %s27, %s30
      %p39 = scmp.eq.s32.totalorder %s22, 1
      %p40 = por %p38, %p39
      %p41 = scmp.ne.s32.totalorder %s30, %s31
      %p42 = scmp.eq.s32.totalorder %s22, 0
      %p43 = por %p41, %p42
      %p44 = scmp.ne.s32.totalorder %s30, %s31
      %p45 = scmp.eq.s32.totalorder %s23, 1
      %p46 = por %p44, %p45
      %p48 = scmp.ne.s32.totalorder %s31, %s47
      %p49 = scmp.eq.s32.totalorder %s23, 0
      %p50 = por %p48, %p49
      %s52 = sadd.s32 %s51, 1
      %p55 = scmp.eq.s32.totalorder %s17, 1
      %p56 = scmp.ne.s32.totalorder %s51, %s53
      %p57 = scmp.eq.s32.totalorder %s17, 0
      %p58 = por %p56, %p57
      %p59 = scmp.ne.s32.totalorder %s51, %s53
      %p60 = scmp.eq.s32.totalorder %s22, 1
      %p61 = por %p59, %p60
      %p62 = scmp.ne.s32.totalorder %s53, %s54
      %p63 = scmp.eq.s32.totalorder %s22, 0
      %p64 = por %p62, %p63
      %p65 = scmp.ne.s32.totalorder %s53, %s54
      %p66 = scmp.eq.s32.totalorder %s23, 1
      %p67 = por %p65, %p66
      %p69 = scmp.ne.s32.totalorder %s54, %s68
      %p70 = scmp.eq.s32.totalorder %s23, 0
      %p71 = por %p69, %p70
      %s73 = sadd.s32 %s72, 1
      %p76 = scmp.eq.s32.totalorder %s17, 1
      %p77 = scmp.ne.s32.totalorder %s72, %s74
      %p78 = scmp.eq.s32.totalorder %s17, 0
      %p79 = por %p77, %p78
      %p80 = scmp.ne.s32.totalorder %s72, %s74
      %p81 = scmp.eq.s32.totalorder %s22, 1
      %p82 = por %p80, %p81
      %p83 = scmp.ne.s32.totalorder %s74, %s75
      %p84 = scmp.eq.s32.totalorder %s22, 0
      %p85 = por %p83, %p84
      %p86 = scmp.ne.s32.totalorder %s74, %s75
      %p87 = scmp.eq.s32.totalorder %s23, 1
      %p88 = por %p86, %p87
      %p90 = scmp.ne.s32.totalorder %s75, %s89
      %p91 = scmp.eq.s32.totalorder %s23, 0
      %p92 = por %p90, %p91
      %s93 = ssub.s32 %s17, %s24
      %p94 = scmp.eq.s32.totalorder %s93, 0
      %s96 = sadd.s32 %s95, 1
      %s97 = scalar_select %p94, %s95, %s96
      %p100 = pneg %p94
      %p101 = scmp.eq.s32.totalorder %s17, 1
      %p102 = por %p100, %p101
      %p103 = scmp.ne.s32.totalorder %s95, %s98
      %p104 = scmp.eq.s32.totalorder %s17, 0
      %p105 = por %p103, %p104
      %p106 = scmp.ne.s32.totalorder %s95, %s98
      %p107 = scmp.eq.s32.totalorder %s22, 1
      %p108 = por %p106, %p107
      %p109 = scmp.ne.s32.totalorder %s98, %s99
      %p110 = scmp.eq.s32.totalorder %s22, 0
      %p111 = por %p109, %p110
      %p112 = scmp.ne.s32.totalorder %s98, %s99
      %p113 = scmp.eq.s32.totalorder %s23, 1
      %p114 = por %p112, %p113
      %p116 = scmp.ne.s32.totalorder %s99, %s115
      %p117 = scmp.eq.s32.totalorder %s23, 0
      %p118 = por %p116, %p117
      %p119 = scmp.le.s32.totalorder 1, %s17
      %p120 = scmp.lt.s32.totalorder %s17, 3
      %p121 = pnand %p119, %p120
      %p122 = pneg %p121
      // Predicated region
      $region9: #{tpu_custom_call.1} parent=5 // pred_check
        _
      $region10: #{tpu_custom_call.1} parent=5 // pred_check_branch
        %124 = sbr.rel (%p121) target = $region12
      $region11: #{tpu_custom_call.1} parent=5 // pred_region
        %s125 = ssub.s32 %s17, 1
        // Predicated region
        $region13: #{tpu_custom_call.1} parent=11 // pred_check
          %p126 = pneg %p64
        $region14: #{tpu_custom_call.1} parent=11 // pred_check_branch
          %128 = sbr.rel (%p126) target = $region16
        $region15: #{tpu_custom_call.1} parent=11 // pred_region
          %s130 = ssub.s32 16, 16
          %131 = vsyncadd [#allocation7], %s130
          %s133 = sshll.u32 %s1, 4
          %s134 = int_to_ptr.vmem [resolvable:$true] %s133
          %136 = dma.vmem_to_smem %s134, 16, [#allocation8], [#allocation7]
        $region16: #{tpu_custom_call.1} parent=11 // pred_fallthru
          _
        // Predicated region
        $region17: #{tpu_custom_call.1} parent=11 // pred_check
          %p137 = pneg %p85
        $region18: #{tpu_custom_call.1} parent=11 // pred_check_branch
          %139 = sbr.rel (%p137) target = $region20
        $region19: #{tpu_custom_call.1} parent=11 // pred_region
          _
        $region20: #{tpu_custom_call.1} parent=11 // pred_fallthru
          _
      $region12: #{tpu_custom_call.1} parent=5 // pred_fallthru
        _
      %p140 = scmp.lt.s32.totalorder %s17, 2
      // Predicated region
      $region21: #{tpu_custom_call.1} parent=5 // pred_check
        %p141 = pneg %p140
      $region22: #{tpu_custom_call.1} parent=5 // pred_check_branch
        %143 = sbr.rel (%p141) target = $region24
      $region23: #{tpu_custom_call.1} parent=5 // pred_region
        // Predicated region
        $region25: #{tpu_custom_call.1} parent=23 // pred_check
          %p144 = pneg %p37
        $region26: #{tpu_custom_call.1} parent=23 // pred_check_branch
          %146 = sbr.rel (%p144) target = $region28
        $region27: #{tpu_custom_call.1} parent=23 // pred_region
          %s147 = sand.u32 %s27, 1
          %s148 = scalar_lea.sflag [#allocation5], %s147
          %s149 = sand.u32 %s27, 1
          %s150 = smul.addr %s149, 8
          %s151 = scalar_lea.vmem [#allocation4], %s150
          %s153 = ssub.s32 128, 128
          %154 = vsyncadd %s148, %s153
          %s155 = smul.addr %s17, 2
          %s156 = smul.addr %s155, 64
          %s157 = scalar_lea.hbm %s0, %s156
          %s159 = sshll.u32 %s151, 4
          %s160 = int_to_ptr.vmem [resolvable:$true] %s159
          %162 = dma.hbm_to_vmem [thread:$0]  %s157, 128, %s160, %s148
        $region28: #{tpu_custom_call.1} parent=23 // pred_fallthru
          _
      $region24: #{tpu_custom_call.1} parent=5 // pred_fallthru
        _
      %p163 = scmp.le.s32.totalorder 1, %s17
      %p164 = scmp.lt.s32.totalorder %s17, 3
      %p165 = pnand %p163, %p164
      %p166 = pneg %p165
      // Predicated region
      $region29: #{tpu_custom_call.1} parent=5 // pred_check
        _
      $region30: #{tpu_custom_call.1} parent=5 // pred_check_branch
        %168 = sbr.rel (%p165) target = $region32
      $region31: #{tpu_custom_call.1} parent=5 // pred_region
        %s169 = ssub.s32 %s17, 1
        %s170 = sand.u32 %s30, 1
        %s171 = scalar_lea.sflag [#allocation5], %s170
        %s172 = sand.u32 %s30, 1
        %s173 = smul.addr %s172, 8
        %s174 = scalar_lea.vmem [#allocation4], %s173
        // Predicated region
        $region33: #{tpu_custom_call.1} parent=31 // pred_check
          %p175 = pneg %p43
        $region34: #{tpu_custom_call.1} parent=31 // pred_check_branch
          %177 = sbr.rel (%p175) target = $region36
        $region35: #{tpu_custom_call.1} parent=31 // pred_region
          %178 = dma.done %s171, 128
        $region36: #{tpu_custom_call.1} parent=31 // pred_fallthru
          _
        // Predicated region
        $region37: #{tpu_custom_call.1} parent=31 // pred_check
          %p179 = pneg %p64
        $region38: #{tpu_custom_call.1} parent=31 // pred_check_branch
          %181 = sbr.rel (%p179) target = $region40
        $region39: #{tpu_custom_call.1} parent=31 // pred_region
          %182 = dma.done [#allocation7], 16
        $region40: #{tpu_custom_call.1} parent=31 // pred_fallthru
          _
        %183 = sfence
        %s184 = sand.u32 %s30, 1
        %s185 = scalar_lea.sflag [#allocation5], %s184
        %s186 = sand.u32 %s30, 1
        %s187 = smul.addr %s186, 8
        %s188 = scalar_lea.vmem [#allocation4], %s187
        %p189 = pneg %p43
        %p190 = pneg %p40
        %p191 = pneg %p64
        %p192 = pneg %p61
        %p193 = pneg %p85
        %p194 = pneg %p82
        %p195 = pneg %p111
        %p196 = pneg %p108
        %s197 = sand.u32 %s98, 1
        %s198 = scalar_lea.sflag [#allocation6], %s197
        %s199 = sand.u32 %s98, 1
        %s200 = smul.addr %s199, 2
        %s201 = scalar_lea.vmem [#allocation9], %s200
        %v202 = vld [vmem:[%s174] sm:$0xff]
        %v204 = vcombine.high %v202, %v202
        %vm206 = vcmask 1043456
        %v207 = vsel %vm206, %v202, 0.0
        %v208 = vrot.slane %v207, 4
        %v209 = vadd.f32 %v207, %v208
        %v210 = vrot.slane %v209, 2
        %v211 = vadd.f32 %v209, %v210
        %v212 = vrot.slane %v211, 1
        %v213 = vadd.f32 %v211, %v212
        %v214 = vsel %vm206, %v204, 0.0
        %v215 = vrot.slane %v214, 4
        %v216 = vadd.f32 %v214, %v215
        %v217 = vrot.slane %v216, 2
        %v218 = vadd.f32 %v216, %v217
        %v219 = vrot.slane %v218, 1
        %v220 = vadd.f32 %v218, %v219
        %v221 = vrcp.pop 4.0
        %v222 = vmul.f32 %v213, %v221
        %v223 = vmul.f32 %v220, %v221
        %v224 = vsel %vm206, %v202, -inf
        %v225 = vrot.slane %v224, 4
        %v226 = vmax.f32 %v224, %v225
        %v227 = vrot.slane %v226, 2
        %v228 = vmax.f32 %v226, %v227
        %v229 = vrot.slane %v228, 1
        %v230 = vmax.f32 %v228, %v229
        %v231 = vsel %vm206, %v204, -inf
        %v232 = vrot.slane %v231, 4
        %v233 = vmax.f32 %v231, %v232
        %v234 = vrot.slane %v233, 2
        %v235 = vmax.f32 %v233, %v234
        %v236 = vrot.slane %v235, 1
        %v237 = vmax.f32 %v235, %v236
        %vm238 = vcmask 174080
        %239 = vst.msk [vmem:[#allocation2] sm:$0x7] %vm238, 0.0
        %240 = vst.msk [vmem:[#allocation2 + $0x13] sm:$0x7] %vm238, 0.0
        %vm241 = vcmask 23552
        %242 = vst.msk [vmem:[#allocation2 + $0x3] sm:$0xff] %vm241, 0.0
        %243 = vst.msk [vmem:[#allocation2 + $0xb] sm:$0xff] %vm241, 0.0
        %vm244 = vcmask 179352
        %245 = vst.msk [vmem:[#allocation2 + $0x3] sm:$0xff] %vm244, 0.0
        %246 = vst.msk [vmem:[#allocation2 + $0xb] sm:$0xff] %vm244, 0.0
        %s247 = scalar_lea.vmem [#allocation2], 24
        %248 = vst.msk [vmem:[%s247] sm:$0x7] %vm238, 0.0
        %249 = vst.msk [vmem:[%s247 + $0x13] sm:$0x7] %vm238, 0.0
        %250 = vst.msk [vmem:[%s247 + $0x3] sm:$0xff] %vm241, 0.0
        %251 = vst.msk [vmem:[%s247 + $0xb] sm:$0xff] %vm241, 0.0
        %252 = vst.msk [vmem:[%s247 + $0x3] sm:$0xff] %vm244, 0.0
        %253 = vst.msk [vmem:[%s247 + $0xb] sm:$0xff] %vm244, 0.0
        %255 = vrot.lane.b32.xlu0 %v222, 3
        %v256 = vpop.permute.xlu0 %255
        %vm258 = vcmask 147480
        %259 = vst.msk [vmem:[#allocation2 + $0x3] sm:$0x1] %vm258, %v256
        %261 = vrot.lane.b32.xlu0 %v230, 3
        %v262 = vpop.permute.xlu0 %261
        %264 = vst.msk [vmem:[%s247 + $0x3] sm:$0x1] %vm258, %v262
        %265 = vrot.lane.b32.xlu0 %v222, 115
        %v266 = vpop.permute.xlu0 %265
        %268 = vst.msk [vmem:[#allocation2 + $0x4] sm:$0x1] %vm258, %v266
        %269 = vrot.lane.b32.xlu0 %v230, 115
        %v270 = vpop.permute.xlu0 %269
        %272 = vst.msk [vmem:[%s247 + $0x4] sm:$0x1] %vm258, %v270
        %273 = vrot.lane.b32.xlu0 %v222, 99
        %v274 = vpop.permute.xlu0 %273
        %276 = vst.msk [vmem:[#allocation2 + $0x5] sm:$0x1] %vm258, %v274
        %277 = vrot.lane.b32.xlu0 %v230, 99
        %v278 = vpop.permute.xlu0 %277
        %280 = vst.msk [vmem:[%s247 + $0x5] sm:$0x1] %vm258, %v278
        %281 = vrot.lane.b32.xlu0 %v222, 83
        %v282 = vpop.permute.xlu0 %281
        %284 = vst.msk [vmem:[#allocation2 + $0x6] sm:$0x1] %vm258, %v282
        %285 = vrot.lane.b32.xlu0 %v230, 83
        %v286 = vpop.permute.xlu0 %285
        %288 = vst.msk [vmem:[%s247 + $0x6] sm:$0x1] %vm258, %v286
        %289 = vrot.lane.b32.xlu0 %v222, 67
        %v290 = vpop.permute.xlu0 %289
        %292 = vst.msk [vmem:[#allocation2 + $0x7] sm:$0x1] %vm258, %v290
        %293 = vrot.lane.b32.xlu0 %v230, 67
        %v294 = vpop.permute.xlu0 %293
        %296 = vst.msk [vmem:[%s247 + $0x7] sm:$0x1] %vm258, %v294
        %297 = vrot.lane.b32.xlu0 %v222, 51
        %v298 = vpop.permute.xlu0 %297
        %300 = vst.msk [vmem:[#allocation2 + $0x8] sm:$0x1] %vm258, %v298
        %301 = vrot.lane.b32.xlu0 %v230, 51
        %v302 = vpop.permute.xlu0 %301
        %304 = vst.msk [vmem:[%s247 + $0x8] sm:$0x1] %vm258, %v302
        %305 = vrot.lane.b32.xlu0 %v222, 35
        %v306 = vpop.permute.xlu0 %305
        %308 = vst.msk [vmem:[#allocation2 + $0x9] sm:$0x1] %vm258, %v306
        %309 = vrot.lane.b32.xlu0 %v230, 35
        %v310 = vpop.permute.xlu0 %309
        %312 = vst.msk [vmem:[%s247 + $0x9] sm:$0x1] %vm258, %v310
        %313 = vrot.lane.b32.xlu0 %v222, 19
        %v314 = vpop.permute.xlu0 %313
        %316 = vst.msk [vmem:[#allocation2 + $0xa] sm:$0x1] %vm258, %v314
        %317 = vrot.lane.b32.xlu0 %v230, 19
        %v318 = vpop.permute.xlu0 %317
        %320 = vst.msk [vmem:[%s247 + $0xa] sm:$0x1] %vm258, %v318
        %322 = vrot.lane.b32.xlu0 %v223, 3
        %v323 = vpop.permute.xlu0 %322
        %325 = vst.msk [vmem:[#allocation2 + $0xb] sm:$0x1] %vm258, %v323
        %327 = vrot.lane.b32.xlu0 %v237, 3
        %v328 = vpop.permute.xlu0 %327
        %330 = vst.msk [vmem:[%s247 + $0xb] sm:$0x1] %vm258, %v328
        %331 = vrot.lane.b32.xlu0 %v223, 115
        %v332 = vpop.permute.xlu0 %331
        %334 = vst.msk [vmem:[#allocation2 + $0xc] sm:$0x1] %vm258, %v332
        %335 = vrot.lane.b32.xlu0 %v237, 115
        %v336 = vpop.permute.xlu0 %335
        %338 = vst.msk [vmem:[%s247 + $0xc] sm:$0x1] %vm258, %v336
        %339 = vrot.lane.b32.xlu0 %v223, 99
        %v340 = vpop.permute.xlu0 %339
        %342 = vst.msk [vmem:[#allocation2 + $0xd] sm:$0x1] %vm258, %v340
        %343 = vrot.lane.b32.xlu0 %v237, 99
        %v344 = vpop.permute.xlu0 %343
        %346 = vst.msk [vmem:[%s247 + $0xd] sm:$0x1] %vm258, %v344
        %347 = vrot.lane.b32.xlu0 %v223, 83
        %v348 = vpop.permute.xlu0 %347
        %350 = vst.msk [vmem:[#allocation2 + $0xe] sm:$0x1] %vm258, %v348
        %351 = vrot.lane.b32.xlu0 %v237, 83
        %v352 = vpop.permute.xlu0 %351
        %354 = vst.msk [vmem:[%s247 + $0xe] sm:$0x1] %vm258, %v352
        %355 = vrot.lane.b32.xlu0 %v223, 67
        %v356 = vpop.permute.xlu0 %355
        %358 = vst.msk [vmem:[#allocation2 + $0xf] sm:$0x1] %vm258, %v356
        %359 = vrot.lane.b32.xlu0 %v237, 67
        %v360 = vpop.permute.xlu0 %359
        %362 = vst.msk [vmem:[%s247 + $0xf] sm:$0x1] %vm258, %v360
        %363 = vrot.lane.b32.xlu0 %v223, 51
        %v364 = vpop.permute.xlu0 %363
        %366 = vst.msk [vmem:[#allocation2 + $0x10] sm:$0x1] %vm258, %v364
        %367 = vrot.lane.b32.xlu0 %v237, 51
        %v368 = vpop.permute.xlu0 %367
        %370 = vst.msk [vmem:[%s247 + $0x10] sm:$0x1] %vm258, %v368
        %371 = vrot.lane.b32.xlu0 %v223, 35
        %v372 = vpop.permute.xlu0 %371
        %374 = vst.msk [vmem:[#allocation2 + $0x11] sm:$0x1] %vm258, %v372
        %375 = vrot.lane.b32.xlu0 %v237, 35
        %v376 = vpop.permute.xlu0 %375
        %378 = vst.msk [vmem:[%s247 + $0x11] sm:$0x1] %vm258, %v376
        %379 = vrot.lane.b32.xlu0 %v223, 19
        %v380 = vpop.permute.xlu0 %379
        %382 = vst.msk [vmem:[#allocation2 + $0x12] sm:$0x1] %vm258, %v380
        %383 = vrot.lane.b32.xlu0 %v237, 19
        %v384 = vpop.permute.xlu0 %383
        %386 = vst.msk [vmem:[%s247 + $0x12] sm:$0x1] %vm258, %v384
        %v387 = vld [vmem:[#allocation2] sm:$0xff]
        %v388 = vld [vmem:[#allocation2 + $0x8] sm:$0xff]
        %v389 = vld [vmem:[#allocation2 + $0x10] sm:$0x3f]
        %v390 = vld [vmem:[%s247] sm:$0xff]
        %v391 = vld [vmem:[%s247 + $0x8] sm:$0xff]
        %v392 = vld [vmem:[%s247 + $0x10] sm:$0x3f]
        %s393 = sld [smem:[#allocation8]]
        %s394 = sld [smem:[#allocation8 + $0x1]]
        %s395 = sld [smem:[#allocation8 + $0x2]]
        %s396 = sld [smem:[#allocation8 + $0x3]]
        %s397 = sld [smem:[#allocation8 + $0x4]]
        %s398 = sld [smem:[#allocation8 + $0x5]]
        %s399 = sld [smem:[#allocation8 + $0x6]]
        %s400 = sld [smem:[#allocation8 + $0x7]]
        %s401 = sld [smem:[#allocation8 + $0x8]]
        %s402 = sld [smem:[#allocation8 + $0x9]]
        %s403 = sld [smem:[#allocation8 + $0xa]]
        %s404 = sld [smem:[#allocation8 + $0xb]]
        %s405 = sld [smem:[#allocation8 + $0xc]]
        %s406 = sld [smem:[#allocation8 + $0xd]]
        %s407 = sld [smem:[#allocation8 + $0xe]]
        %s408 = sld [smem:[#allocation8 + $0xf]]
        %s409 = sld [smem:[#allocation8 + $0x10]]
        %s410 = sld [smem:[#allocation8 + $0x11]]
        %s411 = sld [smem:[#allocation8 + $0x12]]
        %s412 = sld [smem:[#allocation8 + $0x13]]
        %s413 = sld [smem:[#allocation8 + $0x14]]
        %s414 = sld [smem:[#allocation8 + $0x15]]
        %s415 = sld [smem:[#allocation8 + $0x16]]
        %s416 = sld [smem:[#allocation8 + $0x17]]
        %s417 = sld [smem:[#allocation8 + $0x18]]
        %s418 = sld [smem:[#allocation8 + $0x19]]
        %s419 = sld [smem:[#allocation8 + $0x1a]]
        %s420 = sld [smem:[#allocation8 + $0x1b]]
        %s421 = sld [smem:[#allocation8 + $0x1c]]
        %s422 = sld [smem:[#allocation8 + $0x1d]]
        %s423 = sld [smem:[#allocation8 + $0x1e]]
        %s424 = sld [smem:[#allocation8 + $0x1f]]
        %s425 = sld [smem:[#allocation8 + $0x20]]
        %s426 = sld [smem:[#allocation8 + $0x21]]
        %s427 = sld [smem:[#allocation8 + $0x22]]
        %s428 = sld [smem:[#allocation8 + $0x23]]
        %s429 = sld [smem:[#allocation8 + $0x24]]
        %s430 = sld [smem:[#allocation8 + $0x25]]
        %s431 = sld [smem:[#allocation8 + $0x26]]
        %s432 = sld [smem:[#allocation8 + $0x27]]
        %s433 = sld [smem:[#allocation8 + $0x28]]
        %s434 = sld [smem:[#allocation8 + $0x29]]
        %s435 = sld [smem:[#allocation8 + $0x2a]]
        %s436 = sld [smem:[#allocation8 + $0x2b]]
        %s437 = sld [smem:[#allocation8 + $0x2c]]
        %s438 = sld [smem:[#allocation8 + $0x2d]]
        %s439 = sld [smem:[#allocation8 + $0x2e]]
        %s440 = sld [smem:[#allocation8 + $0x2f]]
        %s441 = sld [smem:[#allocation8 + $0x30]]
        %s442 = sld [smem:[#allocation8 + $0x31]]
        %s443 = sld [smem:[#allocation8 + $0x32]]
        %s444 = sld [smem:[#allocation8 + $0x33]]
        %s445 = sld [smem:[#allocation8 + $0x34]]
        %s446 = sld [smem:[#allocation8 + $0x35]]
        %s447 = sld [smem:[#allocation8 + $0x36]]
        %s448 = sld [smem:[#allocation8 + $0x37]]
        %s449 = sld [smem:[#allocation8 + $0x38]]
        %s450 = sld [smem:[#allocation8 + $0x39]]
        %s451 = sld [smem:[#allocation8 + $0x3a]]
        %s452 = sld [smem:[#allocation8 + $0x3b]]
        %s453 = sld [smem:[#allocation8 + $0x3c]]
        %s454 = sld [smem:[#allocation8 + $0x3d]]
        %s455 = sld [smem:[#allocation8 + $0x3e]]
        %s456 = sld [smem:[#allocation8 + $0x3f]]
        %s457 = sld [smem:[#allocation8 + $0x40]]
        %s458 = sld [smem:[#allocation8 + $0x41]]
        %s459 = sld [smem:[#allocation8 + $0x42]]
        %s460 = sld [smem:[#allocation8 + $0x43]]
        %s461 = sld [smem:[#allocation8 + $0x44]]
        %s462 = sld [smem:[#allocation8 + $0x45]]
        %s463 = sld [smem:[#allocation8 + $0x46]]
        %s464 = sld [smem:[#allocation8 + $0x47]]
        %s465 = sld [smem:[#allocation8 + $0x48]]
        %s466 = sld [smem:[#allocation8 + $0x49]]
        %s467 = sld [smem:[#allocation8 + $0x4a]]
        %s468 = sld [smem:[#allocation8 + $0x4b]]
        %s469 = sld [smem:[#allocation8 + $0x4c]]
        %s470 = sld [smem:[#allocation8 + $0x4d]]
        %s471 = sld [smem:[#allocation8 + $0x4e]]
        %s472 = sld [smem:[#allocation8 + $0x4f]]
        %s473 = sld [smem:[#allocation8 + $0x50]]
        %s474 = sld [smem:[#allocation8 + $0x51]]
        %s475 = sld [smem:[#allocation8 + $0x52]]
        %s476 = sld [smem:[#allocation8 + $0x53]]
        %s477 = sld [smem:[#allocation8 + $0x54]]
        %s478 = sld [smem:[#allocation8 + $0x55]]
        %s479 = sld [smem:[#allocation8 + $0x56]]
        %s480 = sld [smem:[#allocation8 + $0x57]]
        %s481 = sld [smem:[#allocation8 + $0x58]]
        %s482 = sld [smem:[#allocation8 + $0x59]]
        %s483 = sld [smem:[#allocation8 + $0x5a]]
        %s484 = sld [smem:[#allocation8 + $0x5b]]
        %s485 = sld [smem:[#allocation8 + $0x5c]]
        %s486 = sld [smem:[#allocation8 + $0x5d]]
        %s487 = sld [smem:[#allocation8 + $0x5e]]
        %s488 = sld [smem:[#allocation8 + $0x5f]]
        %s489 = sld [smem:[#allocation8 + $0x60]]
        %s490 = sld [smem:[#allocation8 + $0x61]]
        %s491 = sld [smem:[#allocation3]]
        %v492 = vstv %s491
        %v493 = vstv %s393
        %v494 = vmul.f32 %v493, %v387
        %v495 = vmul.f32 %v493, %v388
        %v496 = vadd.f32 %v492, %v494
        %v497 = vadd.f32 %v492, %v495
        %v498 = vstv %s442
        %v499 = vmul.f32 %v498, %v390
        %v500 = vmul.f32 %v498, %v391
        %v501 = vadd.f32 %v496, %v499
        %v502 = vadd.f32 %v497, %v500
        %v503 = vstv %s394
        %v504 = vmul.f32 %v503, %v387
        %v505 = vmul.f32 %v503, %v388
        %508 = vrot.lane.b32.xlu0 %v504, 127
        %v509 = vpop.permute.xlu0 %508
        %510 = vrot.lane.b32.xlu0 %v505, 127
        %v511 = vpop.permute.xlu0 %510
        %v514 = vadd.f32 %v501, %v509
        %v515 = vadd.f32 %v502, %v511
        %v516 = vstv %s443
        %v517 = vmul.f32 %v516, %v390
        %v518 = vmul.f32 %v516, %v391
        %521 = vrot.lane.b32.xlu0 %v517, 127
        %v522 = vpop.permute.xlu0 %521
        %523 = vrot.lane.b32.xlu0 %v518, 127
        %v524 = vpop.permute.xlu0 %523
        %v527 = vadd.f32 %v514, %v522
        %v528 = vadd.f32 %v515, %v524
        %v529 = vstv %s395
        %v530 = vmul.f32 %v529, %v387
        %v531 = vmul.f32 %v529, %v388
        %534 = vrot.lane.b32.xlu0 %v530, 126
        %v535 = vpop.permute.xlu0 %534
        %536 = vrot.lane.b32.xlu0 %v531, 126
        %v537 = vpop.permute.xlu0 %536
        %v540 = vadd.f32 %v527, %v535
        %v541 = vadd.f32 %v528, %v537
        %v542 = vstv %s444
        %v543 = vmul.f32 %v542, %v390
        %v544 = vmul.f32 %v542, %v391
        %547 = vrot.lane.b32.xlu0 %v543, 126
        %v548 = vpop.permute.xlu0 %547
        %549 = vrot.lane.b32.xlu0 %v544, 126
        %v550 = vpop.permute.xlu0 %549
        %v553 = vadd.f32 %v540, %v548
        %v554 = vadd.f32 %v541, %v550
        %v555 = vstv %s396
        %v556 = vmul.f32 %v555, %v387
        %v557 = vmul.f32 %v555, %v388
        %560 = vrot.lane.b32.xlu0 %v556, 125
        %v561 = vpop.permute.xlu0 %560
        %562 = vrot.lane.b32.xlu0 %v557, 125
        %v563 = vpop.permute.xlu0 %562
        %v566 = vadd.f32 %v553, %v561
        %v567 = vadd.f32 %v554, %v563
        %v568 = vstv %s445
        %v569 = vmul.f32 %v568, %v390
        %v570 = vmul.f32 %v568, %v391
        %573 = vrot.lane.b32.xlu0 %v569, 125
        %v574 = vpop.permute.xlu0 %573
        %575 = vrot.lane.b32.xlu0 %v570, 125
        %v576 = vpop.permute.xlu0 %575
        %v579 = vadd.f32 %v566, %v574
        %v580 = vadd.f32 %v567, %v576
        %v581 = vstv %s397
        %v582 = vmul.f32 %v581, %v387
        %v583 = vmul.f32 %v581, %v388
        %586 = vrot.lane.b32.xlu0 %v582, 124
        %v587 = vpop.permute.xlu0 %586
        %588 = vrot.lane.b32.xlu0 %v583, 124
        %v589 = vpop.permute.xlu0 %588
        %v592 = vadd.f32 %v579, %v587
        %v593 = vadd.f32 %v580, %v589
        %v594 = vstv %s446
        %v595 = vmul.f32 %v594, %v390
        %v596 = vmul.f32 %v594, %v391
        %599 = vrot.lane.b32.xlu0 %v595, 124
        %v600 = vpop.permute.xlu0 %599
        %601 = vrot.lane.b32.xlu0 %v596, 124
        %v602 = vpop.permute.xlu0 %601
        %v605 = vadd.f32 %v592, %v600
        %v606 = vadd.f32 %v593, %v602
        %v607 = vstv %s398
        %v608 = vmul.f32 %v607, %v387
        %v609 = vmul.f32 %v607, %v388
        %612 = vrot.lane.b32.xlu0 %v608, 123
        %v613 = vpop.permute.xlu0 %612
        %614 = vrot.lane.b32.xlu0 %v609, 123
        %v615 = vpop.permute.xlu0 %614
        %v618 = vadd.f32 %v605, %v613
        %v619 = vadd.f32 %v606, %v615
        %v620 = vstv %s447
        %v621 = vmul.f32 %v620, %v390
        %v622 = vmul.f32 %v620, %v391
        %625 = vrot.lane.b32.xlu0 %v621, 123
        %v626 = vpop.permute.xlu0 %625
        %627 = vrot.lane.b32.xlu0 %v622, 123
        %v628 = vpop.permute.xlu0 %627
        %v631 = vadd.f32 %v618, %v626
        %v632 = vadd.f32 %v619, %v628
        %v633 = vstv %s399
        %v634 = vmul.f32 %v633, %v387
        %v635 = vmul.f32 %v633, %v388
        %638 = vrot.lane.b32.xlu0 %v634, 122
        %v639 = vpop.permute.xlu0 %638
        %640 = vrot.lane.b32.xlu0 %v635, 122
        %v641 = vpop.permute.xlu0 %640
        %v644 = vadd.f32 %v631, %v639
        %v645 = vadd.f32 %v632, %v641
        %v646 = vstv %s448
        %v647 = vmul.f32 %v646, %v390
        %v648 = vmul.f32 %v646, %v391
        %651 = vrot.lane.b32.xlu0 %v647, 122
        %v652 = vpop.permute.xlu0 %651
        %653 = vrot.lane.b32.xlu0 %v648, 122
        %v654 = vpop.permute.xlu0 %653
        %v657 = vadd.f32 %v644, %v652
        %v658 = vadd.f32 %v645, %v654
        %v659 = vstv %s400
        %v660 = vmul.f32 %v659, %v387
        %v661 = vmul.f32 %v659, %v388
        %v662 = vmul.f32 %v659, %v389
        %vm666 = vcmask 1046528
        %v667 = vrot.slane %v660, 1
        %v668 = vrot.slane %v661, 1
        %v669 = vsel %vm666, %v667, %v668
        %v670 = vrot.slane %v662, 1
        %v671 = vsel %vm666, %v668, %v670
        %v674 = vadd.f32 %v657, %v669
        %v675 = vadd.f32 %v658, %v671
        %v676 = vstv %s449
        %v677 = vmul.f32 %v676, %v390
        %v678 = vmul.f32 %v676, %v391
        %v679 = vmul.f32 %v676, %v392
        %v683 = vrot.slane %v677, 1
        %v684 = vrot.slane %v678, 1
        %v685 = vsel %vm666, %v683, %v684
        %v686 = vrot.slane %v679, 1
        %v687 = vsel %vm666, %v684, %v686
        %v690 = vadd.f32 %v674, %v685
        %v691 = vadd.f32 %v675, %v687
        %v692 = vstv %s401
        %v693 = vmul.f32 %v692, %v387
        %v694 = vmul.f32 %v692, %v388
        %v695 = vmul.f32 %v692, %v389
        %v699 = vrot.slane %v693, 1
        %v700 = vrot.slane %v694, 1
        %v701 = vsel %vm666, %v699, %v700
        %v702 = vrot.slane %v695, 1
        %v703 = vsel %vm666, %v700, %v702
        %704 = vrot.lane.b32.xlu0 %v701, 127
        %v705 = vpop.permute.xlu0 %704
        %706 = vrot.lane.b32.xlu0 %v703, 127
        %v707 = vpop.permute.xlu0 %706
        %v710 = vadd.f32 %v690, %v705
        %v711 = vadd.f32 %v691, %v707
        %v712 = vstv %s450
        %v713 = vmul.f32 %v712, %v390
        %v714 = vmul.f32 %v712, %v391
        %v715 = vmul.f32 %v712, %v392
        %v719 = vrot.slane %v713, 1
        %v720 = vrot.slane %v714, 1
        %v721 = vsel %vm666, %v719, %v720
        %v722 = vrot.slane %v715, 1
        %v723 = vsel %vm666, %v720, %v722
        %724 = vrot.lane.b32.xlu0 %v721, 127
        %v725 = vpop.permute.xlu0 %724
        %726 = vrot.lane.b32.xlu0 %v723, 127
        %v727 = vpop.permute.xlu0 %726
        %v730 = vadd.f32 %v710, %v725
        %v731 = vadd.f32 %v711, %v727
        %v732 = vstv %s402
        %v733 = vmul.f32 %v732, %v387
        %v734 = vmul.f32 %v732, %v388
        %v735 = vmul.f32 %v732, %v389
        %v739 = vrot.slane %v733, 1
        %v740 = vrot.slane %v734, 1
        %v741 = vsel %vm666, %v739, %v740
        %v742 = vrot.slane %v735, 1
        %v743 = vsel %vm666, %v740, %v742
        %744 = vrot.lane.b32.xlu0 %v741, 126
        %v745 = vpop.permute.xlu0 %744
        %746 = vrot.lane.b32.xlu0 %v743, 126
        %v747 = vpop.permute.xlu0 %746
        %v750 = vadd.f32 %v730, %v745
        %v751 = vadd.f32 %v731, %v747
        %v752 = vstv %s451
        %v753 = vmul.f32 %v752, %v390
        %v754 = vmul.f32 %v752, %v391
        %v755 = vmul.f32 %v752, %v392
        %v759 = vrot.slane %v753, 1
        %v760 = vrot.slane %v754, 1
        %v761 = vsel %vm666, %v759, %v760
        %v762 = vrot.slane %v755, 1
        %v763 = vsel %vm666, %v760, %v762
        %764 = vrot.lane.b32.xlu0 %v761, 126
        %v765 = vpop.permute.xlu0 %764
        %766 = vrot.lane.b32.xlu0 %v763, 126
        %v767 = vpop.permute.xlu0 %766
        %v770 = vadd.f32 %v750, %v765
        %v771 = vadd.f32 %v751, %v767
        %v772 = vstv %s403
        %v773 = vmul.f32 %v772, %v387
        %v774 = vmul.f32 %v772, %v388
        %v775 = vmul.f32 %v772, %v389
        %v779 = vrot.slane %v773, 1
        %v780 = vrot.slane %v774, 1
        %v781 = vsel %vm666, %v779, %v780
        %v782 = vrot.slane %v775, 1
        %v783 = vsel %vm666, %v780, %v782
        %784 = vrot.lane.b32.xlu0 %v781, 125
        %v785 = vpop.permute.xlu0 %784
        %786 = vrot.lane.b32.xlu0 %v783, 125
        %v787 = vpop.permute.xlu0 %786
        %v790 = vadd.f32 %v770, %v785
        %v791 = vadd.f32 %v771, %v787
        %v792 = vstv %s452
        %v793 = vmul.f32 %v792, %v390
        %v794 = vmul.f32 %v792, %v391
        %v795 = vmul.f32 %v792, %v392
        %v799 = vrot.slane %v793, 1
        %v800 = vrot.slane %v794, 1
        %v801 = vsel %vm666, %v799, %v800
        %v802 = vrot.slane %v795, 1
        %v803 = vsel %vm666, %v800, %v802
        %804 = vrot.lane.b32.xlu0 %v801, 125
        %v805 = vpop.permute.xlu0 %804
        %806 = vrot.lane.b32.xlu0 %v803, 125
        %v807 = vpop.permute.xlu0 %806
        %v810 = vadd.f32 %v790, %v805
        %v811 = vadd.f32 %v791, %v807
        %v812 = vstv %s404
        %v813 = vmul.f32 %v812, %v387
        %v814 = vmul.f32 %v812, %v388
        %v815 = vmul.f32 %v812, %v389
        %v819 = vrot.slane %v813, 1
        %v820 = vrot.slane %v814, 1
        %v821 = vsel %vm666, %v819, %v820
        %v822 = vrot.slane %v815, 1
        %v823 = vsel %vm666, %v820, %v822
        %824 = vrot.lane.b32.xlu0 %v821, 124
        %v825 = vpop.permute.xlu0 %824
        %826 = vrot.lane.b32.xlu0 %v823, 124
        %v827 = vpop.permute.xlu0 %826
        %v830 = vadd.f32 %v810, %v825
        %v831 = vadd.f32 %v811, %v827
        %v832 = vstv %s453
        %v833 = vmul.f32 %v832, %v390
        %v834 = vmul.f32 %v832, %v391
        %v835 = vmul.f32 %v832, %v392
        %v839 = vrot.slane %v833, 1
        %v840 = vrot.slane %v834, 1
        %v841 = vsel %vm666, %v839, %v840
        %v842 = vrot.slane %v835, 1
        %v843 = vsel %vm666, %v840, %v842
        %844 = vrot.lane.b32.xlu0 %v841, 124
        %v845 = vpop.permute.xlu0 %844
        %846 = vrot.lane.b32.xlu0 %v843, 124
        %v847 = vpop.permute.xlu0 %846
        %v850 = vadd.f32 %v830, %v845
        %v851 = vadd.f32 %v831, %v847
        %v852 = vstv %s405
        %v853 = vmul.f32 %v852, %v387
        %v854 = vmul.f32 %v852, %v388
        %v855 = vmul.f32 %v852, %v389
        %v859 = vrot.slane %v853, 1
        %v860 = vrot.slane %v854, 1
        %v861 = vsel %vm666, %v859, %v860
        %v862 = vrot.slane %v855, 1
        %v863 = vsel %vm666, %v860, %v862
        %864 = vrot.lane.b32.xlu0 %v861, 123
        %v865 = vpop.permute.xlu0 %864
        %866 = vrot.lane.b32.xlu0 %v863, 123
        %v867 = vpop.permute.xlu0 %866
        %v870 = vadd.f32 %v850, %v865
        %v871 = vadd.f32 %v851, %v867
        %v872 = vstv %s454
        %v873 = vmul.f32 %v872, %v390
        %v874 = vmul.f32 %v872, %v391
        %v875 = vmul.f32 %v872, %v392
        %v879 = vrot.slane %v873, 1
        %v880 = vrot.slane %v874, 1
        %v881 = vsel %vm666, %v879, %v880
        %v882 = vrot.slane %v875, 1
        %v883 = vsel %vm666, %v880, %v882
        %884 = vrot.lane.b32.xlu0 %v881, 123
        %v885 = vpop.permute.xlu0 %884
        %886 = vrot.lane.b32.xlu0 %v883, 123
        %v887 = vpop.permute.xlu0 %886
        %v890 = vadd.f32 %v870, %v885
        %v891 = vadd.f32 %v871, %v887
        %v892 = vstv %s406
        %v893 = vmul.f32 %v892, %v387
        %v894 = vmul.f32 %v892, %v388
        %v895 = vmul.f32 %v892, %v389
        %v899 = vrot.slane %v893, 1
        %v900 = vrot.slane %v894, 1
        %v901 = vsel %vm666, %v899, %v900
        %v902 = vrot.slane %v895, 1
        %v903 = vsel %vm666, %v900, %v902
        %904 = vrot.lane.b32.xlu0 %v901, 122
        %v905 = vpop.permute.xlu0 %904
        %906 = vrot.lane.b32.xlu0 %v903, 122
        %v907 = vpop.permute.xlu0 %906
        %v910 = vadd.f32 %v890, %v905
        %v911 = vadd.f32 %v891, %v907
        %v912 = vstv %s455
        %v913 = vmul.f32 %v912, %v390
        %v914 = vmul.f32 %v912, %v391
        %v915 = vmul.f32 %v912, %v392
        %v919 = vrot.slane %v913, 1
        %v920 = vrot.slane %v914, 1
        %v921 = vsel %vm666, %v919, %v920
        %v922 = vrot.slane %v915, 1
        %v923 = vsel %vm666, %v920, %v922
        %924 = vrot.lane.b32.xlu0 %v921, 122
        %v925 = vpop.permute.xlu0 %924
        %926 = vrot.lane.b32.xlu0 %v923, 122
        %v927 = vpop.permute.xlu0 %926
        %v930 = vadd.f32 %v910, %v925
        %v931 = vadd.f32 %v911, %v927
        %v932 = vstv %s407
        %v933 = vmul.f32 %v932, %v387
        %v934 = vmul.f32 %v932, %v388
        %v935 = vmul.f32 %v932, %v389
        %vm939 = vcmask 1045504
        %v940 = vrot.slane %v933, 2
        %v941 = vrot.slane %v934, 2
        %v942 = vsel %vm939, %v940, %v941
        %v943 = vrot.slane %v935, 2
        %v944 = vsel %vm939, %v941, %v943
        %v947 = vadd.f32 %v930, %v942
        %v948 = vadd.f32 %v931, %v944
        %v949 = vstv %s456
        %v950 = vmul.f32 %v949, %v390
        %v951 = vmul.f32 %v949, %v391
        %v952 = vmul.f32 %v949, %v392
        %v956 = vrot.slane %v950, 2
        %v957 = vrot.slane %v951, 2
        %v958 = vsel %vm939, %v956, %v957
        %v959 = vrot.slane %v952, 2
        %v960 = vsel %vm939, %v957, %v959
        %v963 = vadd.f32 %v947, %v958
        %v964 = vadd.f32 %v948, %v960
        %v965 = vstv %s408
        %v966 = vmul.f32 %v965, %v387
        %v967 = vmul.f32 %v965, %v388
        %v968 = vmul.f32 %v965, %v389
        %v972 = vrot.slane %v966, 2
        %v973 = vrot.slane %v967, 2
        %v974 = vsel %vm939, %v972, %v973
        %v975 = vrot.slane %v968, 2
        %v976 = vsel %vm939, %v973, %v975
        %977 = vrot.lane.b32.xlu0 %v974, 127
        %v978 = vpop.permute.xlu0 %977
        %979 = vrot.lane.b32.xlu0 %v976, 127
        %v980 = vpop.permute.xlu0 %979
        %v983 = vadd.f32 %v963, %v978
        %v984 = vadd.f32 %v964, %v980
        %v985 = vstv %s457
        %v986 = vmul.f32 %v985, %v390
        %v987 = vmul.f32 %v985, %v391
        %v988 = vmul.f32 %v985, %v392
        %v992 = vrot.slane %v986, 2
        %v993 = vrot.slane %v987, 2
        %v994 = vsel %vm939, %v992, %v993
        %v995 = vrot.slane %v988, 2
        %v996 = vsel %vm939, %v993, %v995
        %997 = vrot.lane.b32.xlu0 %v994, 127
        %v998 = vpop.permute.xlu0 %997
        %999 = vrot.lane.b32.xlu0 %v996, 127
        %v1000 = vpop.permute.xlu0 %999
        %v1003 = vadd.f32 %v983, %v998
        %v1004 = vadd.f32 %v984, %v1000
        %v1005 = vstv %s409
        %v1006 = vmul.f32 %v1005, %v387
        %v1007 = vmul.f32 %v1005, %v388
        %v1008 = vmul.f32 %v1005, %v389
        %v1012 = vrot.slane %v1006, 2
        %v1013 = vrot.slane %v1007, 2
        %v1014 = vsel %vm939, %v1012, %v1013
        %v1015 = vrot.slane %v1008, 2
        %v1016 = vsel %vm939, %v1013, %v1015
        %1017 = vrot.lane.b32.xlu0 %v1014, 126
        %v1018 = vpop.permute.xlu0 %1017
        %1019 = vrot.lane.b32.xlu0 %v1016, 126
        %v1020 = vpop.permute.xlu0 %1019
        %v1023 = vadd.f32 %v1003, %v1018
        %v1024 = vadd.f32 %v1004, %v1020
        %v1025 = vstv %s458
        %v1026 = vmul.f32 %v1025, %v390
        %v1027 = vmul.f32 %v1025, %v391
        %v1028 = vmul.f32 %v1025, %v392
        %v1032 = vrot.slane %v1026, 2
        %v1033 = vrot.slane %v1027, 2
        %v1034 = vsel %vm939, %v1032, %v1033
        %v1035 = vrot.slane %v1028, 2
        %v1036 = vsel %vm939, %v1033, %v1035
        %1037 = vrot.lane.b32.xlu0 %v1034, 126
        %v1038 = vpop.permute.xlu0 %1037
        %1039 = vrot.lane.b32.xlu0 %v1036, 126
        %v1040 = vpop.permute.xlu0 %1039
        %v1043 = vadd.f32 %v1023, %v1038
        %v1044 = vadd.f32 %v1024, %v1040
        %v1045 = vstv %s410
        %v1046 = vmul.f32 %v1045, %v387
        %v1047 = vmul.f32 %v1045, %v388
        %v1048 = vmul.f32 %v1045, %v389
        %v1052 = vrot.slane %v1046, 2
        %v1053 = vrot.slane %v1047, 2
        %v1054 = vsel %vm939, %v1052, %v1053
        %v1055 = vrot.slane %v1048, 2
        %v1056 = vsel %vm939, %v1053, %v1055
        %1057 = vrot.lane.b32.xlu0 %v1054, 125
        %v1058 = vpop.permute.xlu0 %1057
        %1059 = vrot.lane.b32.xlu0 %v1056, 125
        %v1060 = vpop.permute.xlu0 %1059
        %v1063 = vadd.f32 %v1043, %v1058
        %v1064 = vadd.f32 %v1044, %v1060
        %v1065 = vstv %s459
        %v1066 = vmul.f32 %v1065, %v390
        %v1067 = vmul.f32 %v1065, %v391
        %v1068 = vmul.f32 %v1065, %v392
        %v1072 = vrot.slane %v1066, 2
        %v1073 = vrot.slane %v1067, 2
        %v1074 = vsel %vm939, %v1072, %v1073
        %v1075 = vrot.slane %v1068, 2
        %v1076 = vsel %vm939, %v1073, %v1075
        %1077 = vrot.lane.b32.xlu0 %v1074, 125
        %v1078 = vpop.permute.xlu0 %1077
        %1079 = vrot.lane.b32.xlu0 %v1076, 125
        %v1080 = vpop.permute.xlu0 %1079
        %v1083 = vadd.f32 %v1063, %v1078
        %v1084 = vadd.f32 %v1064, %v1080
        %v1085 = vstv %s411
        %v1086 = vmul.f32 %v1085, %v387
        %v1087 = vmul.f32 %v1085, %v388
        %v1088 = vmul.f32 %v1085, %v389
        %v1092 = vrot.slane %v1086, 2
        %v1093 = vrot.slane %v1087, 2
        %v1094 = vsel %vm939, %v1092, %v1093
        %v1095 = vrot.slane %v1088, 2
        %v1096 = vsel %vm939, %v1093, %v1095
        %1097 = vrot.lane.b32.xlu0 %v1094, 124
        %v1098 = vpop.permute.xlu0 %1097
        %1099 = vrot.lane.b32.xlu0 %v1096, 124
        %v1100 = vpop.permute.xlu0 %1099
        %v1103 = vadd.f32 %v1083, %v1098
        %v1104 = vadd.f32 %v1084, %v1100
        %v1105 = vstv %s460
        %v1106 = vmul.f32 %v1105, %v390
        %v1107 = vmul.f32 %v1105, %v391
        %v1108 = vmul.f32 %v1105, %v392
        %v1112 = vrot.slane %v1106, 2
        %v1113 = vrot.slane %v1107, 2
        %v1114 = vsel %vm939, %v1112, %v1113
        %v1115 = vrot.slane %v1108, 2
        %v1116 = vsel %vm939, %v1113, %v1115
        %1117 = vrot.lane.b32.xlu0 %v1114, 124
        %v1118 = vpop.permute.xlu0 %1117
        %1119 = vrot.lane.b32.xlu0 %v1116, 124
        %v1120 = vpop.permute.xlu0 %1119
        %v1123 = vadd.f32 %v1103, %v1118
        %v1124 = vadd.f32 %v1104, %v1120
        %v1125 = vstv %s412
        %v1126 = vmul.f32 %v1125, %v387
        %v1127 = vmul.f32 %v1125, %v388
        %v1128 = vmul.f32 %v1125, %v389
        %v1132 = vrot.slane %v1126, 2
        %v1133 = vrot.slane %v1127, 2
        %v1134 = vsel %vm939, %v1132, %v1133
        %v1135 = vrot.slane %v1128, 2
        %v1136 = vsel %vm939, %v1133, %v1135
        %1137 = vrot.lane.b32.xlu0 %v1134, 123
        %v1138 = vpop.permute.xlu0 %1137
        %1139 = vrot.lane.b32.xlu0 %v1136, 123
        %v1140 = vpop.permute.xlu0 %1139
        %v1143 = vadd.f32 %v1123, %v1138
        %v1144 = vadd.f32 %v1124, %v1140
        %v1145 = vstv %s461
        %v1146 = vmul.f32 %v1145, %v390
        %v1147 = vmul.f32 %v1145, %v391
        %v1148 = vmul.f32 %v1145, %v392
        %v1152 = vrot.slane %v1146, 2
        %v1153 = vrot.slane %v1147, 2
        %v1154 = vsel %vm939, %v1152, %v1153
        %v1155 = vrot.slane %v1148, 2
        %v1156 = vsel %vm939, %v1153, %v1155
        %1157 = vrot.lane.b32.xlu0 %v1154, 123
        %v1158 = vpop.permute.xlu0 %1157
        %1159 = vrot.lane.b32.xlu0 %v1156, 123
        %v1160 = vpop.permute.xlu0 %1159
        %v1163 = vadd.f32 %v1143, %v1158
        %v1164 = vadd.f32 %v1144, %v1160
        %v1165 = vstv %s413
        %v1166 = vmul.f32 %v1165, %v387
        %v1167 = vmul.f32 %v1165, %v388
        %v1168 = vmul.f32 %v1165, %v389
        %v1172 = vrot.slane %v1166, 2
        %v1173 = vrot.slane %v1167, 2
        %v1174 = vsel %vm939, %v1172, %v1173
        %v1175 = vrot.slane %v1168, 2
        %v1176 = vsel %vm939, %v1173, %v1175
        %1177 = vrot.lane.b32.xlu0 %v1174, 122
        %v1178 = vpop.permute.xlu0 %1177
        %1179 = vrot.lane.b32.xlu0 %v1176, 122
        %v1180 = vpop.permute.xlu0 %1179
        %v1183 = vadd.f32 %v1163, %v1178
        %v1184 = vadd.f32 %v1164, %v1180
        %v1185 = vstv %s462
        %v1186 = vmul.f32 %v1185, %v390
        %v1187 = vmul.f32 %v1185, %v391
        %v1188 = vmul.f32 %v1185, %v392
        %v1192 = vrot.slane %v1186, 2
        %v1193 = vrot.slane %v1187, 2
        %v1194 = vsel %vm939, %v1192, %v1193
        %v1195 = vrot.slane %v1188, 2
        %v1196 = vsel %vm939, %v1193, %v1195
        %1197 = vrot.lane.b32.xlu0 %v1194, 122
        %v1198 = vpop.permute.xlu0 %1197
        %1199 = vrot.lane.b32.xlu0 %v1196, 122
        %v1200 = vpop.permute.xlu0 %1199
        %v1203 = vadd.f32 %v1183, %v1198
        %v1204 = vadd.f32 %v1184, %v1200
        %v1205 = vstv %s414
        %v1206 = vmul.f32 %v1205, %v387
        %v1207 = vmul.f32 %v1205, %v388
        %v1208 = vmul.f32 %v1205, %v389
        %vm1212 = vcmask 1044480
        %v1213 = vrot.slane %v1206, 3
        %v1214 = vrot.slane %v1207, 3
        %v1215 = vsel %vm1212, %v1213, %v1214
        %v1216 = vrot.slane %v1208, 3
        %v1217 = vsel %vm1212, %v1214, %v1216
        %v1220 = vadd.f32 %v1203, %v1215
        %v1221 = vadd.f32 %v1204, %v1217
        %v1222 = vstv %s463
        %v1223 = vmul.f32 %v1222, %v390
        %v1224 = vmul.f32 %v1222, %v391
        %v1225 = vmul.f32 %v1222, %v392
        %v1229 = vrot.slane %v1223, 3
        %v1230 = vrot.slane %v1224, 3
        %v1231 = vsel %vm1212, %v1229, %v1230
        %v1232 = vrot.slane %v1225, 3
        %v1233 = vsel %vm1212, %v1230, %v1232
        %v1236 = vadd.f32 %v1220, %v1231
        %v1237 = vadd.f32 %v1221, %v1233
        %v1238 = vstv %s415
        %v1239 = vmul.f32 %v1238, %v387
        %v1240 = vmul.f32 %v1238, %v388
        %v1241 = vmul.f32 %v1238, %v389
        %v1245 = vrot.slane %v1239, 3
        %v1246 = vrot.slane %v1240, 3
        %v1247 = vsel %vm1212, %v1245, %v1246
        %v1248 = vrot.slane %v1241, 3
        %v1249 = vsel %vm1212, %v1246, %v1248
        %1250 = vrot.lane.b32.xlu0 %v1247, 127
        %v1251 = vpop.permute.xlu0 %1250
        %1252 = vrot.lane.b32.xlu0 %v1249, 127
        %v1253 = vpop.permute.xlu0 %1252
        %v1256 = vadd.f32 %v1236, %v1251
        %v1257 = vadd.f32 %v1237, %v1253
        %v1258 = vstv %s464
        %v1259 = vmul.f32 %v1258, %v390
        %v1260 = vmul.f32 %v1258, %v391
        %v1261 = vmul.f32 %v1258, %v392
        %v1265 = vrot.slane %v1259, 3
        %v1266 = vrot.slane %v1260, 3
        %v1267 = vsel %vm1212, %v1265, %v1266
        %v1268 = vrot.slane %v1261, 3
        %v1269 = vsel %vm1212, %v1266, %v1268
        %1270 = vrot.lane.b32.xlu0 %v1267, 127
        %v1271 = vpop.permute.xlu0 %1270
        %1272 = vrot.lane.b32.xlu0 %v1269, 127
        %v1273 = vpop.permute.xlu0 %1272
        %v1276 = vadd.f32 %v1256, %v1271
        %v1277 = vadd.f32 %v1257, %v1273
        %v1278 = vstv %s416
        %v1279 = vmul.f32 %v1278, %v387
        %v1280 = vmul.f32 %v1278, %v388
        %v1281 = vmul.f32 %v1278, %v389
        %v1285 = vrot.slane %v1279, 3
        %v1286 = vrot.slane %v1280, 3
        %v1287 = vsel %vm1212, %v1285, %v1286
        %v1288 = vrot.slane %v1281, 3
        %v1289 = vsel %vm1212, %v1286, %v1288
        %1290 = vrot.lane.b32.xlu0 %v1287, 126
        %v1291 = vpop.permute.xlu0 %1290
        %1292 = vrot.lane.b32.xlu0 %v1289, 126
        %v1293 = vpop.permute.xlu0 %1292
        %v1296 = vadd.f32 %v1276, %v1291
        %v1297 = vadd.f32 %v1277, %v1293
        %v1298 = vstv %s465
        %v1299 = vmul.f32 %v1298, %v390
        %v1300 = vmul.f32 %v1298, %v391
        %v1301 = vmul.f32 %v1298, %v392
        %v1305 = vrot.slane %v1299, 3
        %v1306 = vrot.slane %v1300, 3
        %v1307 = vsel %vm1212, %v1305, %v1306
        %v1308 = vrot.slane %v1301, 3
        %v1309 = vsel %vm1212, %v1306, %v1308
        %1310 = vrot.lane.b32.xlu0 %v1307, 126
        %v1311 = vpop.permute.xlu0 %1310
        %1312 = vrot.lane.b32.xlu0 %v1309, 126
        %v1313 = vpop.permute.xlu0 %1312
        %v1316 = vadd.f32 %v1296, %v1311
        %v1317 = vadd.f32 %v1297, %v1313
        %v1318 = vstv %s417
        %v1319 = vmul.f32 %v1318, %v387
        %v1320 = vmul.f32 %v1318, %v388
        %v1321 = vmul.f32 %v1318, %v389
        %v1325 = vrot.slane %v1319, 3
        %v1326 = vrot.slane %v1320, 3
        %v1327 = vsel %vm1212, %v1325, %v1326
        %v1328 = vrot.slane %v1321, 3
        %v1329 = vsel %vm1212, %v1326, %v1328
        %1330 = vrot.lane.b32.xlu0 %v1327, 125
        %v1331 = vpop.permute.xlu0 %1330
        %1332 = vrot.lane.b32.xlu0 %v1329, 125
        %v1333 = vpop.permute.xlu0 %1332
        %v1336 = vadd.f32 %v1316, %v1331
        %v1337 = vadd.f32 %v1317, %v1333
        %v1338 = vstv %s466
        %v1339 = vmul.f32 %v1338, %v390
        %v1340 = vmul.f32 %v1338, %v391
        %v1341 = vmul.f32 %v1338, %v392
        %v1345 = vrot.slane %v1339, 3
        %v1346 = vrot.slane %v1340, 3
        %v1347 = vsel %vm1212, %v1345, %v1346
        %v1348 = vrot.slane %v1341, 3
        %v1349 = vsel %vm1212, %v1346, %v1348
        %1350 = vrot.lane.b32.xlu0 %v1347, 125
        %v1351 = vpop.permute.xlu0 %1350
        %1352 = vrot.lane.b32.xlu0 %v1349, 125
        %v1353 = vpop.permute.xlu0 %1352
        %v1356 = vadd.f32 %v1336, %v1351
        %v1357 = vadd.f32 %v1337, %v1353
        %v1358 = vstv %s418
        %v1359 = vmul.f32 %v1358, %v387
        %v1360 = vmul.f32 %v1358, %v388
        %v1361 = vmul.f32 %v1358, %v389
        %v1365 = vrot.slane %v1359, 3
        %v1366 = vrot.slane %v1360, 3
        %v1367 = vsel %vm1212, %v1365, %v1366
        %v1368 = vrot.slane %v1361, 3
        %v1369 = vsel %vm1212, %v1366, %v1368
        %1370 = vrot.lane.b32.xlu0 %v1367, 124
        %v1371 = vpop.permute.xlu0 %1370
        %1372 = vrot.lane.b32.xlu0 %v1369, 124
        %v1373 = vpop.permute.xlu0 %1372
        %v1376 = vadd.f32 %v1356, %v1371
        %v1377 = vadd.f32 %v1357, %v1373
        %v1378 = vstv %s467
        %v1379 = vmul.f32 %v1378, %v390
        %v1380 = vmul.f32 %v1378, %v391
        %v1381 = vmul.f32 %v1378, %v392
        %v1385 = vrot.slane %v1379, 3
        %v1386 = vrot.slane %v1380, 3
        %v1387 = vsel %vm1212, %v1385, %v1386
        %v1388 = vrot.slane %v1381, 3
        %v1389 = vsel %vm1212, %v1386, %v1388
        %1390 = vrot.lane.b32.xlu0 %v1387, 124
        %v1391 = vpop.permute.xlu0 %1390
        %1392 = vrot.lane.b32.xlu0 %v1389, 124
        %v1393 = vpop.permute.xlu0 %1392
        %v1396 = vadd.f32 %v1376, %v1391
        %v1397 = vadd.f32 %v1377, %v1393
        %v1398 = vstv %s419
        %v1399 = vmul.f32 %v1398, %v387
        %v1400 = vmul.f32 %v1398, %v388
        %v1401 = vmul.f32 %v1398, %v389
        %v1405 = vrot.slane %v1399, 3
        %v1406 = vrot.slane %v1400, 3
        %v1407 = vsel %vm1212, %v1405, %v1406
        %v1408 = vrot.slane %v1401, 3
        %v1409 = vsel %vm1212, %v1406, %v1408
        %1410 = vrot.lane.b32.xlu0 %v1407, 123
        %v1411 = vpop.permute.xlu0 %1410
        %1412 = vrot.lane.b32.xlu0 %v1409, 123
        %v1413 = vpop.permute.xlu0 %1412
        %v1416 = vadd.f32 %v1396, %v1411
        %v1417 = vadd.f32 %v1397, %v1413
        %v1418 = vstv %s468
        %v1419 = vmul.f32 %v1418, %v390
        %v1420 = vmul.f32 %v1418, %v391
        %v1421 = vmul.f32 %v1418, %v392
        %v1425 = vrot.slane %v1419, 3
        %v1426 = vrot.slane %v1420, 3
        %v1427 = vsel %vm1212, %v1425, %v1426
        %v1428 = vrot.slane %v1421, 3
        %v1429 = vsel %vm1212, %v1426, %v1428
        %1430 = vrot.lane.b32.xlu0 %v1427, 123
        %v1431 = vpop.permute.xlu0 %1430
        %1432 = vrot.lane.b32.xlu0 %v1429, 123
        %v1433 = vpop.permute.xlu0 %1432
        %v1436 = vadd.f32 %v1416, %v1431
        %v1437 = vadd.f32 %v1417, %v1433
        %v1438 = vstv %s420
        %v1439 = vmul.f32 %v1438, %v387
        %v1440 = vmul.f32 %v1438, %v388
        %v1441 = vmul.f32 %v1438, %v389
        %v1445 = vrot.slane %v1439, 3
        %v1446 = vrot.slane %v1440, 3
        %v1447 = vsel %vm1212, %v1445, %v1446
        %v1448 = vrot.slane %v1441, 3
        %v1449 = vsel %vm1212, %v1446, %v1448
        %1450 = vrot.lane.b32.xlu0 %v1447, 122
        %v1451 = vpop.permute.xlu0 %1450
        %1452 = vrot.lane.b32.xlu0 %v1449, 122
        %v1453 = vpop.permute.xlu0 %1452
        %v1456 = vadd.f32 %v1436, %v1451
        %v1457 = vadd.f32 %v1437, %v1453
        %v1458 = vstv %s469
        %v1459 = vmul.f32 %v1458, %v390
        %v1460 = vmul.f32 %v1458, %v391
        %v1461 = vmul.f32 %v1458, %v392
        %v1465 = vrot.slane %v1459, 3
        %v1466 = vrot.slane %v1460, 3
        %v1467 = vsel %vm1212, %v1465, %v1466
        %v1468 = vrot.slane %v1461, 3
        %v1469 = vsel %vm1212, %v1466, %v1468
        %1470 = vrot.lane.b32.xlu0 %v1467, 122
        %v1471 = vpop.permute.xlu0 %1470
        %1472 = vrot.lane.b32.xlu0 %v1469, 122
        %v1473 = vpop.permute.xlu0 %1472
        %v1476 = vadd.f32 %v1456, %v1471
        %v1477 = vadd.f32 %v1457, %v1473
        %v1478 = vstv %s421
        %v1479 = vmul.f32 %v1478, %v387
        %v1480 = vmul.f32 %v1478, %v388
        %v1481 = vmul.f32 %v1478, %v389
        %v1485 = vrot.slane %v1479, 4
        %v1486 = vrot.slane %v1480, 4
        %v1487 = vsel %vm206, %v1485, %v1486
        %v1488 = vrot.slane %v1481, 4
        %v1489 = vsel %vm206, %v1486, %v1488
        %v1492 = vadd.f32 %v1476, %v1487
        %v1493 = vadd.f32 %v1477, %v1489
        %v1494 = vstv %s470
        %v1495 = vmul.f32 %v1494, %v390
        %v1496 = vmul.f32 %v1494, %v391
        %v1497 = vmul.f32 %v1494, %v392
        %v1501 = vrot.slane %v1495, 4
        %v1502 = vrot.slane %v1496, 4
        %v1503 = vsel %vm206, %v1501, %v1502
        %v1504 = vrot.slane %v1497, 4
        %v1505 = vsel %vm206, %v1502, %v1504
        %v1508 = vadd.f32 %v1492, %v1503
        %v1509 = vadd.f32 %v1493, %v1505
        %v1510 = vstv %s422
        %v1511 = vmul.f32 %v1510, %v387
        %v1512 = vmul.f32 %v1510, %v388
        %v1513 = vmul.f32 %v1510, %v389
        %v1517 = vrot.slane %v1511, 4
        %v1518 = vrot.slane %v1512, 4
        %v1519 = vsel %vm206, %v1517, %v1518
        %v1520 = vrot.slane %v1513, 4
        %v1521 = vsel %vm206, %v1518, %v1520
        %1522 = vrot.lane.b32.xlu0 %v1519, 127
        %v1523 = vpop.permute.xlu0 %1522
        %1524 = vrot.lane.b32.xlu0 %v1521, 127
        %v1525 = vpop.permute.xlu0 %1524
        %v1528 = vadd.f32 %v1508, %v1523
        %v1529 = vadd.f32 %v1509, %v1525
        %v1530 = vstv %s471
        %v1531 = vmul.f32 %v1530, %v390
        %v1532 = vmul.f32 %v1530, %v391
        %v1533 = vmul.f32 %v1530, %v392
        %v1537 = vrot.slane %v1531, 4
        %v1538 = vrot.slane %v1532, 4
        %v1539 = vsel %vm206, %v1537, %v1538
        %v1540 = vrot.slane %v1533, 4
        %v1541 = vsel %vm206, %v1538, %v1540
        %1542 = vrot.lane.b32.xlu0 %v1539, 127
        %v1543 = vpop.permute.xlu0 %1542
        %1544 = vrot.lane.b32.xlu0 %v1541, 127
        %v1545 = vpop.permute.xlu0 %1544
        %v1548 = vadd.f32 %v1528, %v1543
        %v1549 = vadd.f32 %v1529, %v1545
        %v1550 = vstv %s423
        %v1551 = vmul.f32 %v1550, %v387
        %v1552 = vmul.f32 %v1550, %v388
        %v1553 = vmul.f32 %v1550, %v389
        %v1557 = vrot.slane %v1551, 4
        %v1558 = vrot.slane %v1552, 4
        %v1559 = vsel %vm206, %v1557, %v1558
        %v1560 = vrot.slane %v1553, 4
        %v1561 = vsel %vm206, %v1558, %v1560
        %1562 = vrot.lane.b32.xlu0 %v1559, 126
        %v1563 = vpop.permute.xlu0 %1562
        %1564 = vrot.lane.b32.xlu0 %v1561, 126
        %v1565 = vpop.permute.xlu0 %1564
        %v1568 = vadd.f32 %v1548, %v1563
        %v1569 = vadd.f32 %v1549, %v1565
        %v1570 = vstv %s472
        %v1571 = vmul.f32 %v1570, %v390
        %v1572 = vmul.f32 %v1570, %v391
        %v1573 = vmul.f32 %v1570, %v392
        %v1577 = vrot.slane %v1571, 4
        %v1578 = vrot.slane %v1572, 4
        %v1579 = vsel %vm206, %v1577, %v1578
        %v1580 = vrot.slane %v1573, 4
        %v1581 = vsel %vm206, %v1578, %v1580
        %1582 = vrot.lane.b32.xlu0 %v1579, 126
        %v1583 = vpop.permute.xlu0 %1582
        %1584 = vrot.lane.b32.xlu0 %v1581, 126
        %v1585 = vpop.permute.xlu0 %1584
        %v1588 = vadd.f32 %v1568, %v1583
        %v1589 = vadd.f32 %v1569, %v1585
        %v1590 = vstv %s424
        %v1591 = vmul.f32 %v1590, %v387
        %v1592 = vmul.f32 %v1590, %v388
        %v1593 = vmul.f32 %v1590, %v389
        %v1597 = vrot.slane %v1591, 4
        %v1598 = vrot.slane %v1592, 4
        %v1599 = vsel %vm206, %v1597, %v1598
        %v1600 = vrot.slane %v1593, 4
        %v1601 = vsel %vm206, %v1598, %v1600
        %1602 = vrot.lane.b32.xlu0 %v1599, 125
        %v1603 = vpop.permute.xlu0 %1602
        %1604 = vrot.lane.b32.xlu0 %v1601, 125
        %v1605 = vpop.permute.xlu0 %1604
        %v1608 = vadd.f32 %v1588, %v1603
        %v1609 = vadd.f32 %v1589, %v1605
        %v1610 = vstv %s473
        %v1611 = vmul.f32 %v1610, %v390
        %v1612 = vmul.f32 %v1610, %v391
        %v1613 = vmul.f32 %v1610, %v392
        %v1617 = vrot.slane %v1611, 4
        %v1618 = vrot.slane %v1612, 4
        %v1619 = vsel %vm206, %v1617, %v1618
        %v1620 = vrot.slane %v1613, 4
        %v1621 = vsel %vm206, %v1618, %v1620
        %1622 = vrot.lane.b32.xlu0 %v1619, 125
        %v1623 = vpop.permute.xlu0 %1622
        %1624 = vrot.lane.b32.xlu0 %v1621, 125
        %v1625 = vpop.permute.xlu0 %1624
        %v1628 = vadd.f32 %v1608, %v1623
        %v1629 = vadd.f32 %v1609, %v1625
        %v1630 = vstv %s425
        %v1631 = vmul.f32 %v1630, %v387
        %v1632 = vmul.f32 %v1630, %v388
        %v1633 = vmul.f32 %v1630, %v389
        %v1637 = vrot.slane %v1631, 4
        %v1638 = vrot.slane %v1632, 4
        %v1639 = vsel %vm206, %v1637, %v1638
        %v1640 = vrot.slane %v1633, 4
        %v1641 = vsel %vm206, %v1638, %v1640
        %1642 = vrot.lane.b32.xlu0 %v1639, 124
        %v1643 = vpop.permute.xlu0 %1642
        %1644 = vrot.lane.b32.xlu0 %v1641, 124
        %v1645 = vpop.permute.xlu0 %1644
        %v1648 = vadd.f32 %v1628, %v1643
        %v1649 = vadd.f32 %v1629, %v1645
        %v1650 = vstv %s474
        %v1651 = vmul.f32 %v1650, %v390
        %v1652 = vmul.f32 %v1650, %v391
        %v1653 = vmul.f32 %v1650, %v392
        %v1657 = vrot.slane %v1651, 4
        %v1658 = vrot.slane %v1652, 4
        %v1659 = vsel %vm206, %v1657, %v1658
        %v1660 = vrot.slane %v1653, 4
        %v1661 = vsel %vm206, %v1658, %v1660
        %1662 = vrot.lane.b32.xlu0 %v1659, 124
        %v1663 = vpop.permute.xlu0 %1662
        %1664 = vrot.lane.b32.xlu0 %v1661, 124
        %v1665 = vpop.permute.xlu0 %1664
        %v1668 = vadd.f32 %v1648, %v1663
        %v1669 = vadd.f32 %v1649, %v1665
        %v1670 = vstv %s426
        %v1671 = vmul.f32 %v1670, %v387
        %v1672 = vmul.f32 %v1670, %v388
        %v1673 = vmul.f32 %v1670, %v389
        %v1677 = vrot.slane %v1671, 4
        %v1678 = vrot.slane %v1672, 4
        %v1679 = vsel %vm206, %v1677, %v1678
        %v1680 = vrot.slane %v1673, 4
        %v1681 = vsel %vm206, %v1678, %v1680
        %1682 = vrot.lane.b32.xlu0 %v1679, 123
        %v1683 = vpop.permute.xlu0 %1682
        %1684 = vrot.lane.b32.xlu0 %v1681, 123
        %v1685 = vpop.permute.xlu0 %1684
        %v1688 = vadd.f32 %v1668, %v1683
        %v1689 = vadd.f32 %v1669, %v1685
        %v1690 = vstv %s475
        %v1691 = vmul.f32 %v1690, %v390
        %v1692 = vmul.f32 %v1690, %v391
        %v1693 = vmul.f32 %v1690, %v392
        %v1697 = vrot.slane %v1691, 4
        %v1698 = vrot.slane %v1692, 4
        %v1699 = vsel %vm206, %v1697, %v1698
        %v1700 = vrot.slane %v1693, 4
        %v1701 = vsel %vm206, %v1698, %v1700
        %1702 = vrot.lane.b32.xlu0 %v1699, 123
        %v1703 = vpop.permute.xlu0 %1702
        %1704 = vrot.lane.b32.xlu0 %v1701, 123
        %v1705 = vpop.permute.xlu0 %1704
        %v1708 = vadd.f32 %v1688, %v1703
        %v1709 = vadd.f32 %v1689, %v1705
        %v1710 = vstv %s427
        %v1711 = vmul.f32 %v1710, %v387
        %v1712 = vmul.f32 %v1710, %v388
        %v1713 = vmul.f32 %v1710, %v389
        %v1717 = vrot.slane %v1711, 4
        %v1718 = vrot.slane %v1712, 4
        %v1719 = vsel %vm206, %v1717, %v1718
        %v1720 = vrot.slane %v1713, 4
        %v1721 = vsel %vm206, %v1718, %v1720
        %1722 = vrot.lane.b32.xlu0 %v1719, 122
        %v1723 = vpop.permute.xlu0 %1722
        %1724 = vrot.lane.b32.xlu0 %v1721, 122
        %v1725 = vpop.permute.xlu0 %1724
        %v1728 = vadd.f32 %v1708, %v1723
        %v1729 = vadd.f32 %v1709, %v1725
        %v1730 = vstv %s476
        %v1731 = vmul.f32 %v1730, %v390
        %v1732 = vmul.f32 %v1730, %v391
        %v1733 = vmul.f32 %v1730, %v392
        %v1737 = vrot.slane %v1731, 4
        %v1738 = vrot.slane %v1732, 4
        %v1739 = vsel %vm206, %v1737, %v1738
        %v1740 = vrot.slane %v1733, 4
        %v1741 = vsel %vm206, %v1738, %v1740
        %1742 = vrot.lane.b32.xlu0 %v1739, 122
        %v1743 = vpop.permute.xlu0 %1742
        %1744 = vrot.lane.b32.xlu0 %v1741, 122
        %v1745 = vpop.permute.xlu0 %1744
        %v1748 = vadd.f32 %v1728, %v1743
        %v1749 = vadd.f32 %v1729, %v1745
        %v1750 = vstv %s428
        %v1751 = vmul.f32 %v1750, %v387
        %v1752 = vmul.f32 %v1750, %v388
        %v1753 = vmul.f32 %v1750, %v389
        %vm1757 = vcmask 1042432
        %v1758 = vrot.slane %v1751, 5
        %v1759 = vrot.slane %v1752, 5
        %v1760 = vsel %vm1757, %v1758, %v1759
        %v1761 = vrot.slane %v1753, 5
        %v1762 = vsel %vm1757, %v1759, %v1761
        %v1765 = vadd.f32 %v1748, %v1760
        %v1766 = vadd.f32 %v1749, %v1762
        %v1767 = vstv %s477
        %v1768 = vmul.f32 %v1767, %v390
        %v1769 = vmul.f32 %v1767, %v391
        %v1770 = vmul.f32 %v1767, %v392
        %v1774 = vrot.slane %v1768, 5
        %v1775 = vrot.slane %v1769, 5
        %v1776 = vsel %vm1757, %v1774, %v1775
        %v1777 = vrot.slane %v1770, 5
        %v1778 = vsel %vm1757, %v1775, %v1777
        %v1781 = vadd.f32 %v1765, %v1776
        %v1782 = vadd.f32 %v1766, %v1778
        %v1783 = vstv %s429
        %v1784 = vmul.f32 %v1783, %v387
        %v1785 = vmul.f32 %v1783, %v388
        %v1786 = vmul.f32 %v1783, %v389
        %v1790 = vrot.slane %v1784, 5
        %v1791 = vrot.slane %v1785, 5
        %v1792 = vsel %vm1757, %v1790, %v1791
        %v1793 = vrot.slane %v1786, 5
        %v1794 = vsel %vm1757, %v1791, %v1793
        %1795 = vrot.lane.b32.xlu0 %v1792, 127
        %v1796 = vpop.permute.xlu0 %1795
        %1797 = vrot.lane.b32.xlu0 %v1794, 127
        %v1798 = vpop.permute.xlu0 %1797
        %v1801 = vadd.f32 %v1781, %v1796
        %v1802 = vadd.f32 %v1782, %v1798
        %v1803 = vstv %s478
        %v1804 = vmul.f32 %v1803, %v390
        %v1805 = vmul.f32 %v1803, %v391
        %v1806 = vmul.f32 %v1803, %v392
        %v1810 = vrot.slane %v1804, 5
        %v1811 = vrot.slane %v1805, 5
        %v1812 = vsel %vm1757, %v1810, %v1811
        %v1813 = vrot.slane %v1806, 5
        %v1814 = vsel %vm1757, %v1811, %v1813
        %1815 = vrot.lane.b32.xlu0 %v1812, 127
        %v1816 = vpop.permute.xlu0 %1815
        %1817 = vrot.lane.b32.xlu0 %v1814, 127
        %v1818 = vpop.permute.xlu0 %1817
        %v1821 = vadd.f32 %v1801, %v1816
        %v1822 = vadd.f32 %v1802, %v1818
        %v1823 = vstv %s430
        %v1824 = vmul.f32 %v1823, %v387
        %v1825 = vmul.f32 %v1823, %v388
        %v1826 = vmul.f32 %v1823, %v389
        %v1830 = vrot.slane %v1824, 5
        %v1831 = vrot.slane %v1825, 5
        %v1832 = vsel %vm1757, %v1830, %v1831
        %v1833 = vrot.slane %v1826, 5
        %v1834 = vsel %vm1757, %v1831, %v1833
        %1835 = vrot.lane.b32.xlu0 %v1832, 126
        %v1836 = vpop.permute.xlu0 %1835
        %1837 = vrot.lane.b32.xlu0 %v1834, 126
        %v1838 = vpop.permute.xlu0 %1837
        %v1841 = vadd.f32 %v1821, %v1836
        %v1842 = vadd.f32 %v1822, %v1838
        %v1843 = vstv %s479
        %v1844 = vmul.f32 %v1843, %v390
        %v1845 = vmul.f32 %v1843, %v391
        %v1846 = vmul.f32 %v1843, %v392
        %v1850 = vrot.slane %v1844, 5
        %v1851 = vrot.slane %v1845, 5
        %v1852 = vsel %vm1757, %v1850, %v1851
        %v1853 = vrot.slane %v1846, 5
        %v1854 = vsel %vm1757, %v1851, %v1853
        %1855 = vrot.lane.b32.xlu0 %v1852, 126
        %v1856 = vpop.permute.xlu0 %1855
        %1857 = vrot.lane.b32.xlu0 %v1854, 126
        %v1858 = vpop.permute.xlu0 %1857
        %v1861 = vadd.f32 %v1841, %v1856
        %v1862 = vadd.f32 %v1842, %v1858
        %v1863 = vstv %s431
        %v1864 = vmul.f32 %v1863, %v387
        %v1865 = vmul.f32 %v1863, %v388
        %v1866 = vmul.f32 %v1863, %v389
        %v1870 = vrot.slane %v1864, 5
        %v1871 = vrot.slane %v1865, 5
        %v1872 = vsel %vm1757, %v1870, %v1871
        %v1873 = vrot.slane %v1866, 5
        %v1874 = vsel %vm1757, %v1871, %v1873
        %1875 = vrot.lane.b32.xlu0 %v1872, 125
        %v1876 = vpop.permute.xlu0 %1875
        %1877 = vrot.lane.b32.xlu0 %v1874, 125
        %v1878 = vpop.permute.xlu0 %1877
        %v1881 = vadd.f32 %v1861, %v1876
        %v1882 = vadd.f32 %v1862, %v1878
        %v1883 = vstv %s480
        %v1884 = vmul.f32 %v1883, %v390
        %v1885 = vmul.f32 %v1883, %v391
        %v1886 = vmul.f32 %v1883, %v392
        %v1890 = vrot.slane %v1884, 5
        %v1891 = vrot.slane %v1885, 5
        %v1892 = vsel %vm1757, %v1890, %v1891
        %v1893 = vrot.slane %v1886, 5
        %v1894 = vsel %vm1757, %v1891, %v1893
        %1895 = vrot.lane.b32.xlu0 %v1892, 125
        %v1896 = vpop.permute.xlu0 %1895
        %1897 = vrot.lane.b32.xlu0 %v1894, 125
        %v1898 = vpop.permute.xlu0 %1897
        %v1901 = vadd.f32 %v1881, %v1896
        %v1902 = vadd.f32 %v1882, %v1898
        %v1903 = vstv %s432
        %v1904 = vmul.f32 %v1903, %v387
        %v1905 = vmul.f32 %v1903, %v388
        %v1906 = vmul.f32 %v1903, %v389
        %v1910 = vrot.slane %v1904, 5
        %v1911 = vrot.slane %v1905, 5
        %v1912 = vsel %vm1757, %v1910, %v1911
        %v1913 = vrot.slane %v1906, 5
        %v1914 = vsel %vm1757, %v1911, %v1913
        %1915 = vrot.lane.b32.xlu0 %v1912, 124
        %v1916 = vpop.permute.xlu0 %1915
        %1917 = vrot.lane.b32.xlu0 %v1914, 124
        %v1918 = vpop.permute.xlu0 %1917
        %v1921 = vadd.f32 %v1901, %v1916
        %v1922 = vadd.f32 %v1902, %v1918
        %v1923 = vstv %s481
        %v1924 = vmul.f32 %v1923, %v390
        %v1925 = vmul.f32 %v1923, %v391
        %v1926 = vmul.f32 %v1923, %v392
        %v1930 = vrot.slane %v1924, 5
        %v1931 = vrot.slane %v1925, 5
        %v1932 = vsel %vm1757, %v1930, %v1931
        %v1933 = vrot.slane %v1926, 5
        %v1934 = vsel %vm1757, %v1931, %v1933
        %1935 = vrot.lane.b32.xlu0 %v1932, 124
        %v1936 = vpop.permute.xlu0 %1935
        %1937 = vrot.lane.b32.xlu0 %v1934, 124
        %v1938 = vpop.permute.xlu0 %1937
        %v1941 = vadd.f32 %v1921, %v1936
        %v1942 = vadd.f32 %v1922, %v1938
        %v1943 = vstv %s433
        %v1944 = vmul.f32 %v1943, %v387
        %v1945 = vmul.f32 %v1943, %v388
        %v1946 = vmul.f32 %v1943, %v389
        %v1950 = vrot.slane %v1944, 5
        %v1951 = vrot.slane %v1945, 5
        %v1952 = vsel %vm1757, %v1950, %v1951
        %v1953 = vrot.slane %v1946, 5
        %v1954 = vsel %vm1757, %v1951, %v1953
        %1955 = vrot.lane.b32.xlu0 %v1952, 123
        %v1956 = vpop.permute.xlu0 %1955
        %1957 = vrot.lane.b32.xlu0 %v1954, 123
        %v1958 = vpop.permute.xlu0 %1957
        %v1961 = vadd.f32 %v1941, %v1956
        %v1962 = vadd.f32 %v1942, %v1958
        %v1963 = vstv %s482
        %v1964 = vmul.f32 %v1963, %v390
        %v1965 = vmul.f32 %v1963, %v391
        %v1966 = vmul.f32 %v1963, %v392
        %v1970 = vrot.slane %v1964, 5
        %v1971 = vrot.slane %v1965, 5
        %v1972 = vsel %vm1757, %v1970, %v1971
        %v1973 = vrot.slane %v1966, 5
        %v1974 = vsel %vm1757, %v1971, %v1973
        %1975 = vrot.lane.b32.xlu0 %v1972, 123
        %v1976 = vpop.permute.xlu0 %1975
        %1977 = vrot.lane.b32.xlu0 %v1974, 123
        %v1978 = vpop.permute.xlu0 %1977
        %v1981 = vadd.f32 %v1961, %v1976
        %v1982 = vadd.f32 %v1962, %v1978
        %v1983 = vstv %s434
        %v1984 = vmul.f32 %v1983, %v387
        %v1985 = vmul.f32 %v1983, %v388
        %v1986 = vmul.f32 %v1983, %v389
        %v1990 = vrot.slane %v1984, 5
        %v1991 = vrot.slane %v1985, 5
        %v1992 = vsel %vm1757, %v1990, %v1991
        %v1993 = vrot.slane %v1986, 5
        %v1994 = vsel %vm1757, %v1991, %v1993
        %1995 = vrot.lane.b32.xlu0 %v1992, 122
        %v1996 = vpop.permute.xlu0 %1995
        %1997 = vrot.lane.b32.xlu0 %v1994, 122
        %v1998 = vpop.permute.xlu0 %1997
        %v2001 = vadd.f32 %v1981, %v1996
        %v2002 = vadd.f32 %v1982, %v1998
        %v2003 = vstv %s483
        %v2004 = vmul.f32 %v2003, %v390
        %v2005 = vmul.f32 %v2003, %v391
        %v2006 = vmul.f32 %v2003, %v392
        %v2010 = vrot.slane %v2004, 5
        %v2011 = vrot.slane %v2005, 5
        %v2012 = vsel %vm1757, %v2010, %v2011
        %v2013 = vrot.slane %v2006, 5
        %v2014 = vsel %vm1757, %v2011, %v2013
        %2015 = vrot.lane.b32.xlu0 %v2012, 122
        %v2016 = vpop.permute.xlu0 %2015
        %2017 = vrot.lane.b32.xlu0 %v2014, 122
        %v2018 = vpop.permute.xlu0 %2017
        %v2021 = vadd.f32 %v2001, %v2016
        %v2022 = vadd.f32 %v2002, %v2018
        %v2023 = vstv %s435
        %v2024 = vmul.f32 %v2023, %v387
        %v2025 = vmul.f32 %v2023, %v388
        %v2026 = vmul.f32 %v2023, %v389
        %vm2030 = vcmask 1041408
        %v2031 = vrot.slane %v2024, 6
        %v2032 = vrot.slane %v2025, 6
        %v2033 = vsel %vm2030, %v2031, %v2032
        %v2034 = vrot.slane %v2026, 6
        %v2035 = vsel %vm2030, %v2032, %v2034
        %v2038 = vadd.f32 %v2021, %v2033
        %v2039 = vadd.f32 %v2022, %v2035
        %v2040 = vstv %s484
        %v2041 = vmul.f32 %v2040, %v390
        %v2042 = vmul.f32 %v2040, %v391
        %v2043 = vmul.f32 %v2040, %v392
        %v2047 = vrot.slane %v2041, 6
        %v2048 = vrot.slane %v2042, 6
        %v2049 = vsel %vm2030, %v2047, %v2048
        %v2050 = vrot.slane %v2043, 6
        %v2051 = vsel %vm2030, %v2048, %v2050
        %v2054 = vadd.f32 %v2038, %v2049
        %v2055 = vadd.f32 %v2039, %v2051
        %v2056 = vstv %s436
        %v2057 = vmul.f32 %v2056, %v387
        %v2058 = vmul.f32 %v2056, %v388
        %v2059 = vmul.f32 %v2056, %v389
        %v2063 = vrot.slane %v2057, 6
        %v2064 = vrot.slane %v2058, 6
        %v2065 = vsel %vm2030, %v2063, %v2064
        %v2066 = vrot.slane %v2059, 6
        %v2067 = vsel %vm2030, %v2064, %v2066
        %2068 = vrot.lane.b32.xlu0 %v2065, 127
        %v2069 = vpop.permute.xlu0 %2068
        %2070 = vrot.lane.b32.xlu0 %v2067, 127
        %v2071 = vpop.permute.xlu0 %2070
        %v2074 = vadd.f32 %v2054, %v2069
        %v2075 = vadd.f32 %v2055, %v2071
        %v2076 = vstv %s485
        %v2077 = vmul.f32 %v2076, %v390
        %v2078 = vmul.f32 %v2076, %v391
        %v2079 = vmul.f32 %v2076, %v392
        %v2083 = vrot.slane %v2077, 6
        %v2084 = vrot.slane %v2078, 6
        %v2085 = vsel %vm2030, %v2083, %v2084
        %v2086 = vrot.slane %v2079, 6
        %v2087 = vsel %vm2030, %v2084, %v2086
        %2088 = vrot.lane.b32.xlu0 %v2085, 127
        %v2089 = vpop.permute.xlu0 %2088
        %2090 = vrot.lane.b32.xlu0 %v2087, 127
        %v2091 = vpop.permute.xlu0 %2090
        %v2094 = vadd.f32 %v2074, %v2089
        %v2095 = vadd.f32 %v2075, %v2091
        %v2096 = vstv %s437
        %v2097 = vmul.f32 %v2096, %v387
        %v2098 = vmul.f32 %v2096, %v388
        %v2099 = vmul.f32 %v2096, %v389
        %v2103 = vrot.slane %v2097, 6
        %v2104 = vrot.slane %v2098, 6
        %v2105 = vsel %vm2030, %v2103, %v2104
        %v2106 = vrot.slane %v2099, 6
        %v2107 = vsel %vm2030, %v2104, %v2106
        %2108 = vrot.lane.b32.xlu0 %v2105, 126
        %v2109 = vpop.permute.xlu0 %2108
        %2110 = vrot.lane.b32.xlu0 %v2107, 126
        %v2111 = vpop.permute.xlu0 %2110
        %v2114 = vadd.f32 %v2094, %v2109
        %v2115 = vadd.f32 %v2095, %v2111
        %v2116 = vstv %s486
        %v2117 = vmul.f32 %v2116, %v390
        %v2118 = vmul.f32 %v2116, %v391
        %v2119 = vmul.f32 %v2116, %v392
        %v2123 = vrot.slane %v2117, 6
        %v2124 = vrot.slane %v2118, 6
        %v2125 = vsel %vm2030, %v2123, %v2124
        %v2126 = vrot.slane %v2119, 6
        %v2127 = vsel %vm2030, %v2124, %v2126
        %2128 = vrot.lane.b32.xlu0 %v2125, 126
        %v2129 = vpop.permute.xlu0 %2128
        %2130 = vrot.lane.b32.xlu0 %v2127, 126
        %v2131 = vpop.permute.xlu0 %2130
        %v2134 = vadd.f32 %v2114, %v2129
        %v2135 = vadd.f32 %v2115, %v2131
        %v2136 = vstv %s438
        %v2137 = vmul.f32 %v2136, %v387
        %v2138 = vmul.f32 %v2136, %v388
        %v2139 = vmul.f32 %v2136, %v389
        %v2143 = vrot.slane %v2137, 6
        %v2144 = vrot.slane %v2138, 6
        %v2145 = vsel %vm2030, %v2143, %v2144
        %v2146 = vrot.slane %v2139, 6
        %v2147 = vsel %vm2030, %v2144, %v2146
        %2148 = vrot.lane.b32.xlu0 %v2145, 125
        %v2149 = vpop.permute.xlu0 %2148
        %2150 = vrot.lane.b32.xlu0 %v2147, 125
        %v2151 = vpop.permute.xlu0 %2150
        %v2154 = vadd.f32 %v2134, %v2149
        %v2155 = vadd.f32 %v2135, %v2151
        %v2156 = vstv %s487
        %v2157 = vmul.f32 %v2156, %v390
        %v2158 = vmul.f32 %v2156, %v391
        %v2159 = vmul.f32 %v2156, %v392
        %v2163 = vrot.slane %v2157, 6
        %v2164 = vrot.slane %v2158, 6
        %v2165 = vsel %vm2030, %v2163, %v2164
        %v2166 = vrot.slane %v2159, 6
        %v2167 = vsel %vm2030, %v2164, %v2166
        %2168 = vrot.lane.b32.xlu0 %v2165, 125
        %v2169 = vpop.permute.xlu0 %2168
        %2170 = vrot.lane.b32.xlu0 %v2167, 125
        %v2171 = vpop.permute.xlu0 %2170
        %v2174 = vadd.f32 %v2154, %v2169
        %v2175 = vadd.f32 %v2155, %v2171
        %v2176 = vstv %s439
        %v2177 = vmul.f32 %v2176, %v387
        %v2178 = vmul.f32 %v2176, %v388
        %v2179 = vmul.f32 %v2176, %v389
        %v2183 = vrot.slane %v2177, 6
        %v2184 = vrot.slane %v2178, 6
        %v2185 = vsel %vm2030, %v2183, %v2184
        %v2186 = vrot.slane %v2179, 6
        %v2187 = vsel %vm2030, %v2184, %v2186
        %2188 = vrot.lane.b32.xlu0 %v2185, 124
        %v2189 = vpop.permute.xlu0 %2188
        %2190 = vrot.lane.b32.xlu0 %v2187, 124
        %v2191 = vpop.permute.xlu0 %2190
        %v2194 = vadd.f32 %v2174, %v2189
        %v2195 = vadd.f32 %v2175, %v2191
        %v2196 = vstv %s488
        %v2197 = vmul.f32 %v2196, %v390
        %v2198 = vmul.f32 %v2196, %v391
        %v2199 = vmul.f32 %v2196, %v392
        %v2203 = vrot.slane %v2197, 6
        %v2204 = vrot.slane %v2198, 6
        %v2205 = vsel %vm2030, %v2203, %v2204
        %v2206 = vrot.slane %v2199, 6
        %v2207 = vsel %vm2030, %v2204, %v2206
        %2208 = vrot.lane.b32.xlu0 %v2205, 124
        %v2209 = vpop.permute.xlu0 %2208
        %2210 = vrot.lane.b32.xlu0 %v2207, 124
        %v2211 = vpop.permute.xlu0 %2210
        %v2214 = vadd.f32 %v2194, %v2209
        %v2215 = vadd.f32 %v2195, %v2211
        %v2216 = vstv %s440
        %v2217 = vmul.f32 %v2216, %v387
        %v2218 = vmul.f32 %v2216, %v388
        %v2219 = vmul.f32 %v2216, %v389
        %v2223 = vrot.slane %v2217, 6
        %v2224 = vrot.slane %v2218, 6
        %v2225 = vsel %vm2030, %v2223, %v2224
        %v2226 = vrot.slane %v2219, 6
        %v2227 = vsel %vm2030, %v2224, %v2226
        %2228 = vrot.lane.b32.xlu0 %v2225, 123
        %v2229 = vpop.permute.xlu0 %2228
        %2230 = vrot.lane.b32.xlu0 %v2227, 123
        %v2231 = vpop.permute.xlu0 %2230
        %v2234 = vadd.f32 %v2214, %v2229
        %v2235 = vadd.f32 %v2215, %v2231
        %v2236 = vstv %s489
        %v2237 = vmul.f32 %v2236, %v390
        %v2238 = vmul.f32 %v2236, %v391
        %v2239 = vmul.f32 %v2236, %v392
        %v2243 = vrot.slane %v2237, 6
        %v2244 = vrot.slane %v2238, 6
        %v2245 = vsel %vm2030, %v2243, %v2244
        %v2246 = vrot.slane %v2239, 6
        %v2247 = vsel %vm2030, %v2244, %v2246
        %2248 = vrot.lane.b32.xlu0 %v2245, 123
        %v2249 = vpop.permute.xlu0 %2248
        %2250 = vrot.lane.b32.xlu0 %v2247, 123
        %v2251 = vpop.permute.xlu0 %2250
        %v2254 = vadd.f32 %v2234, %v2249
        %v2255 = vadd.f32 %v2235, %v2251
        %v2256 = vstv %s441
        %v2257 = vmul.f32 %v2256, %v387
        %v2258 = vmul.f32 %v2256, %v388
        %v2259 = vmul.f32 %v2256, %v389
        %v2263 = vrot.slane %v2257, 6
        %v2264 = vrot.slane %v2258, 6
        %v2265 = vsel %vm2030, %v2263, %v2264
        %v2266 = vrot.slane %v2259, 6
        %v2267 = vsel %vm2030, %v2264, %v2266
        %2268 = vrot.lane.b32.xlu0 %v2265, 122
        %v2269 = vpop.permute.xlu0 %2268
        %2270 = vrot.lane.b32.xlu0 %v2267, 122
        %v2271 = vpop.permute.xlu0 %2270
        %v2274 = vadd.f32 %v2254, %v2269
        %v2275 = vadd.f32 %v2255, %v2271
        %v2276 = vstv %s490
        %v2277 = vmul.f32 %v2276, %v390
        %v2278 = vmul.f32 %v2276, %v391
        %v2279 = vmul.f32 %v2276, %v392
        %v2283 = vrot.slane %v2277, 6
        %v2284 = vrot.slane %v2278, 6
        %v2285 = vsel %vm2030, %v2283, %v2284
        %v2286 = vrot.slane %v2279, 6
        %v2287 = vsel %vm2030, %v2284, %v2286
        %2288 = vrot.lane.b32.xlu0 %v2285, 122
        %v2289 = vpop.permute.xlu0 %2288
        %2290 = vrot.lane.b32.xlu0 %v2287, 122
        %v2291 = vpop.permute.xlu0 %2290
        %v2294 = vadd.f32 %v2274, %v2289
        %v2295 = vadd.f32 %v2275, %v2291
        %v2296 = vxor.u32 %v2294, 2147483648
        %v2297 = vxor.u32 %v2295, 2147483648
        %v2298 = vmul.f32 %v2296, 1.442695
        %v2299 = vpow.pop %v2298
        %v2300 = vmul.f32 %v2297, 1.442695
        %v2301 = vpow.pop %v2300
        %v2302 = vadd.f32 %v2299, 1.0
        %v2303 = vadd.f32 %v2301, 1.0
        %v2304 = vrcp.pop %v2302
        %v2305 = vmul.f32 1.0, %v2304
        %v2306 = vrcp.pop %v2303
        %v2307 = vmul.f32 1.0, %v2306
        %v2308 = vlaneseq
        %vm2309 = vcmp.ge.s32.totalorder %v2308, 0
        %vm2310 = vcmp.lt.s32.totalorder %v2308, 16
        %vm2311 = vmand %vm2309, %vm2310
        %2312 = vst.msk [vmem:[%s201] sm:$0x1] %vm2311, %v2305
        %v2315 = vunpack.c.l.s4 1966171168
        %v2316 = vunpack.c.0.s8 %v2315
        %v2317 = vlaneseq
        %v2318 = vshrl.u32 %v2317, 7
        %v2319 = vsub.s32 %v2316, %v2318
        %v2320 = vrot.slane %v2305, %v2319
        %v2321 = vcombine.high %v2320, %v2320
        %v2323 = vunpack.c.l.s4 1966171168
        %v2324 = vunpack.c.0.s8 %v2323
        %v2325 = vlaneseq
        %v2326 = vshrl.u32 %v2325, 7
        %v2327 = vsub.s32 %v2324, %v2326
        %v2328 = vrot.slane %v2320, %v2327
        %v2330 = vunpack.c.l.s4 1966171168
        %v2331 = vunpack.c.0.s8 %v2330
        %v2332 = vlaneseq
        %v2333 = vshrl.u32 %v2332, 7
        %v2334 = vsub.s32 %v2331, %v2333
        %v2335 = vrot.slane %v2321, %v2334
        %2336 = vrot.lane.b32.xlu0 %v2335, 16
        %v2337 = vpop.permute.xlu0 %2336
        %vm2339 = vcmp.ge.s32.totalorder %v2308, 16
        %vm2340 = vcmp.lt.s32.totalorder %v2308, 32
        %vm2341 = vmand %vm2339, %vm2340
        %2342 = vst.msk [vmem:[%s201] sm:$0x1] %vm2341, %v2337
        %v2343 = vcombine.high %v2328, %v2328
        %2344 = vrot.lane.b32.xlu0 %v2343, 32
        %v2345 = vpop.permute.xlu0 %2344
        %vm2347 = vcmp.ge.s32.totalorder %v2308, 32
        %vm2348 = vcmp.lt.s32.totalorder %v2308, 48
        %vm2349 = vmand %vm2347, %vm2348
        %2350 = vst.msk [vmem:[%s201] sm:$0x1] %vm2349, %v2345
        %v2351 = vcombine.high %v2335, %v2335
        %2352 = vrot.lane.b32.xlu0 %v2351, 48
        %v2353 = vpop.permute.xlu0 %2352
        %vm2355 = vcmp.ge.s32.totalorder %v2308, 48
        %vm2356 = vcmp.lt.s32.totalorder %v2308, 64
        %vm2357 = vmand %vm2355, %vm2356
        %2358 = vst.msk [vmem:[%s201] sm:$0x1] %vm2357, %v2353
        %v2359 = vcombine.high %v2305, %v2305
        %v2361 = vunpack.c.l.s4 1966171168
        %v2362 = vunpack.c.0.s8 %v2361
        %v2363 = vlaneseq
        %v2364 = vshrl.u32 %v2363, 7
        %v2365 = vsub.s32 %v2362, %v2364
        %v2366 = vrot.slane %v2359, %v2365
        %v2368 = vunpack.c.l.s4 1966171168
        %v2369 = vunpack.c.0.s8 %v2368
        %v2370 = vlaneseq
        %v2371 = vshrl.u32 %v2370, 7
        %v2372 = vsub.s32 %v2369, %v2371
        %v2373 = vrot.slane %v2366, %v2372
        %2374 = vrot.lane.b32.xlu0 %v2373, 64
        %v2375 = vpop.permute.xlu0 %2374
        %vm2377 = vcmp.ge.s32.totalorder %v2308, 64
        %vm2378 = vcmp.lt.s32.totalorder %v2308, 80
        %vm2379 = vmand %vm2377, %vm2378
        %2380 = vst.msk [vmem:[%s201] sm:$0x1] %vm2379, %v2375
        %v2381 = vcombine.high %v2366, %v2366
        %v2383 = vunpack.c.l.s4 1966171168
        %v2384 = vunpack.c.0.s8 %v2383
        %v2385 = vlaneseq
        %v2386 = vshrl.u32 %v2385, 7
        %v2387 = vsub.s32 %v2384, %v2386
        %v2388 = vrot.slane %v2381, %v2387
        %2389 = vrot.lane.b32.xlu0 %v2388, 80
        %v2390 = vpop.permute.xlu0 %2389
        %vm2392 = vcmp.ge.s32.totalorder %v2308, 80
        %vm2393 = vcmp.lt.s32.totalorder %v2308, 96
        %vm2394 = vmand %vm2392, %vm2393
        %2395 = vst.msk [vmem:[%s201] sm:$0x1] %vm2394, %v2390
        %v2396 = vcombine.high %v2373, %v2373
        %2397 = vrot.lane.b32.xlu0 %v2396, 96
        %v2398 = vpop.permute.xlu0 %2397
        %vm2400 = vcmp.ge.s32.totalorder %v2308, 96
        %vm2401 = vcmp.lt.s32.totalorder %v2308, 112
        %vm2402 = vmand %vm2400, %vm2401
        %2403 = vst.msk [vmem:[%s201] sm:$0x1] %vm2402, %v2398
        %v2404 = vcombine.high %v2388, %v2388
        %2405 = vrot.lane.b32.xlu0 %v2404, 112
        %v2406 = vpop.permute.xlu0 %2405
        %vm2408 = vcmp.ge.s32.totalorder %v2308, 112
        %vm2409 = vcmp.lt.s32.totalorder %v2308, 128
        %vm2410 = vmand %vm2408, %vm2409
        %2411 = vst.msk [vmem:[%s201] sm:$0x1] %vm2410, %v2406
        %2412 = vst.msk [vmem:[%s201 + $0x1] sm:$0x1] %vm2311, %v2307
        %v2415 = vunpack.c.l.s4 1966171168
        %v2416 = vunpack.c.0.s8 %v2415
        %v2417 = vlaneseq
        %v2418 = vshrl.u32 %v2417, 7
        %v2419 = vsub.s32 %v2416, %v2418
        %v2420 = vrot.slane %v2307, %v2419
        %v2421 = vcombine.high %v2420, %v2420
        %v2423 = vunpack.c.l.s4 1966171168
        %v2424 = vunpack.c.0.s8 %v2423
        %v2425 = vlaneseq
        %v2426 = vshrl.u32 %v2425, 7
        %v2427 = vsub.s32 %v2424, %v2426
        %v2428 = vrot.slane %v2420, %v2427
        %v2430 = vunpack.c.l.s4 1966171168
        %v2431 = vunpack.c.0.s8 %v2430
        %v2432 = vlaneseq
        %v2433 = vshrl.u32 %v2432, 7
        %v2434 = vsub.s32 %v2431, %v2433
        %v2435 = vrot.slane %v2421, %v2434
        %2436 = vrot.lane.b32.xlu0 %v2435, 16
        %v2437 = vpop.permute.xlu0 %2436
        %2439 = vst.msk [vmem:[%s201 + $0x1] sm:$0x1] %vm2341, %v2437
        %v2440 = vcombine.high %v2428, %v2428
        %2441 = vrot.lane.b32.xlu0 %v2440, 32
        %v2442 = vpop.permute.xlu0 %2441
        %2444 = vst.msk [vmem:[%s201 + $0x1] sm:$0x1] %vm2349, %v2442
        %v2445 = vcombine.high %v2435, %v2435
        %2446 = vrot.lane.b32.xlu0 %v2445, 48
        %v2447 = vpop.permute.xlu0 %2446
        %2449 = vst.msk [vmem:[%s201 + $0x1] sm:$0x1] %vm2357, %v2447
        %v2450 = vcombine.high %v2307, %v2307
        %v2452 = vunpack.c.l.s4 1966171168
        %v2453 = vunpack.c.0.s8 %v2452
        %v2454 = vlaneseq
        %v2455 = vshrl.u32 %v2454, 7
        %v2456 = vsub.s32 %v2453, %v2455
        %v2457 = vrot.slane %v2450, %v2456
        %v2459 = vunpack.c.l.s4 1966171168
        %v2460 = vunpack.c.0.s8 %v2459
        %v2461 = vlaneseq
        %v2462 = vshrl.u32 %v2461, 7
        %v2463 = vsub.s32 %v2460, %v2462
        %v2464 = vrot.slane %v2457, %v2463
        %2465 = vrot.lane.b32.xlu0 %v2464, 64
        %v2466 = vpop.permute.xlu0 %2465
        %2468 = vst.msk [vmem:[%s201 + $0x1] sm:$0x1] %vm2379, %v2466
        %v2469 = vcombine.high %v2457, %v2457
        %v2471 = vunpack.c.l.s4 1966171168
        %v2472 = vunpack.c.0.s8 %v2471
        %v2473 = vlaneseq
        %v2474 = vshrl.u32 %v2473, 7
        %v2475 = vsub.s32 %v2472, %v2474
        %v2476 = vrot.slane %v2469, %v2475
        %2477 = vrot.lane.b32.xlu0 %v2476, 80
        %v2478 = vpop.permute.xlu0 %2477
        %2480 = vst.msk [vmem:[%s201 + $0x1] sm:$0x1] %vm2394, %v2478
        %v2481 = vcombine.high %v2464, %v2464
        %2482 = vrot.lane.b32.xlu0 %v2481, 96
        %v2483 = vpop.permute.xlu0 %2482
        %2485 = vst.msk [vmem:[%s201 + $0x1] sm:$0x1] %vm2402, %v2483
        %v2486 = vcombine.high %v2476, %v2476
        %2487 = vrot.lane.b32.xlu0 %v2486, 112
        %v2488 = vpop.permute.xlu0 %2487
        %2490 = vst.msk [vmem:[%s201 + $0x1] sm:$0x1] %vm2410, %v2488
        %s2491 = sand.u32 %s98, 1
        %s2492 = scalar_lea.sflag [#allocation6], %s2491
        %s2493 = sand.u32 %s98, 1
        %s2494 = smul.addr %s2493, 2
        %s2495 = scalar_lea.vmem [#allocation9], %s2494
        // Predicated region
        $region41: #{tpu_custom_call.1} parent=31 // pred_check
          %p2496 = pneg %p108
        $region42: #{tpu_custom_call.1} parent=31 // pred_check_branch
          %2498 = sbr.rel (%p2496) target = $region44
        $region43: #{tpu_custom_call.1} parent=31 // pred_region
          %s2500 = ssub.s32 32, 32
          %2501 = vsyncadd %s2492, %s2500
          %s2502 = smul.addr %s22, 2
          %s2503 = smul.addr %s2502, 16
          %s2504 = scalar_lea.hbm %s3, %s2503
          %s2506 = sshll.u32 %s2495, 4
          %s2507 = int_to_ptr.vmem [resolvable:$true] %s2506
          %2509 = dma.vmem_to_hbm [thread:$0]  %s2507, 32, %s2504, %s2492
        $region44: #{tpu_custom_call.1} parent=31 // pred_fallthru
          _
      $region32: #{tpu_custom_call.1} parent=5 // pred_fallthru
        _
      %p2510 = scmp.le.s32.totalorder 2, %s17
      // Predicated region
      $region45: #{tpu_custom_call.1} parent=5 // pred_check
        %p2511 = pneg %p2510
      $region46: #{tpu_custom_call.1} parent=5 // pred_check_branch
        %2513 = sbr.rel (%p2511) target = $region48
      $region47: #{tpu_custom_call.1} parent=5 // pred_region
        %s2514 = ssub.s32 %s17, 2
        // Predicated region
        $region49: #{tpu_custom_call.1} parent=47 // pred_check
          %p2515 = pneg %p114
        $region50: #{tpu_custom_call.1} parent=47 // pred_check_branch
          %2517 = sbr.rel (%p2515) target = $region52
        $region51: #{tpu_custom_call.1} parent=47 // pred_region
          %s2518 = sand.u32 %s99, 1
          %s2519 = scalar_lea.sflag [#allocation6], %s2518
          %s2520 = sand.u32 %s99, 1
          %s2521 = smul.addr %s2520, 2
          %s2522 = scalar_lea.vmem [#allocation9], %s2521
          %2523 = dma.done %s2519, 32
        $region52: #{tpu_custom_call.1} parent=47 // pred_fallthru
          _
      $region48: #{tpu_custom_call.1} parent=5 // pred_fallthru
        _
    $region6: #{tpu_custom_call.1} parent=1 // loop_footer
      %s21 = sadd.s32 1, %s17
    $region7: #{tpu_custom_call.1} parent=1 // loop_footer_branch
      %16 = sbr.rel target = $region3
    $region8: #{tpu_custom_call.1} parent=1 // loop_exit
      _
    %2524 = vsyncpa [#allocation5], 1
    %s2525 = scalar_lea.sflag [#allocation5], 1
    %2526 = vsyncpa %s2525, 1
    %2527 = vsyncpa [#allocation6], 1
    %s2528 = scalar_lea.sflag [#allocation6], 1
    %2529 = vsyncpa %s2528, 1
    %2530 = vsyncpa [#allocation7], 1
    %s2531 = scalar_lea.sflag [#allocation7], 1
    %2532 = vsyncpa %s2531, 1

</llo_original>
